<compile_context>
chip_gen: v7x
topology: tpu7x:2x2x1
jax: 0.10.0
libtpu: 0.0.40
codegen_flags: <defaults>
</compile_context>

<pallas_src>
import jax
import jax.numpy as jnp
from jax import lax
from jax.experimental import pallas as pl
from jax.experimental.pallas import tpu as pltpu

# Small synthetic config consistent with SentimentRNN's __init__ (scaled down)
VOCAB = 64
EMB = 32           # embedding_dim
HID = 32           # hidden_dim
GATES = 4 * HID    # 128 -> one full lane tile
N_LAYERS = 2
OUT = 1            # output_size
OUT_PAD = 128      # lane-dense padding for the sigmoid output store
SEQ = 8
BTILE = 8          # batch rows per grid step (fills the 8-sublane vreg dim)
BATCH = 16         # total independent sequences
NUM_TILES = BATCH // BTILE


def sentiment_rnn_kernel(ids_ref, ptab_ref, whh0_ref, wih1_ref, whh1_ref, misc_ref,
                         out_ref, state_ref):
    H = HID

    # ---- fused embedding gather + layer-0 input projection (one small MXU matmul) ----
    # ptab = emb_table @ W_ih0 (pre-scaled) is precomputed in the wrapper; the gather is
    # exact since one_hot rows have a single 1.0.
    ids = ids_ref[...]                                               # (SEQ*BTILE, 1) int32
    iota = lax.broadcasted_iota(jnp.int32, (SEQ * BTILE, VOCAB), 1)
    one_hot = (ids == iota).astype(jnp.float32)                      # (SEQ*BTILE, VOCAB)
    b0 = misc_ref[0:1, :]                                            # (1, 4H)
    proj0 = jnp.dot(one_hot, ptab_ref[...],
                    preferred_element_type=jnp.float32) + b0         # (SEQ*BTILE, 4H)

    whh0 = whh0_ref[...]
    wih1 = wih1_ref[...]
    whh1 = whh1_ref[...]
    b1 = misc_ref[1:2, :]

    # init_hidden(): zero hidden / cell state for both layers (kept in registers)
    zeros = jnp.zeros((BTILE, H), jnp.float32)
    h0, c0, h1, c1 = zeros, zeros, zeros, zeros

    # Fully unrolled time loop (SEQ is a small static trip count).
    for t in range(SEQ):
        # ---- LSTM layer 0: aligned (8,128) proj0 slice + one recurrent dot ----
        g0 = proj0[t * BTILE:(t + 1) * BTILE, :] + jnp.dot(
            h0, whh0, preferred_element_type=jnp.float32)            # (BTILE, 4H)
        # Single EUP tanh pass per layer: g-gate columns [2H:3H] are pre-scaled by 2, so
        # tanh(0.5*g) is simultaneously the stable-sigmoid input for i/f/o and tanh(g) for g.
        t0 = jnp.tanh(0.5 * g0)
        s0 = 0.5 * t0 + 0.5                                          # sigmoid(g), VPU only
        i0, f0, o0 = s0[:, :H], s0[:, H:2 * H], s0[:, 3 * H:]
        gg0 = t0[:, 2 * H:3 * H]
        c0 = f0 * c0 + i0 * gg0
        h0 = o0 * jnp.tanh(c0)

        # ---- LSTM layer 1: two small dots, no per-step lane concat ----
        # TODO(synk): nn.LSTM(dropout=0.5) / nn.Dropout(0.3) are train-only; identity here.
        g1 = (jnp.dot(h0, wih1, preferred_element_type=jnp.float32)
              + jnp.dot(h1, whh1, preferred_element_type=jnp.float32) + b1)
        t1 = jnp.tanh(0.5 * g1)
        s1 = 0.5 * t1 + 0.5
        i1, f1, o1 = s1[:, :H], s1[:, H:2 * H], s1[:, 3 * H:]
        gg1 = t1[:, 2 * H:3 * H]
        c1 = f1 * c1 + i1 * gg1
        h1 = o1 * jnp.tanh(c1)

    # ---- fc + sigmoid on last hidden state (OUT=1 -> VPU/XLU lane reduction, skip MXU) ----
    fcw = misc_ref[2:3, :H]                                          # (1, H)
    fcb = misc_ref[3:4, 0:1]                                         # (1, 1)
    logits = jnp.sum(h1 * fcw, axis=-1, keepdims=True) + fcb         # (BTILE, 1)
    sig = 0.5 * jnp.tanh(0.5 * logits) + 0.5                         # stable sigmoid via EUP
    out_ref[...] = jnp.broadcast_to(sig, (BTILE, OUT_PAD))           # lane-dense unmasked vst

    # Single lane-dense (BTILE, 128) state store: [h0 | h1 | c0 | c1].
    state_ref[...] = jnp.concatenate([h0, h1, c0, c1], axis=-1)


def _prep_params(params):
    """Pre-scale g-gate columns, fuse embedding into the input projection, pack biases/fc."""
    H = HID
    scale = jnp.ones((1, 4 * H), jnp.float32).at[:, 2 * H:3 * H].set(2.0)
    w_ih0 = params["w_ih0"] * scale
    whh0 = params["w_hh0"] * scale
    wih1 = params["w_ih1"] * scale
    whh1 = params["w_hh1"] * scale
    b0 = params["b0"] * scale
    b1 = params["b1"] * scale
    # Fuse the embedding table into the layer-0 input projection: (VOCAB, 4H).
    ptab = jnp.dot(params["embedding"], w_ih0, precision=lax.Precision.HIGHEST)
    # Pack all tiny (1, N) params into one (4, 128) VMEM tile: [b0; b1; fc_w; fc_b].
    fcw_pad = jnp.zeros((1, 4 * H), jnp.float32).at[:, :H].set(params["fc_w"].T)
    fcb_pad = jnp.full((1, 4 * H), params["fc_b"][0, 0], jnp.float32)
    misc = jnp.concatenate([b0, b1, fcw_pad, fcb_pad], axis=0)
    return ptab, whh0, wih1, whh1, misc


@jax.jit
def sentiment_rnn_forward(token_ids, params):
    """token_ids: (BATCH, SEQ) int32. Returns (sig_out (BATCH,), (h_n, c_n))."""
    ptab, whh0, wih1, whh1, misc = _prep_params(params)

    # Time-major ids per batch tile: within tile i, row t*BTILE + b is (step t, batch i*BTILE+b).
    ids_tm = (token_ids.reshape(NUM_TILES, BTILE, SEQ)
              .transpose(0, 2, 1)
              .reshape(NUM_TILES * SEQ * BTILE, 1).astype(jnp.int32))

    full = lambda shape: pl.BlockSpec(shape, lambda i: (0,) * len(shape))

    out_pad, state = pl.pallas_call(
        sentiment_rnn_kernel,
        out_shape=(
            jax.ShapeDtypeStruct((BATCH, OUT_PAD), jnp.float32),
            jax.ShapeDtypeStruct((BATCH, 4 * HID), jnp.float32),
        ),
        grid_spec=pltpu.PrefetchScalarGridSpec(
            num_scalar_prefetch=0,
            grid=(NUM_TILES,),
            in_specs=[
                pl.BlockSpec((SEQ * BTILE, 1), lambda i: (i, 0)),   # token ids (time-major)
                full((VOCAB, 4 * HID)),                             # emb_table @ W_ih0 (scaled)
                full((HID, 4 * HID)),                               # W_hh layer0 (scaled)
                full((HID, 4 * HID)),                               # W_ih layer1 (scaled)
                full((HID, 4 * HID)),                               # W_hh layer1 (scaled)
                full((4, 4 * HID)),                                 # [b0; b1; fc_w; fc_b]
            ],
            out_specs=[
                pl.BlockSpec((BTILE, OUT_PAD), lambda i: (i, 0)),
                pl.BlockSpec((BTILE, 4 * HID), lambda i: (i, 0)),
            ],
        ),
        compiler_params=pltpu.CompilerParams(
            dimension_semantics=("parallel",)),   # batch tiles -> both v7x TensorCores
    )(ids_tm, ptab, whh0, wih1, whh1, misc)

    sig_out = out_pad[:, 0]
    h_n = jnp.stack([state[:, :HID], state[:, HID:2 * HID]])
    c_n = jnp.stack([state[:, 2 * HID:3 * HID], state[:, 3 * HID:]])
    return sig_out, (h_n, c_n)


def make_params(key):
    ks = jax.random.split(key, 9)
    s = 0.1
    return {
        "embedding": s * jax.random.normal(ks[0], (VOCAB, EMB), jnp.float32),
        # PyTorch weight_ih_l0 is (4H, E); we store transposed (E, 4H) for the MXU.
        "w_ih0": s * jax.random.normal(ks[1], (EMB, 4 * HID), jnp.float32),
        "w_hh0": s * jax.random.normal(ks[2], (HID, 4 * HID), jnp.float32),
        "b0": s * jax.random.normal(ks[3], (1, 4 * HID), jnp.float32),   # b_ih + b_hh folded
        "w_ih1": s * jax.random.normal(ks[4], (HID, 4 * HID), jnp.float32),
        "w_hh1": s * jax.random.normal(ks[5], (HID, 4 * HID), jnp.float32),
        "b1": s * jax.random.normal(ks[6], (1, 4 * HID), jnp.float32),
        "fc_w": s * jax.random.normal(ks[7], (HID, OUT), jnp.float32),   # (out,hid) transposed
        "fc_b": s * jax.random.normal(ks[8], (1, OUT), jnp.float32),
    }


def reference_forward(token_ids, params):
    """Pure-JAX reference of the same forward pass (for correctness checking)."""
    H = HID
    hp = lax.Precision.HIGHEST
    embeds = jnp.take(params["embedding"], token_ids, axis=0)  # (B, T, E)
    h = [jnp.zeros((BATCH, H)), jnp.zeros((BATCH, H))]
    c = [jnp.zeros((BATCH, H)), jnp.zeros((BATCH, H))]
    for t in range(SEQ):
        x_t = embeds[:, t, :]
        for layer, (wih, whh, b) in enumerate(
                [(params["w_ih0"], params["w_hh0"], params["b0"]),
                 (params["w_ih1"], params["w_hh1"], params["b1"])]):
            g = (jnp.dot(x_t, wih, precision=hp)
                 + jnp.dot(h[layer], whh, precision=hp) + b)
            i = jax.nn.sigmoid(g[:, 0:H])
            f = jax.nn.sigmoid(g[:, H:2 * H])
            gg = jnp.tanh(g[:, 2 * H:3 * H])
            o = jax.nn.sigmoid(g[:, 3 * H:4 * H])
            c[layer] = f * c[layer] + i * gg
            h[layer] = o * jnp.tanh(c[layer])
            x_t = h[layer]
    sig = jax.nn.sigmoid(jnp.dot(h[1], params["fc_w"], precision=hp) + params["fc_b"])[:, -1]
    return sig, (jnp.stack(h), jnp.stack(c))


if __name__ == "__main__":
    key = jax.random.PRNGKey(0)
    pkey, xkey = jax.random.split(key)
    params = make_params(pkey)
    token_ids = jax.random.randint(xkey, (BATCH, SEQ), 0, VOCAB, dtype=jnp.int32)

    sig_out, (h_n, c_n) = sentiment_rnn_forward(token_ids, params)
    jax.block_until_ready((sig_out, h_n, c_n))

    ref_sig, (ref_h, ref_c) = reference_forward(token_ids, params)
    assert jnp.allclose(sig_out, ref_sig, atol=1e-5), (sig_out, ref_sig)
    assert jnp.allclose(h_n, ref_h, atol=1e-5)
    assert jnp.allclose(c_n, ref_c, atol=1e-5)

    print("KERNEL_OK")
</pallas_src>

<mosaic_0001>
module attributes {stable_mosaic.version = 11 : i64} {
  func.func @sentiment_rnn_kernel(%arg0: i32, %arg1: memref<64x1xi32, #tpu.memory_space<vmem>>, %arg2: memref<64x128xf32, #tpu.memory_space<vmem>>, %arg3: memref<32x128xf32, #tpu.memory_space<vmem>>, %arg4: memref<32x128xf32, #tpu.memory_space<vmem>>, %arg5: memref<32x128xf32, #tpu.memory_space<vmem>>, %arg6: memref<4x128xf32, #tpu.memory_space<vmem>>, %arg7: memref<8x128xf32, #tpu.memory_space<vmem>>, %arg8: memref<8x128xf32, #tpu.memory_space<vmem>>) attributes {dimension_semantics = [#tpu.dimension_semantics<parallel>], iteration_bounds = array<i64: 2>, scalar_prefetch = 0 : i64, scratch_operands = 0 : i64, tpu.core_type = #tpu.core_type<tc>, window_params = [{transform_indices = @transform_0, window_bounds = array<i64: 64, 1>}, {pipeline_mode = #tpu.pipeline_mode<synchronous>, transform_indices = @transform_1, window_bounds = array<i64: 64, 128>}, {pipeline_mode = #tpu.pipeline_mode<synchronous>, transform_indices = @transform_2, window_bounds = array<i64: 32, 128>}, {pipeline_mode = #tpu.pipeline_mode<synchronous>, transform_indices = @transform_3, window_bounds = array<i64: 32, 128>}, {pipeline_mode = #tpu.pipeline_mode<synchronous>, transform_indices = @transform_4, window_bounds = array<i64: 32, 128>}, {pipeline_mode = #tpu.pipeline_mode<synchronous>, transform_indices = @transform_5, window_bounds = array<i64: 4, 128>}, {transform_indices = @transform_6, window_bounds = array<i64: 8, 128>}, {transform_indices = @transform_7, window_bounds = array<i64: 8, 128>}]} {
    %c0 = arith.constant 0 : index
    %c0_0 = arith.constant 0 : index
    %0 = vector.load %arg1[%c0, %c0_0] : memref<64x1xi32, #tpu.memory_space<vmem>>, vector<64x1xi32>
    %1 = tpu.iota {dimensions = array<i32: 1>} : vector<64x64xi32>
    %2 = vector.broadcast %0 : vector<64x1xi32> to vector<64x64xi32>
    %3 = arith.cmpi eq, %2, %1 : vector<64x64xi32>
    %4 = arith.extui %3 : vector<64x64xi1> to vector<64x64xi32>
    %5 = arith.sitofp %4 : vector<64x64xi32> to vector<64x64xf32>
    %c0_1 = arith.constant 0 : index
    %c0_2 = arith.constant 0 : index
    %6 = vector.load %arg6[%c0_1, %c0_2] : memref<4x128xf32, #tpu.memory_space<vmem>>, vector<1x128xf32>
    %c0_3 = arith.constant 0 : index
    %c0_4 = arith.constant 0 : index
    %7 = vector.load %arg2[%c0_3, %c0_4] : memref<64x128xf32, #tpu.memory_space<vmem>>, vector<64x128xf32>
    %cst = arith.constant dense<0.000000e+00> : vector<64x128xf32>
    %8 = tpu.matmul %5, %7, %cst {dimension_numbers = #tpu.dot_dimension_numbers<[1], [0], [0], [1], [0, 0, 1, 1], [], []>} : vector<64x64xf32>, vector<64x128xf32>, vector<64x128xf32> -> vector<64x128xf32>
    %9 = vector.broadcast %6 : vector<1x128xf32> to vector<64x128xf32>
    %10 = arith.addf %8, %9 : vector<64x128xf32>
    %c0_5 = arith.constant 0 : index
    %c0_6 = arith.constant 0 : index
    %11 = vector.load %arg3[%c0_5, %c0_6] : memref<32x128xf32, #tpu.memory_space<vmem>>, vector<32x128xf32>
    %c0_7 = arith.constant 0 : index
    %c0_8 = arith.constant 0 : index
    %12 = vector.load %arg4[%c0_7, %c0_8] : memref<32x128xf32, #tpu.memory_space<vmem>>, vector<32x128xf32>
    %c0_9 = arith.constant 0 : index
    %c0_10 = arith.constant 0 : index
    %13 = vector.load %arg5[%c0_9, %c0_10] : memref<32x128xf32, #tpu.memory_space<vmem>>, vector<32x128xf32>
    %c1 = arith.constant 1 : index
    %c0_11 = arith.constant 0 : index
    %14 = vector.load %arg6[%c1, %c0_11] : memref<4x128xf32, #tpu.memory_space<vmem>>, vector<1x128xf32>
    %cst_12 = arith.constant 0.000000e+00 : f32
    %15 = vector.broadcast %cst_12 : f32 to vector<8x32xf32>
    %16 = vector.extract_strided_slice %10 {offsets = [0, 0], sizes = [8, 128], strides = [1, 1]} : vector<64x128xf32> to vector<8x128xf32>
    %cst_13 = arith.constant dense<0.000000e+00> : vector<8x128xf32>
    %17 = tpu.matmul %15, %11, %cst_13 {dimension_numbers = #tpu.dot_dimension_numbers<[1], [0], [0], [1], [0, 0, 1, 1], [], []>} : vector<8x32xf32>, vector<32x128xf32>, vector<8x128xf32> -> vector<8x128xf32>
    %18 = arith.addf %16, %17 : vector<8x128xf32>
    %cst_14 = arith.constant 5.000000e-01 : f32
    %19 = vector.broadcast %cst_14 : f32 to vector<8x128xf32>
    %20 = arith.mulf %19, %18 : vector<8x128xf32>
    %21 = math.tanh %20 : vector<8x128xf32>
    %cst_15 = arith.constant 5.000000e-01 : f32
    %22 = vector.broadcast %cst_15 : f32 to vector<8x128xf32>
    %23 = arith.mulf %22, %21 : vector<8x128xf32>
    %cst_16 = arith.constant 5.000000e-01 : f32
    %24 = vector.broadcast %cst_16 : f32 to vector<8x128xf32>
    %25 = arith.addf %23, %24 : vector<8x128xf32>
    %26 = vector.extract_strided_slice %25 {offsets = [0, 0], sizes = [8, 32], strides = [1, 1]} : vector<8x128xf32> to vector<8x32xf32>
    %27 = vector.extract_strided_slice %25 {offsets = [0, 32], sizes = [8, 32], strides = [1, 1]} : vector<8x128xf32> to vector<8x32xf32>
    %28 = vector.extract_strided_slice %25 {offsets = [0, 96], sizes = [8, 32], strides = [1, 1]} : vector<8x128xf32> to vector<8x32xf32>
    %29 = vector.extract_strided_slice %21 {offsets = [0, 64], sizes = [8, 32], strides = [1, 1]} : vector<8x128xf32> to vector<8x32xf32>
    %30 = arith.mulf %27, %15 : vector<8x32xf32>
    %31 = arith.mulf %26, %29 : vector<8x32xf32>
    %32 = arith.addf %30, %31 : vector<8x32xf32>
    %33 = math.tanh %32 : vector<8x32xf32>
    %34 = arith.mulf %28, %33 : vector<8x32xf32>
    %cst_17 = arith.constant dense<0.000000e+00> : vector<8x128xf32>
    %35 = tpu.matmul %34, %12, %cst_17 {dimension_numbers = #tpu.dot_dimension_numbers<[1], [0], [0], [1], [0, 0, 1, 1], [], []>} : vector<8x32xf32>, vector<32x128xf32>, vector<8x128xf32> -> vector<8x128xf32>
    %cst_18 = arith.constant dense<0.000000e+00> : vector<8x128xf32>
    %36 = tpu.matmul %15, %13, %cst_18 {dimension_numbers = #tpu.dot_dimension_numbers<[1], [0], [0], [1], [0, 0, 1, 1], [], []>} : vector<8x32xf32>, vector<32x128xf32>, vector<8x128xf32> -> vector<8x128xf32>
    %37 = arith.addf %35, %36 : vector<8x128xf32>
    %38 = vector.broadcast %14 : vector<1x128xf32> to vector<8x128xf32>
    %39 = arith.addf %37, %38 : vector<8x128xf32>
    %cst_19 = arith.constant 5.000000e-01 : f32
    %40 = vector.broadcast %cst_19 : f32 to vector<8x128xf32>
    %41 = arith.mulf %40, %39 : vector<8x128xf32>
    %42 = math.tanh %41 : vector<8x128xf32>
    %cst_20 = arith.constant 5.000000e-01 : f32
    %43 = vector.broadcast %cst_20 : f32 to vector<8x128xf32>
    %44 = arith.mulf %43, %42 : vector<8x128xf32>
    %cst_21 = arith.constant 5.000000e-01 : f32
    %45 = vector.broadcast %cst_21 : f32 to vector<8x128xf32>
    %46 = arith.addf %44, %45 : vector<8x128xf32>
    %47 = vector.extract_strided_slice %46 {offsets = [0, 0], sizes = [8, 32], strides = [1, 1]} : vector<8x128xf32> to vector<8x32xf32>
    %48 = vector.extract_strided_slice %46 {offsets = [0, 32], sizes = [8, 32], strides = [1, 1]} : vector<8x128xf32> to vector<8x32xf32>
    %49 = vector.extract_strided_slice %46 {offsets = [0, 96], sizes = [8, 32], strides = [1, 1]} : vector<8x128xf32> to vector<8x32xf32>
    %50 = vector.extract_strided_slice %42 {offsets = [0, 64], sizes = [8, 32], strides = [1, 1]} : vector<8x128xf32> to vector<8x32xf32>
    %51 = arith.mulf %48, %15 : vector<8x32xf32>
    %52 = arith.mulf %47, %50 : vector<8x32xf32>
    %53 = arith.addf %51, %52 : vector<8x32xf32>
    %54 = math.tanh %53 : vector<8x32xf32>
    %55 = arith.mulf %49, %54 : vector<8x32xf32>
    %56 = vector.extract_strided_slice %10 {offsets = [8, 0], sizes = [8, 128], strides = [1, 1]} : vector<64x128xf32> to vector<8x128xf32>
    %cst_22 = arith.constant dense<0.000000e+00> : vector<8x128xf32>
    %57 = tpu.matmul %34, %11, %cst_22 {dimension_numbers = #tpu.dot_dimension_numbers<[1], [0], [0], [1], [0, 0, 1, 1], [], []>} : vector<8x32xf32>, vector<32x128xf32>, vector<8x128xf32> -> vector<8x128xf32>
    %58 = arith.addf %56, %57 : vector<8x128xf32>
    %cst_23 = arith.constant 5.000000e-01 : f32
    %59 = vector.broadcast %cst_23 : f32 to vector<8x128xf32>
    %60 = arith.mulf %59, %58 : vector<8x128xf32>
    %61 = math.tanh %60 : vector<8x128xf32>
    %cst_24 = arith.constant 5.000000e-01 : f32
    %62 = vector.broadcast %cst_24 : f32 to vector<8x128xf32>
    %63 = arith.mulf %62, %61 : vector<8x128xf32>
    %cst_25 = arith.constant 5.000000e-01 : f32
    %64 = vector.broadcast %cst_25 : f32 to vector<8x128xf32>
    %65 = arith.addf %63, %64 : vector<8x128xf32>
    %66 = vector.extract_strided_slice %65 {offsets = [0, 0], sizes = [8, 32], strides = [1, 1]} : vector<8x128xf32> to vector<8x32xf32>
    %67 = vector.extract_strided_slice %65 {offsets = [0, 32], sizes = [8, 32], strides = [1, 1]} : vector<8x128xf32> to vector<8x32xf32>
    %68 = vector.extract_strided_slice %65 {offsets = [0, 96], sizes = [8, 32], strides = [1, 1]} : vector<8x128xf32> to vector<8x32xf32>
    %69 = vector.extract_strided_slice %61 {offsets = [0, 64], sizes = [8, 32], strides = [1, 1]} : vector<8x128xf32> to vector<8x32xf32>
    %70 = arith.mulf %67, %32 : vector<8x32xf32>
    %71 = arith.mulf %66, %69 : vector<8x32xf32>
    %72 = arith.addf %70, %71 : vector<8x32xf32>
    %73 = math.tanh %72 : vector<8x32xf32>
    %74 = arith.mulf %68, %73 : vector<8x32xf32>
    %cst_26 = arith.constant dense<0.000000e+00> : vector<8x128xf32>
    %75 = tpu.matmul %74, %12, %cst_26 {dimension_numbers = #tpu.dot_dimension_numbers<[1], [0], [0], [1], [0, 0, 1, 1], [], []>} : vector<8x32xf32>, vector<32x128xf32>, vector<8x128xf32> -> vector<8x128xf32>
    %cst_27 = arith.constant dense<0.000000e+00> : vector<8x128xf32>
    %76 = tpu.matmul %55, %13, %cst_27 {dimension_numbers = #tpu.dot_dimension_numbers<[1], [0], [0], [1], [0, 0, 1, 1], [], []>} : vector<8x32xf32>, vector<32x128xf32>, vector<8x128xf32> -> vector<8x128xf32>
    %77 = arith.addf %75, %76 : vector<8x128xf32>
    %78 = vector.broadcast %14 : vector<1x128xf32> to vector<8x128xf32>
    %79 = arith.addf %77, %78 : vector<8x128xf32>
    %cst_28 = arith.constant 5.000000e-01 : f32
    %80 = vector.broadcast %cst_28 : f32 to vector<8x128xf32>
    %81 = arith.mulf %80, %79 : vector<8x128xf32>
    %82 = math.tanh %81 : vector<8x128xf32>
    %cst_29 = arith.constant 5.000000e-01 : f32
    %83 = vector.broadcast %cst_29 : f32 to vector<8x128xf32>
    %84 = arith.mulf %83, %82 : vector<8x128xf32>
    %cst_30 = arith.constant 5.000000e-01 : f32
    %85 = vector.broadcast %cst_30 : f32 to vector<8x128xf32>
    %86 = arith.addf %84, %85 : vector<8x128xf32>
    %87 = vector.extract_strided_slice %86 {offsets = [0, 0], sizes = [8, 32], strides = [1, 1]} : vector<8x128xf32> to vector<8x32xf32>
    %88 = vector.extract_strided_slice %86 {offsets = [0, 32], sizes = [8, 32], strides = [1, 1]} : vector<8x128xf32> to vector<8x32xf32>
    %89 = vector.extract_strided_slice %86 {offsets = [0, 96], sizes = [8, 32], strides = [1, 1]} : vector<8x128xf32> to vector<8x32xf32>
    %90 = vector.extract_strided_slice %82 {offsets = [0, 64], sizes = [8, 32], strides = [1, 1]} : vector<8x128xf32> to vector<8x32xf32>
    %91 = arith.mulf %88, %53 : vector<8x32xf32>
    %92 = arith.mulf %87, %90 : vector<8x32xf32>
    %93 = arith.addf %91, %92 : vector<8x32xf32>
    %94 = math.tanh %93 : vector<8x32xf32>
    %95 = arith.mulf %89, %94 : vector<8x32xf32>
    %96 = vector.extract_strided_slice %10 {offsets = [16, 0], sizes = [8, 128], strides = [1, 1]} : vector<64x128xf32> to vector<8x128xf32>
    %cst_31 = arith.constant dense<0.000000e+00> : vector<8x128xf32>
    %97 = tpu.matmul %74, %11, %cst_31 {dimension_numbers = #tpu.dot_dimension_numbers<[1], [0], [0], [1], [0, 0, 1, 1], [], []>} : vector<8x32xf32>, vector<32x128xf32>, vector<8x128xf32> -> vector<8x128xf32>
    %98 = arith.addf %96, %97 : vector<8x128xf32>
    %cst_32 = arith.constant 5.000000e-01 : f32
    %99 = vector.broadcast %cst_32 : f32 to vector<8x128xf32>
    %100 = arith.mulf %99, %98 : vector<8x128xf32>
    %101 = math.tanh %100 : vector<8x128xf32>
    %cst_33 = arith.constant 5.000000e-01 : f32
    %102 = vector.broadcast %cst_33 : f32 to vector<8x128xf32>
    %103 = arith.mulf %102, %101 : vector<8x128xf32>
    %cst_34 = arith.constant 5.000000e-01 : f32
    %104 = vector.broadcast %cst_34 : f32 to vector<8x128xf32>
    %105 = arith.addf %103, %104 : vector<8x128xf32>
    %106 = vector.extract_strided_slice %105 {offsets = [0, 0], sizes = [8, 32], strides = [1, 1]} : vector<8x128xf32> to vector<8x32xf32>
    %107 = vector.extract_strided_slice %105 {offsets = [0, 32], sizes = [8, 32], strides = [1, 1]} : vector<8x128xf32> to vector<8x32xf32>
    %108 = vector.extract_strided_slice %105 {offsets = [0, 96], sizes = [8, 32], strides = [1, 1]} : vector<8x128xf32> to vector<8x32xf32>
    %109 = vector.extract_strided_slice %101 {offsets = [0, 64], sizes = [8, 32], strides = [1, 1]} : vector<8x128xf32> to vector<8x32xf32>
    %110 = arith.mulf %107, %72 : vector<8x32xf32>
    %111 = arith.mulf %106, %109 : vector<8x32xf32>
    %112 = arith.addf %110, %111 : vector<8x32xf32>
    %113 = math.tanh %112 : vector<8x32xf32>
    %114 = arith.mulf %108, %113 : vector<8x32xf32>
    %cst_35 = arith.constant dense<0.000000e+00> : vector<8x128xf32>
    %115 = tpu.matmul %114, %12, %cst_35 {dimension_numbers = #tpu.dot_dimension_numbers<[1], [0], [0], [1], [0, 0, 1, 1], [], []>} : vector<8x32xf32>, vector<32x128xf32>, vector<8x128xf32> -> vector<8x128xf32>
    %cst_36 = arith.constant dense<0.000000e+00> : vector<8x128xf32>
    %116 = tpu.matmul %95, %13, %cst_36 {dimension_numbers = #tpu.dot_dimension_numbers<[1], [0], [0], [1], [0, 0, 1, 1], [], []>} : vector<8x32xf32>, vector<32x128xf32>, vector<8x128xf32> -> vector<8x128xf32>
    %117 = arith.addf %115, %116 : vector<8x128xf32>
    %118 = vector.broadcast %14 : vector<1x128xf32> to vector<8x128xf32>
    %119 = arith.addf %117, %118 : vector<8x128xf32>
    %cst_37 = arith.constant 5.000000e-01 : f32
    %120 = vector.broadcast %cst_37 : f32 to vector<8x128xf32>
    %121 = arith.mulf %120, %119 : vector<8x128xf32>
    %122 = math.tanh %121 : vector<8x128xf32>
    %cst_38 = arith.constant 5.000000e-01 : f32
    %123 = vector.broadcast %cst_38 : f32 to vector<8x128xf32>
    %124 = arith.mulf %123, %122 : vector<8x128xf32>
    %cst_39 = arith.constant 5.000000e-01 : f32
    %125 = vector.broadcast %cst_39 : f32 to vector<8x128xf32>
    %126 = arith.addf %124, %125 : vector<8x128xf32>
    %127 = vector.extract_strided_slice %126 {offsets = [0, 0], sizes = [8, 32], strides = [1, 1]} : vector<8x128xf32> to vector<8x32xf32>
    %128 = vector.extract_strided_slice %126 {offsets = [0, 32], sizes = [8, 32], strides = [1, 1]} : vector<8x128xf32> to vector<8x32xf32>
    %129 = vector.extract_strided_slice %126 {offsets = [0, 96], sizes = [8, 32], strides = [1, 1]} : vector<8x128xf32> to vector<8x32xf32>
    %130 = vector.extract_strided_slice %122 {offsets = [0, 64], sizes = [8, 32], strides = [1, 1]} : vector<8x128xf32> to vector<8x32xf32>
    %131 = arith.mulf %128, %93 : vector<8x32xf32>
    %132 = arith.mulf %127, %130 : vector<8x32xf32>
    %133 = arith.addf %131, %132 : vector<8x32xf32>
    %134 = math.tanh %133 : vector<8x32xf32>
    %135 = arith.mulf %129, %134 : vector<8x32xf32>
    %136 = vector.extract_strided_slice %10 {offsets = [24, 0], sizes = [8, 128], strides = [1, 1]} : vector<64x128xf32> to vector<8x128xf32>
    %cst_40 = arith.constant dense<0.000000e+00> : vector<8x128xf32>
    %137 = tpu.matmul %114, %11, %cst_40 {dimension_numbers = #tpu.dot_dimension_numbers<[1], [0], [0], [1], [0, 0, 1, 1], [], []>} : vector<8x32xf32>, vector<32x128xf32>, vector<8x128xf32> -> vector<8x128xf32>
    %138 = arith.addf %136, %137 : vector<8x128xf32>
    %cst_41 = arith.constant 5.000000e-01 : f32
    %139 = vector.broadcast %cst_41 : f32 to vector<8x128xf32>
    %140 = arith.mulf %139, %138 : vector<8x128xf32>
    %141 = math.tanh %140 : vector<8x128xf32>
    %cst_42 = arith.constant 5.000000e-01 : f32
    %142 = vector.broadcast %cst_42 : f32 to vector<8x128xf32>
    %143 = arith.mulf %142, %141 : vector<8x128xf32>
    %cst_43 = arith.constant 5.000000e-01 : f32
    %144 = vector.broadcast %cst_43 : f32 to vector<8x128xf32>
    %145 = arith.addf %143, %144 : vector<8x128xf32>
    %146 = vector.extract_strided_slice %145 {offsets = [0, 0], sizes = [8, 32], strides = [1, 1]} : vector<8x128xf32> to vector<8x32xf32>
    %147 = vector.extract_strided_slice %145 {offsets = [0, 32], sizes = [8, 32], strides = [1, 1]} : vector<8x128xf32> to vector<8x32xf32>
    %148 = vector.extract_strided_slice %145 {offsets = [0, 96], sizes = [8, 32], strides = [1, 1]} : vector<8x128xf32> to vector<8x32xf32>
    %149 = vector.extract_strided_slice %141 {offsets = [0, 64], sizes = [8, 32], strides = [1, 1]} : vector<8x128xf32> to vector<8x32xf32>
    %150 = arith.mulf %147, %112 : vector<8x32xf32>
    %151 = arith.mulf %146, %149 : vector<8x32xf32>
    %152 = arith.addf %150, %151 : vector<8x32xf32>
    %153 = math.tanh %152 : vector<8x32xf32>
    %154 = arith.mulf %148, %153 : vector<8x32xf32>
    %cst_44 = arith.constant dense<0.000000e+00> : vector<8x128xf32>
    %155 = tpu.matmul %154, %12, %cst_44 {dimension_numbers = #tpu.dot_dimension_numbers<[1], [0], [0], [1], [0, 0, 1, 1], [], []>} : vector<8x32xf32>, vector<32x128xf32>, vector<8x128xf32> -> vector<8x128xf32>
    %cst_45 = arith.constant dense<0.000000e+00> : vector<8x128xf32>
    %156 = tpu.matmul %135, %13, %cst_45 {dimension_numbers = #tpu.dot_dimension_numbers<[1], [0], [0], [1], [0, 0, 1, 1], [], []>} : vector<8x32xf32>, vector<32x128xf32>, vector<8x128xf32> -> vector<8x128xf32>
    %157 = arith.addf %155, %156 : vector<8x128xf32>
    %158 = vector.broadcast %14 : vector<1x128xf32> to vector<8x128xf32>
    %159 = arith.addf %157, %158 : vector<8x128xf32>
    %cst_46 = arith.constant 5.000000e-01 : f32
    %160 = vector.broadcast %cst_46 : f32 to vector<8x128xf32>
    %161 = arith.mulf %160, %159 : vector<8x128xf32>
    %162 = math.tanh %161 : vector<8x128xf32>
    %cst_47 = arith.constant 5.000000e-01 : f32
    %163 = vector.broadcast %cst_47 : f32 to vector<8x128xf32>
    %164 = arith.mulf %163, %162 : vector<8x128xf32>
    %cst_48 = arith.constant 5.000000e-01 : f32
    %165 = vector.broadcast %cst_48 : f32 to vector<8x128xf32>
    %166 = arith.addf %164, %165 : vector<8x128xf32>
    %167 = vector.extract_strided_slice %166 {offsets = [0, 0], sizes = [8, 32], strides = [1, 1]} : vector<8x128xf32> to vector<8x32xf32>
    %168 = vector.extract_strided_slice %166 {offsets = [0, 32], sizes = [8, 32], strides = [1, 1]} : vector<8x128xf32> to vector<8x32xf32>
    %169 = vector.extract_strided_slice %166 {offsets = [0, 96], sizes = [8, 32], strides = [1, 1]} : vector<8x128xf32> to vector<8x32xf32>
    %170 = vector.extract_strided_slice %162 {offsets = [0, 64], sizes = [8, 32], strides = [1, 1]} : vector<8x128xf32> to vector<8x32xf32>
    %171 = arith.mulf %168, %133 : vector<8x32xf32>
    %172 = arith.mulf %167, %170 : vector<8x32xf32>
    %173 = arith.addf %171, %172 : vector<8x32xf32>
    %174 = math.tanh %173 : vector<8x32xf32>
    %175 = arith.mulf %169, %174 : vector<8x32xf32>
    %176 = vector.extract_strided_slice %10 {offsets = [32, 0], sizes = [8, 128], strides = [1, 1]} : vector<64x128xf32> to vector<8x128xf32>
    %cst_49 = arith.constant dense<0.000000e+00> : vector<8x128xf32>
    %177 = tpu.matmul %154, %11, %cst_49 {dimension_numbers = #tpu.dot_dimension_numbers<[1], [0], [0], [1], [0, 0, 1, 1], [], []>} : vector<8x32xf32>, vector<32x128xf32>, vector<8x128xf32> -> vector<8x128xf32>
    %178 = arith.addf %176, %177 : vector<8x128xf32>
    %cst_50 = arith.constant 5.000000e-01 : f32
    %179 = vector.broadcast %cst_50 : f32 to vector<8x128xf32>
    %180 = arith.mulf %179, %178 : vector<8x128xf32>
    %181 = math.tanh %180 : vector<8x128xf32>
    %cst_51 = arith.constant 5.000000e-01 : f32
    %182 = vector.broadcast %cst_51 : f32 to vector<8x128xf32>
    %183 = arith.mulf %182, %181 : vector<8x128xf32>
    %cst_52 = arith.constant 5.000000e-01 : f32
    %184 = vector.broadcast %cst_52 : f32 to vector<8x128xf32>
    %185 = arith.addf %183, %184 : vector<8x128xf32>
    %186 = vector.extract_strided_slice %185 {offsets = [0, 0], sizes = [8, 32], strides = [1, 1]} : vector<8x128xf32> to vector<8x32xf32>
    %187 = vector.extract_strided_slice %185 {offsets = [0, 32], sizes = [8, 32], strides = [1, 1]} : vector<8x128xf32> to vector<8x32xf32>
    %188 = vector.extract_strided_slice %185 {offsets = [0, 96], sizes = [8, 32], strides = [1, 1]} : vector<8x128xf32> to vector<8x32xf32>
    %189 = vector.extract_strided_slice %181 {offsets = [0, 64], sizes = [8, 32], strides = [1, 1]} : vector<8x128xf32> to vector<8x32xf32>
    %190 = arith.mulf %187, %152 : vector<8x32xf32>
    %191 = arith.mulf %186, %189 : vector<8x32xf32>
    %192 = arith.addf %190, %191 : vector<8x32xf32>
    %193 = math.tanh %192 : vector<8x32xf32>
    %194 = arith.mulf %188, %193 : vector<8x32xf32>
    %cst_53 = arith.constant dense<0.000000e+00> : vector<8x128xf32>
    %195 = tpu.matmul %194, %12, %cst_53 {dimension_numbers = #tpu.dot_dimension_numbers<[1], [0], [0], [1], [0, 0, 1, 1], [], []>} : vector<8x32xf32>, vector<32x128xf32>, vector<8x128xf32> -> vector<8x128xf32>
    %cst_54 = arith.constant dense<0.000000e+00> : vector<8x128xf32>
    %196 = tpu.matmul %175, %13, %cst_54 {dimension_numbers = #tpu.dot_dimension_numbers<[1], [0], [0], [1], [0, 0, 1, 1], [], []>} : vector<8x32xf32>, vector<32x128xf32>, vector<8x128xf32> -> vector<8x128xf32>
    %197 = arith.addf %195, %196 : vector<8x128xf32>
    %198 = vector.broadcast %14 : vector<1x128xf32> to vector<8x128xf32>
    %199 = arith.addf %197, %198 : vector<8x128xf32>
    %cst_55 = arith.constant 5.000000e-01 : f32
    %200 = vector.broadcast %cst_55 : f32 to vector<8x128xf32>
    %201 = arith.mulf %200, %199 : vector<8x128xf32>
    %202 = math.tanh %201 : vector<8x128xf32>
    %cst_56 = arith.constant 5.000000e-01 : f32
    %203 = vector.broadcast %cst_56 : f32 to vector<8x128xf32>
    %204 = arith.mulf %203, %202 : vector<8x128xf32>
    %cst_57 = arith.constant 5.000000e-01 : f32
    %205 = vector.broadcast %cst_57 : f32 to vector<8x128xf32>
    %206 = arith.addf %204, %205 : vector<8x128xf32>
    %207 = vector.extract_strided_slice %206 {offsets = [0, 0], sizes = [8, 32], strides = [1, 1]} : vector<8x128xf32> to vector<8x32xf32>
    %208 = vector.extract_strided_slice %206 {offsets = [0, 32], sizes = [8, 32], strides = [1, 1]} : vector<8x128xf32> to vector<8x32xf32>
    %209 = vector.extract_strided_slice %206 {offsets = [0, 96], sizes = [8, 32], strides = [1, 1]} : vector<8x128xf32> to vector<8x32xf32>
    %210 = vector.extract_strided_slice %202 {offsets = [0, 64], sizes = [8, 32], strides = [1, 1]} : vector<8x128xf32> to vector<8x32xf32>
    %211 = arith.mulf %208, %173 : vector<8x32xf32>
    %212 = arith.mulf %207, %210 : vector<8x32xf32>
    %213 = arith.addf %211, %212 : vector<8x32xf32>
    %214 = math.tanh %213 : vector<8x32xf32>
    %215 = arith.mulf %209, %214 : vector<8x32xf32>
    %216 = vector.extract_strided_slice %10 {offsets = [40, 0], sizes = [8, 128], strides = [1, 1]} : vector<64x128xf32> to vector<8x128xf32>
    %cst_58 = arith.constant dense<0.000000e+00> : vector<8x128xf32>
    %217 = tpu.matmul %194, %11, %cst_58 {dimension_numbers = #tpu.dot_dimension_numbers<[1], [0], [0], [1], [0, 0, 1, 1], [], []>} : vector<8x32xf32>, vector<32x128xf32>, vector<8x128xf32> -> vector<8x128xf32>
    %218 = arith.addf %216, %217 : vector<8x128xf32>
    %cst_59 = arith.constant 5.000000e-01 : f32
    %219 = vector.broadcast %cst_59 : f32 to vector<8x128xf32>
    %220 = arith.mulf %219, %218 : vector<8x128xf32>
    %221 = math.tanh %220 : vector<8x128xf32>
    %cst_60 = arith.constant 5.000000e-01 : f32
    %222 = vector.broadcast %cst_60 : f32 to vector<8x128xf32>
    %223 = arith.mulf %222, %221 : vector<8x128xf32>
    %cst_61 = arith.constant 5.000000e-01 : f32
    %224 = vector.broadcast %cst_61 : f32 to vector<8x128xf32>
    %225 = arith.addf %223, %224 : vector<8x128xf32>
    %226 = vector.extract_strided_slice %225 {offsets = [0, 0], sizes = [8, 32], strides = [1, 1]} : vector<8x128xf32> to vector<8x32xf32>
    %227 = vector.extract_strided_slice %225 {offsets = [0, 32], sizes = [8, 32], strides = [1, 1]} : vector<8x128xf32> to vector<8x32xf32>
    %228 = vector.extract_strided_slice %225 {offsets = [0, 96], sizes = [8, 32], strides = [1, 1]} : vector<8x128xf32> to vector<8x32xf32>
    %229 = vector.extract_strided_slice %221 {offsets = [0, 64], sizes = [8, 32], strides = [1, 1]} : vector<8x128xf32> to vector<8x32xf32>
    %230 = arith.mulf %227, %192 : vector<8x32xf32>
    %231 = arith.mulf %226, %229 : vector<8x32xf32>
    %232 = arith.addf %230, %231 : vector<8x32xf32>
    %233 = math.tanh %232 : vector<8x32xf32>
    %234 = arith.mulf %228, %233 : vector<8x32xf32>
    %cst_62 = arith.constant dense<0.000000e+00> : vector<8x128xf32>
    %235 = tpu.matmul %234, %12, %cst_62 {dimension_numbers = #tpu.dot_dimension_numbers<[1], [0], [0], [1], [0, 0, 1, 1], [], []>} : vector<8x32xf32>, vector<32x128xf32>, vector<8x128xf32> -> vector<8x128xf32>
    %cst_63 = arith.constant dense<0.000000e+00> : vector<8x128xf32>
    %236 = tpu.matmul %215, %13, %cst_63 {dimension_numbers = #tpu.dot_dimension_numbers<[1], [0], [0], [1], [0, 0, 1, 1], [], []>} : vector<8x32xf32>, vector<32x128xf32>, vector<8x128xf32> -> vector<8x128xf32>
    %237 = arith.addf %235, %236 : vector<8x128xf32>
    %238 = vector.broadcast %14 : vector<1x128xf32> to vector<8x128xf32>
    %239 = arith.addf %237, %238 : vector<8x128xf32>
    %cst_64 = arith.constant 5.000000e-01 : f32
    %240 = vector.broadcast %cst_64 : f32 to vector<8x128xf32>
    %241 = arith.mulf %240, %239 : vector<8x128xf32>
    %242 = math.tanh %241 : vector<8x128xf32>
    %cst_65 = arith.constant 5.000000e-01 : f32
    %243 = vector.broadcast %cst_65 : f32 to vector<8x128xf32>
    %244 = arith.mulf %243, %242 : vector<8x128xf32>
    %cst_66 = arith.constant 5.000000e-01 : f32
    %245 = vector.broadcast %cst_66 : f32 to vector<8x128xf32>
    %246 = arith.addf %244, %245 : vector<8x128xf32>
    %247 = vector.extract_strided_slice %246 {offsets = [0, 0], sizes = [8, 32], strides = [1, 1]} : vector<8x128xf32> to vector<8x32xf32>
    %248 = vector.extract_strided_slice %246 {offsets = [0, 32], sizes = [8, 32], strides = [1, 1]} : vector<8x128xf32> to vector<8x32xf32>
    %249 = vector.extract_strided_slice %246 {offsets = [0, 96], sizes = [8, 32], strides = [1, 1]} : vector<8x128xf32> to vector<8x32xf32>
    %250 = vector.extract_strided_slice %242 {offsets = [0, 64], sizes = [8, 32], strides = [1, 1]} : vector<8x128xf32> to vector<8x32xf32>
    %251 = arith.mulf %248, %213 : vector<8x32xf32>
    %252 = arith.mulf %247, %250 : vector<8x32xf32>
    %253 = arith.addf %251, %252 : vector<8x32xf32>
    %254 = math.tanh %253 : vector<8x32xf32>
    %255 = arith.mulf %249, %254 : vector<8x32xf32>
    %256 = vector.extract_strided_slice %10 {offsets = [48, 0], sizes = [8, 128], strides = [1, 1]} : vector<64x128xf32> to vector<8x128xf32>
    %cst_67 = arith.constant dense<0.000000e+00> : vector<8x128xf32>
    %257 = tpu.matmul %234, %11, %cst_67 {dimension_numbers = #tpu.dot_dimension_numbers<[1], [0], [0], [1], [0, 0, 1, 1], [], []>} : vector<8x32xf32>, vector<32x128xf32>, vector<8x128xf32> -> vector<8x128xf32>
    %258 = arith.addf %256, %257 : vector<8x128xf32>
    %cst_68 = arith.constant 5.000000e-01 : f32
    %259 = vector.broadcast %cst_68 : f32 to vector<8x128xf32>
    %260 = arith.mulf %259, %258 : vector<8x128xf32>
    %261 = math.tanh %260 : vector<8x128xf32>
    %cst_69 = arith.constant 5.000000e-01 : f32
    %262 = vector.broadcast %cst_69 : f32 to vector<8x128xf32>
    %263 = arith.mulf %262, %261 : vector<8x128xf32>
    %cst_70 = arith.constant 5.000000e-01 : f32
    %264 = vector.broadcast %cst_70 : f32 to vector<8x128xf32>
    %265 = arith.addf %263, %264 : vector<8x128xf32>
    %266 = vector.extract_strided_slice %265 {offsets = [0, 0], sizes = [8, 32], strides = [1, 1]} : vector<8x128xf32> to vector<8x32xf32>
    %267 = vector.extract_strided_slice %265 {offsets = [0, 32], sizes = [8, 32], strides = [1, 1]} : vector<8x128xf32> to vector<8x32xf32>
    %268 = vector.extract_strided_slice %265 {offsets = [0, 96], sizes = [8, 32], strides = [1, 1]} : vector<8x128xf32> to vector<8x32xf32>
    %269 = vector.extract_strided_slice %261 {offsets = [0, 64], sizes = [8, 32], strides = [1, 1]} : vector<8x128xf32> to vector<8x32xf32>
    %270 = arith.mulf %267, %232 : vector<8x32xf32>
    %271 = arith.mulf %266, %269 : vector<8x32xf32>
    %272 = arith.addf %270, %271 : vector<8x32xf32>
    %273 = math.tanh %272 : vector<8x32xf32>
    %274 = arith.mulf %268, %273 : vector<8x32xf32>
    %cst_71 = arith.constant dense<0.000000e+00> : vector<8x128xf32>
    %275 = tpu.matmul %274, %12, %cst_71 {dimension_numbers = #tpu.dot_dimension_numbers<[1], [0], [0], [1], [0, 0, 1, 1], [], []>} : vector<8x32xf32>, vector<32x128xf32>, vector<8x128xf32> -> vector<8x128xf32>
    %cst_72 = arith.constant dense<0.000000e+00> : vector<8x128xf32>
    %276 = tpu.matmul %255, %13, %cst_72 {dimension_numbers = #tpu.dot_dimension_numbers<[1], [0], [0], [1], [0, 0, 1, 1], [], []>} : vector<8x32xf32>, vector<32x128xf32>, vector<8x128xf32> -> vector<8x128xf32>
    %277 = arith.addf %275, %276 : vector<8x128xf32>
    %278 = vector.broadcast %14 : vector<1x128xf32> to vector<8x128xf32>
    %279 = arith.addf %277, %278 : vector<8x128xf32>
    %cst_73 = arith.constant 5.000000e-01 : f32
    %280 = vector.broadcast %cst_73 : f32 to vector<8x128xf32>
    %281 = arith.mulf %280, %279 : vector<8x128xf32>
    %282 = math.tanh %281 : vector<8x128xf32>
    %cst_74 = arith.constant 5.000000e-01 : f32
    %283 = vector.broadcast %cst_74 : f32 to vector<8x128xf32>
    %284 = arith.mulf %283, %282 : vector<8x128xf32>
    %cst_75 = arith.constant 5.000000e-01 : f32
    %285 = vector.broadcast %cst_75 : f32 to vector<8x128xf32>
    %286 = arith.addf %284, %285 : vector<8x128xf32>
    %287 = vector.extract_strided_slice %286 {offsets = [0, 0], sizes = [8, 32], strides = [1, 1]} : vector<8x128xf32> to vector<8x32xf32>
    %288 = vector.extract_strided_slice %286 {offsets = [0, 32], sizes = [8, 32], strides = [1, 1]} : vector<8x128xf32> to vector<8x32xf32>
    %289 = vector.extract_strided_slice %286 {offsets = [0, 96], sizes = [8, 32], strides = [1, 1]} : vector<8x128xf32> to vector<8x32xf32>
    %290 = vector.extract_strided_slice %282 {offsets = [0, 64], sizes = [8, 32], strides = [1, 1]} : vector<8x128xf32> to vector<8x32xf32>
    %291 = arith.mulf %288, %253 : vector<8x32xf32>
    %292 = arith.mulf %287, %290 : vector<8x32xf32>
    %293 = arith.addf %291, %292 : vector<8x32xf32>
    %294 = math.tanh %293 : vector<8x32xf32>
    %295 = arith.mulf %289, %294 : vector<8x32xf32>
    %296 = vector.extract_strided_slice %10 {offsets = [56, 0], sizes = [8, 128], strides = [1, 1]} : vector<64x128xf32> to vector<8x128xf32>
    %cst_76 = arith.constant dense<0.000000e+00> : vector<8x128xf32>
    %297 = tpu.matmul %274, %11, %cst_76 {dimension_numbers = #tpu.dot_dimension_numbers<[1], [0], [0], [1], [0, 0, 1, 1], [], []>} : vector<8x32xf32>, vector<32x128xf32>, vector<8x128xf32> -> vector<8x128xf32>
    %298 = arith.addf %296, %297 : vector<8x128xf32>
    %cst_77 = arith.constant 5.000000e-01 : f32
    %299 = vector.broadcast %cst_77 : f32 to vector<8x128xf32>
    %300 = arith.mulf %299, %298 : vector<8x128xf32>
    %301 = math.tanh %300 : vector<8x128xf32>
    %cst_78 = arith.constant 5.000000e-01 : f32
    %302 = vector.broadcast %cst_78 : f32 to vector<8x128xf32>
    %303 = arith.mulf %302, %301 : vector<8x128xf32>
    %cst_79 = arith.constant 5.000000e-01 : f32
    %304 = vector.broadcast %cst_79 : f32 to vector<8x128xf32>
    %305 = arith.addf %303, %304 : vector<8x128xf32>
    %306 = vector.extract_strided_slice %305 {offsets = [0, 0], sizes = [8, 32], strides = [1, 1]} : vector<8x128xf32> to vector<8x32xf32>
    %307 = vector.extract_strided_slice %305 {offsets = [0, 32], sizes = [8, 32], strides = [1, 1]} : vector<8x128xf32> to vector<8x32xf32>
    %308 = vector.extract_strided_slice %305 {offsets = [0, 96], sizes = [8, 32], strides = [1, 1]} : vector<8x128xf32> to vector<8x32xf32>
    %309 = vector.extract_strided_slice %301 {offsets = [0, 64], sizes = [8, 32], strides = [1, 1]} : vector<8x128xf32> to vector<8x32xf32>
    %310 = arith.mulf %307, %272 : vector<8x32xf32>
    %311 = arith.mulf %306, %309 : vector<8x32xf32>
    %312 = arith.addf %310, %311 : vector<8x32xf32>
    %313 = math.tanh %312 : vector<8x32xf32>
    %314 = arith.mulf %308, %313 : vector<8x32xf32>
    %cst_80 = arith.constant dense<0.000000e+00> : vector<8x128xf32>
    %315 = tpu.matmul %314, %12, %cst_80 {dimension_numbers = #tpu.dot_dimension_numbers<[1], [0], [0], [1], [0, 0, 1, 1], [], []>} : vector<8x32xf32>, vector<32x128xf32>, vector<8x128xf32> -> vector<8x128xf32>
    %cst_81 = arith.constant dense<0.000000e+00> : vector<8x128xf32>
    %316 = tpu.matmul %295, %13, %cst_81 {dimension_numbers = #tpu.dot_dimension_numbers<[1], [0], [0], [1], [0, 0, 1, 1], [], []>} : vector<8x32xf32>, vector<32x128xf32>, vector<8x128xf32> -> vector<8x128xf32>
    %317 = arith.addf %315, %316 : vector<8x128xf32>
    %318 = vector.broadcast %14 : vector<1x128xf32> to vector<8x128xf32>
    %319 = arith.addf %317, %318 : vector<8x128xf32>
    %cst_82 = arith.constant 5.000000e-01 : f32
    %320 = vector.broadcast %cst_82 : f32 to vector<8x128xf32>
    %321 = arith.mulf %320, %319 : vector<8x128xf32>
    %322 = math.tanh %321 : vector<8x128xf32>
    %cst_83 = arith.constant 5.000000e-01 : f32
    %323 = vector.broadcast %cst_83 : f32 to vector<8x128xf32>
    %324 = arith.mulf %323, %322 : vector<8x128xf32>
    %cst_84 = arith.constant 5.000000e-01 : f32
    %325 = vector.broadcast %cst_84 : f32 to vector<8x128xf32>
    %326 = arith.addf %324, %325 : vector<8x128xf32>
    %327 = vector.extract_strided_slice %326 {offsets = [0, 0], sizes = [8, 32], strides = [1, 1]} : vector<8x128xf32> to vector<8x32xf32>
    %328 = vector.extract_strided_slice %326 {offsets = [0, 32], sizes = [8, 32], strides = [1, 1]} : vector<8x128xf32> to vector<8x32xf32>
    %329 = vector.extract_strided_slice %326 {offsets = [0, 96], sizes = [8, 32], strides = [1, 1]} : vector<8x128xf32> to vector<8x32xf32>
    %330 = vector.extract_strided_slice %322 {offsets = [0, 64], sizes = [8, 32], strides = [1, 1]} : vector<8x128xf32> to vector<8x32xf32>
    %331 = arith.mulf %328, %293 : vector<8x32xf32>
    %332 = arith.mulf %327, %330 : vector<8x32xf32>
    %333 = arith.addf %331, %332 : vector<8x32xf32>
    %334 = math.tanh %333 : vector<8x32xf32>
    %335 = arith.mulf %329, %334 : vector<8x32xf32>
    %c2 = arith.constant 2 : index
    %c0_85 = arith.constant 0 : index
    %336 = vector.load %arg6[%c2, %c0_85] : memref<4x128xf32, #tpu.memory_space<vmem>>, vector<1x32xf32>
    %c3 = arith.constant 3 : index
    %c0_86 = arith.constant 0 : index
    %337 = vector.load %arg6[%c3, %c0_86] : memref<4x128xf32, #tpu.memory_space<vmem>>, vector<1x1xf32>
    %338 = vector.broadcast %336 : vector<1x32xf32> to vector<8x32xf32>
    %339 = arith.mulf %335, %338 : vector<8x32xf32>
    %cst_87 = arith.constant dense<0.000000e+00> : vector<8xf32>
    %340 = vector.multi_reduction <add>, %339, %cst_87 [1] : vector<8x32xf32> to vector<8xf32>
    %341 = vector.shape_cast %340 : vector<8xf32> to vector<8x1xf32>
    %342 = vector.broadcast %337 : vector<1x1xf32> to vector<8x1xf32>
    %343 = arith.addf %341, %342 : vector<8x1xf32>
    %cst_88 = arith.constant 5.000000e-01 : f32
    %344 = vector.broadcast %cst_88 : f32 to vector<8x1xf32>
    %345 = arith.mulf %344, %343 : vector<8x1xf32>
    %346 = math.tanh %345 : vector<8x1xf32>
    %cst_89 = arith.constant 5.000000e-01 : f32
    %347 = vector.broadcast %cst_89 : f32 to vector<8x1xf32>
    %348 = arith.mulf %347, %346 : vector<8x1xf32>
    %cst_90 = arith.constant 5.000000e-01 : f32
    %349 = vector.broadcast %cst_90 : f32 to vector<8x1xf32>
    %350 = arith.addf %348, %349 : vector<8x1xf32>
    %351 = vector.shape_cast %350 : vector<8x1xf32> to vector<8x1xf32>
    %352 = vector.broadcast %351 : vector<8x1xf32> to vector<8x128xf32>
    %c0_91 = arith.constant 0 : index
    %c0_92 = arith.constant 0 : index
    %353 = vector.load %arg7[%c0_91, %c0_92] : memref<8x128xf32, #tpu.memory_space<vmem>>, vector<8x128xf32>
    tpu.vector_store %arg7[%c0_91, %c0_92], %352 {strides = array<i32>} : memref<8x128xf32, #tpu.memory_space<vmem>>, vector<8x128xf32>,
    %354 = tpu.concatenate %314, %335, %312, %333 in 1 : vector<8x32xf32>, vector<8x32xf32>, vector<8x32xf32>, vector<8x32xf32> -> vector<8x128xf32>
    %c0_93 = arith.constant 0 : index
    %c0_94 = arith.constant 0 : index
    %355 = vector.load %arg8[%c0_93, %c0_94] : memref<8x128xf32, #tpu.memory_space<vmem>>, vector<8x128xf32>
    tpu.vector_store %arg8[%c0_93, %c0_94], %354 {strides = array<i32>} : memref<8x128xf32, #tpu.memory_space<vmem>>, vector<8x128xf32>,
    return
  }
  func.func @transform_0(%arg0: i32) -> (i32, i32) {
    %c0_i32 = arith.constant 0 : i32
    %c0_i32_0 = arith.constant 0 : i32
    return %arg0, %c0_i32 : i32, i32
  }
  func.func @transform_1(%arg0: i32) -> (i32, i32) {
    %c0_i32 = arith.constant 0 : i32
    %c0_i32_0 = arith.constant 0 : i32
    %c0_i32_1 = arith.constant 0 : i32
    return %c0_i32, %c0_i32_0 : i32, i32
  }
  func.func @transform_2(%arg0: i32) -> (i32, i32) {
    %c0_i32 = arith.constant 0 : i32
    %c0_i32_0 = arith.constant 0 : i32
    %c0_i32_1 = arith.constant 0 : i32
    return %c0_i32, %c0_i32_0 : i32, i32
  }
  func.func @transform_3(%arg0: i32) -> (i32, i32) {
    %c0_i32 = arith.constant 0 : i32
    %c0_i32_0 = arith.constant 0 : i32
    %c0_i32_1 = arith.constant 0 : i32
    return %c0_i32, %c0_i32_0 : i32, i32
  }
  func.func @transform_4(%arg0: i32) -> (i32, i32) {
    %c0_i32 = arith.constant 0 : i32
    %c0_i32_0 = arith.constant 0 : i32
    %c0_i32_1 = arith.constant 0 : i32
    return %c0_i32, %c0_i32_0 : i32, i32
  }
  func.func @transform_5(%arg0: i32) -> (i32, i32) {
    %c0_i32 = arith.constant 0 : i32
    %c0_i32_0 = arith.constant 0 : i32
    %c0_i32_1 = arith.constant 0 : i32
    return %c0_i32, %c0_i32_0 : i32, i32
  }
  func.func @transform_6(%arg0: i32) -> (i32, i32) {
    %c0_i32 = arith.constant 0 : i32
    %c0_i32_0 = arith.constant 0 : i32
    return %arg0, %c0_i32 : i32, i32
  }
  func.func @transform_7(%arg0: i32) -> (i32, i32) {
    %c0_i32 = arith.constant 0 : i32
    %c0_i32_0 = arith.constant 0 : i32
    return %arg0, %c0_i32 : i32, i32
  }
}

</mosaic_0001>

<llo_original>
// kernel: sentiment_rnn_forward.1
$region0: #{sentiment_rnn_forward.1}
  #allocation0 [shape = 'u32[]', space=smem, size = 0x4, offset = 0x4, fixed_abs, tag = 'smem constant byte address 0x4 - core index']
  #allocation1 [shape = 'u32[144,128]{1,0:T(1,128)}', space=vmem, size = 0x12000, scoped, tag = 'internal scratch']
  %s0 = inlined_call_operand.vmem [shape: s32[128,1], index: 0, kind: input, shape index: {}]
  %s1 = inlined_call_operand.vmem [shape: f32[64,128], index: 1, kind: input, shape index: {}]
  %s2 = inlined_call_operand.vmem [shape: f32[32,128], index: 2, kind: input, shape index: {}]
  %s3 = inlined_call_operand.vmem [shape: f32[32,128], index: 3, kind: input, shape index: {}]
  %s4 = inlined_call_operand.vmem [shape: f32[32,128], index: 4, kind: input, shape index: {}]
  %s5 = inlined_call_operand.vmem [shape: f32[4,128], index: 5, kind: input, shape index: {}]
  %s6 = inlined_call_operand.vmem [shape: f32[16,128], index: 6, kind: output, shape index: {0}]
  %s7 = inlined_call_operand.vmem [shape: f32[16,128], index: 7, kind: output, shape index: {1}]
  %8 = xla_tuple %s6, %s7
  %s9 = sld [smem:[#allocation0]]
  $region65: #{sentiment_rnn_forward.1} parent=0
    _
  %s11 = ssub.s32 1, %s9
  %s12 = scalar_select 0, %s11, %s9
  loop: start=0, step=1, limit=4
  $region2: #{sentiment_rnn_forward.1} parent=0 // loop_pre_header
    _
  $region3: #{sentiment_rnn_forward.1} parent=0 // loop_header
    %s14 = sphi 0, %s18
    %p15 = scmp.ge.s32.totalorder %s14, 4
    %s24 = sphi 0, %s26
    %s27 = sphi 0, %s24
    %s28 = sphi 0, %s27
    %s44 = sphi 0, %s28
    %s48 = sphi 0, %s48
    %s50 = sphi 0, %s48
    %s51 = sphi 0, %s50
    %s65 = sphi 0, %s51
    %s69 = sphi 0, %s69
    %s71 = sphi 0, %s69
    %s72 = sphi 0, %s71
    %s86 = sphi 0, %s72
    %s90 = sphi 0, %s90
    %s92 = sphi 0, %s90
    %s93 = sphi 0, %s92
    %s107 = sphi 0, %s93
    %s111 = sphi 0, %s111
    %s113 = sphi 0, %s111
    %s114 = sphi 0, %s113
    %s128 = sphi 0, %s114
    %s132 = sphi 0, %s132
    %s134 = sphi 0, %s132
    %s135 = sphi 0, %s134
    %s149 = sphi 0, %s135
    %s155 = sphi 0, %s157
    %s158 = sphi 0, %s155
    %s159 = sphi 0, %s158
    %s175 = sphi 0, %s159
    %s181 = sphi 0, %s183
    %s184 = sphi 0, %s181
    %s185 = sphi 0, %s184
    %s201 = sphi 0, %s185
  $region4: #{sentiment_rnn_forward.1} parent=0 // loop_header_branch
    %17 = sbr.rel (%p15) target = $region8
  $region5: #{sentiment_rnn_forward.1} parent=0 // loop_body
    %s19 = ssub.s32 %s14, 1
    %s20 = ssub.s32 %s14, 2
    %s21 = sadd.s32 %s14, 1
    %s22 = ssub.s32 %s14, %s21
    %p23 = scmp.eq.s32.totalorder %s22, 0
    %s25 = sadd.s32 %s24, 1
    %s26 = scalar_select %p23, %s24, %s25
    %p29 = pneg %p23
    %p30 = scmp.eq.s32.totalorder %s14, 1
    %p31 = por %p29, %p30
    %p32 = scmp.ne.s32.totalorder %s24, %s27
    %p33 = scmp.eq.s32.totalorder %s14, 0
    %p34 = por %p32, %p33
    %p35 = scmp.ne.s32.totalorder %s24, %s27
    %p36 = scmp.eq.s32.totalorder %s19, 1
    %p37 = por %p35, %p36
    %p38 = scmp.ne.s32.totalorder %s27, %s28
    %p39 = scmp.eq.s32.totalorder %s19, 0
    %p40 = por %p38, %p39
    %p41 = scmp.ne.s32.totalorder %s27, %s28
    %p42 = scmp.eq.s32.totalorder %s20, 1
    %p43 = por %p41, %p42
    %p45 = scmp.ne.s32.totalorder %s28, %s44
    %p46 = scmp.eq.s32.totalorder %s20, 0
    %p47 = por %p45, %p46
    %s49 = sadd.s32 %s48, 1
    %p52 = scmp.eq.s32.totalorder %s14, 1
    %p53 = scmp.ne.s32.totalorder %s48, %s50
    %p54 = scmp.eq.s32.totalorder %s14, 0
    %p55 = por %p53, %p54
    %p56 = scmp.ne.s32.totalorder %s48, %s50
    %p57 = scmp.eq.s32.totalorder %s19, 1
    %p58 = por %p56, %p57
    %p59 = scmp.ne.s32.totalorder %s50, %s51
    %p60 = scmp.eq.s32.totalorder %s19, 0
    %p61 = por %p59, %p60
    %p62 = scmp.ne.s32.totalorder %s50, %s51
    %p63 = scmp.eq.s32.totalorder %s20, 1
    %p64 = por %p62, %p63
    %p66 = scmp.ne.s32.totalorder %s51, %s65
    %p67 = scmp.eq.s32.totalorder %s20, 0
    %p68 = por %p66, %p67
    %s70 = sadd.s32 %s69, 1
    %p73 = scmp.eq.s32.totalorder %s14, 1
    %p74 = scmp.ne.s32.totalorder %s69, %s71
    %p75 = scmp.eq.s32.totalorder %s14, 0
    %p76 = por %p74, %p75
    %p77 = scmp.ne.s32.totalorder %s69, %s71
    %p78 = scmp.eq.s32.totalorder %s19, 1
    %p79 = por %p77, %p78
    %p80 = scmp.ne.s32.totalorder %s71, %s72
    %p81 = scmp.eq.s32.totalorder %s19, 0
    %p82 = por %p80, %p81
    %p83 = scmp.ne.s32.totalorder %s71, %s72
    %p84 = scmp.eq.s32.totalorder %s20, 1
    %p85 = por %p83, %p84
    %p87 = scmp.ne.s32.totalorder %s72, %s86
    %p88 = scmp.eq.s32.totalorder %s20, 0
    %p89 = por %p87, %p88
    %s91 = sadd.s32 %s90, 1
    %p94 = scmp.eq.s32.totalorder %s14, 1
    %p95 = scmp.ne.s32.totalorder %s90, %s92
    %p96 = scmp.eq.s32.totalorder %s14, 0
    %p97 = por %p95, %p96
    %p98 = scmp.ne.s32.totalorder %s90, %s92
    %p99 = scmp.eq.s32.totalorder %s19, 1
    %p100 = por %p98, %p99
    %p101 = scmp.ne.s32.totalorder %s92, %s93
    %p102 = scmp.eq.s32.totalorder %s19, 0
    %p103 = por %p101, %p102
    %p104 = scmp.ne.s32.totalorder %s92, %s93
    %p105 = scmp.eq.s32.totalorder %s20, 1
    %p106 = por %p104, %p105
    %p108 = scmp.ne.s32.totalorder %s93, %s107
    %p109 = scmp.eq.s32.totalorder %s20, 0
    %p110 = por %p108, %p109
    %s112 = sadd.s32 %s111, 1
    %p115 = scmp.eq.s32.totalorder %s14, 1
    %p116 = scmp.ne.s32.totalorder %s111, %s113
    %p117 = scmp.eq.s32.totalorder %s14, 0
    %p118 = por %p116, %p117
    %p119 = scmp.ne.s32.totalorder %s111, %s113
    %p120 = scmp.eq.s32.totalorder %s19, 1
    %p121 = por %p119, %p120
    %p122 = scmp.ne.s32.totalorder %s113, %s114
    %p123 = scmp.eq.s32.totalorder %s19, 0
    %p124 = por %p122, %p123
    %p125 = scmp.ne.s32.totalorder %s113, %s114
    %p126 = scmp.eq.s32.totalorder %s20, 1
    %p127 = por %p125, %p126
    %p129 = scmp.ne.s32.totalorder %s114, %s128
    %p130 = scmp.eq.s32.totalorder %s20, 0
    %p131 = por %p129, %p130
    %s133 = sadd.s32 %s132, 1
    %p136 = scmp.eq.s32.totalorder %s14, 1
    %p137 = scmp.ne.s32.totalorder %s132, %s134
    %p138 = scmp.eq.s32.totalorder %s14, 0
    %p139 = por %p137, %p138
    %p140 = scmp.ne.s32.totalorder %s132, %s134
    %p141 = scmp.eq.s32.totalorder %s19, 1
    %p142 = por %p140, %p141
    %p143 = scmp.ne.s32.totalorder %s134, %s135
    %p144 = scmp.eq.s32.totalorder %s19, 0
    %p145 = por %p143, %p144
    %p146 = scmp.ne.s32.totalorder %s134, %s135
    %p147 = scmp.eq.s32.totalorder %s20, 1
    %p148 = por %p146, %p147
    %p150 = scmp.ne.s32.totalorder %s135, %s149
    %p151 = scmp.eq.s32.totalorder %s20, 0
    %p152 = por %p150, %p151
    %s153 = ssub.s32 %s14, %s21
    %p154 = scmp.eq.s32.totalorder %s153, 0
    %s156 = sadd.s32 %s155, 1
    %s157 = scalar_select %p154, %s155, %s156
    %p160 = pneg %p154
    %p161 = scmp.eq.s32.totalorder %s14, 1
    %p162 = por %p160, %p161
    %p163 = scmp.ne.s32.totalorder %s155, %s158
    %p164 = scmp.eq.s32.totalorder %s14, 0
    %p165 = por %p163, %p164
    %p166 = scmp.ne.s32.totalorder %s155, %s158
    %p167 = scmp.eq.s32.totalorder %s19, 1
    %p168 = por %p166, %p167
    %p169 = scmp.ne.s32.totalorder %s158, %s159
    %p170 = scmp.eq.s32.totalorder %s19, 0
    %p171 = por %p169, %p170
    %p172 = scmp.ne.s32.totalorder %s158, %s159
    %p173 = scmp.eq.s32.totalorder %s20, 1
    %p174 = por %p172, %p173
    %p176 = scmp.ne.s32.totalorder %s159, %s175
    %p177 = scmp.eq.s32.totalorder %s20, 0
    %p178 = por %p176, %p177
    %s179 = ssub.s32 %s14, %s21
    %p180 = scmp.eq.s32.totalorder %s179, 0
    %s182 = sadd.s32 %s181, 1
    %s183 = scalar_select %p180, %s181, %s182
    %p186 = pneg %p180
    %p187 = scmp.eq.s32.totalorder %s14, 1
    %p188 = por %p186, %p187
    %p189 = scmp.ne.s32.totalorder %s181, %s184
    %p190 = scmp.eq.s32.totalorder %s14, 0
    %p191 = por %p189, %p190
    %p192 = scmp.ne.s32.totalorder %s181, %s184
    %p193 = scmp.eq.s32.totalorder %s19, 1
    %p194 = por %p192, %p193
    %p195 = scmp.ne.s32.totalorder %s184, %s185
    %p196 = scmp.eq.s32.totalorder %s19, 0
    %p197 = por %p195, %p196
    %p198 = scmp.ne.s32.totalorder %s184, %s185
    %p199 = scmp.eq.s32.totalorder %s20, 1
    %p200 = por %p198, %p199
    %p202 = scmp.ne.s32.totalorder %s185, %s201
    %p203 = scmp.eq.s32.totalorder %s20, 0
    %p204 = por %p202, %p203
    %p205 = scmp.le.s32.totalorder 1, %s14
    %p206 = scmp.lt.s32.totalorder %s14, 3
    %p207 = pnand %p205, %p206
    %p208 = pneg %p207
    // Predicated region
    $region9: #{sentiment_rnn_forward.1} parent=5 // pred_check
      _
    $region10: #{sentiment_rnn_forward.1} parent=5 // pred_check_branch
      %210 = sbr.rel (%p207) target = $region12
    $region11: #{sentiment_rnn_forward.1} parent=5 // pred_region
      %s211 = ssub.s32 %s14, 1
      // Predicated region
      $region13: #{sentiment_rnn_forward.1} parent=11 // pred_check
        %p212 = pneg %p61
      $region14: #{sentiment_rnn_forward.1} parent=11 // pred_check_branch
        %214 = sbr.rel (%p212) target = $region16
      $region15: #{sentiment_rnn_forward.1} parent=11 // pred_region
        _
      $region16: #{sentiment_rnn_forward.1} parent=11 // pred_fallthru
        _
      // Predicated region
      $region17: #{sentiment_rnn_forward.1} parent=11 // pred_check
        %p215 = pneg %p82
      $region18: #{sentiment_rnn_forward.1} parent=11 // pred_check_branch
        %217 = sbr.rel (%p215) target = $region20
      $region19: #{sentiment_rnn_forward.1} parent=11 // pred_region
        _
      $region20: #{sentiment_rnn_forward.1} parent=11 // pred_fallthru
        _
      // Predicated region
      $region21: #{sentiment_rnn_forward.1} parent=11 // pred_check
        %p218 = pneg %p103
      $region22: #{sentiment_rnn_forward.1} parent=11 // pred_check_branch
        %220 = sbr.rel (%p218) target = $region24
      $region23: #{sentiment_rnn_forward.1} parent=11 // pred_region
        _
      $region24: #{sentiment_rnn_forward.1} parent=11 // pred_fallthru
        _
      // Predicated region
      $region25: #{sentiment_rnn_forward.1} parent=11 // pred_check
        %p221 = pneg %p124
      $region26: #{sentiment_rnn_forward.1} parent=11 // pred_check_branch
        %223 = sbr.rel (%p221) target = $region28
      $region27: #{sentiment_rnn_forward.1} parent=11 // pred_region
        _
      $region28: #{sentiment_rnn_forward.1} parent=11 // pred_fallthru
        _
      // Predicated region
      $region29: #{sentiment_rnn_forward.1} parent=11 // pred_check
        %p224 = pneg %p145
      $region30: #{sentiment_rnn_forward.1} parent=11 // pred_check_branch
        %226 = sbr.rel (%p224) target = $region32
      $region31: #{sentiment_rnn_forward.1} parent=11 // pred_region
        _
      $region32: #{sentiment_rnn_forward.1} parent=11 // pred_fallthru
        _
    $region12: #{sentiment_rnn_forward.1} parent=5 // pred_fallthru
      _
    %p227 = scmp.lt.s32.totalorder %s14, 2
    // Predicated region
    $region33: #{sentiment_rnn_forward.1} parent=5 // pred_check
      %p228 = pneg %p227
    $region34: #{sentiment_rnn_forward.1} parent=5 // pred_check_branch
      %230 = sbr.rel (%p228) target = $region36
    $region35: #{sentiment_rnn_forward.1} parent=5 // pred_region
      // Predicated region
      $region37: #{sentiment_rnn_forward.1} parent=35 // pred_check
        %p231 = pneg %p34
      $region38: #{sentiment_rnn_forward.1} parent=35 // pred_check_branch
        %233 = sbr.rel (%p231) target = $region40
      $region39: #{sentiment_rnn_forward.1} parent=35 // pred_region
        %s234 = smul.u32 8, %s14
        %p235 = scmp.lt.s32.totalorder %s234, 15
        %s236 = scalar_select %p235, %s234, 15
        %s237 = smul.addr %s236, 8
        %s238 = scalar_lea.vmem %s0, %s237
        %s239 = smul.u32 8, %s14
      $region40: #{sentiment_rnn_forward.1} parent=35 // pred_fallthru
        _
    $region36: #{sentiment_rnn_forward.1} parent=5 // pred_fallthru
      _
    %p240 = scmp.le.s32.totalorder 1, %s14
    %p241 = scmp.lt.s32.totalorder %s14, 3
    %p242 = pnand %p240, %p241
    %p243 = pneg %p242
    // Predicated region
    $region41: #{sentiment_rnn_forward.1} parent=5 // pred_check
      _
    $region42: #{sentiment_rnn_forward.1} parent=5 // pred_check_branch
      %245 = sbr.rel (%p242) target = $region44
    $region43: #{sentiment_rnn_forward.1} parent=5 // pred_region
      %s246 = ssub.s32 %s14, 1
      %s247 = smul.u32 8, %s19
      %p248 = scmp.lt.s32.totalorder %s247, 15
      %s249 = scalar_select %p248, %s247, 15
      %s250 = smul.addr %s249, 8
      %s251 = scalar_lea.vmem %s0, %s250
      %p252 = pneg %p40
      %p253 = pneg %p37
      %p254 = pneg %p61
      %p255 = pneg %p58
      %p256 = pneg %p82
      %p257 = pneg %p79
      %p258 = pneg %p103
      %p259 = pneg %p100
      %p260 = pneg %p124
      %p261 = pneg %p121
      %p262 = pneg %p145
      %p263 = pneg %p142
      %p264 = pneg %p171
      %p265 = pneg %p168
      %p266 = scmp.lt.s32.totalorder %s19, 1
      %s267 = scalar_select %p266, %s19, 1
      %s268 = smul.addr %s267, 8
      %s269 = scalar_lea.vmem %s6, %s268
      %p270 = pneg %p197
      %p271 = pneg %p194
      %p272 = scmp.lt.s32.totalorder %s19, 1
      %s273 = scalar_select %p272, %s19, 1
      %s274 = smul.addr %s273, 8
      %s275 = scalar_lea.vmem %s7, %s274
      %s276 = smul.u32 8, %s19
      %p277 = scmp.lt.s32.totalorder %s276, 15
      %s278 = scalar_select %p277, %s276, 15
      %s279 = smul.addr %s278, 8
      %s280 = scalar_lea.vmem %s0, %s279
      %s281 = smul.u32 8, %s19
      %p282 = scmp.lt.s32.totalorder %s19, 1
      %s283 = scalar_select %p282, %s19, 1
      %s284 = smul.addr %s283, 8
      %s285 = scalar_lea.vmem %s6, %s284
      %p286 = scmp.lt.s32.totalorder %s19, 1
      %s287 = scalar_select %p286, %s19, 1
      %s288 = smul.addr %s287, 8
      %s289 = scalar_lea.vmem %s7, %s288
      %v290 = vld [vmem:[%s280] sm:$0xff]
      %v291 = vld [vmem:[%s280 + $0x8] sm:$0xff]
      %v292 = vld [vmem:[%s280 + $0x10] sm:$0xff]
      %v293 = vld [vmem:[%s280 + $0x18] sm:$0xff]
      %v294 = vld [vmem:[%s280 + $0x20] sm:$0xff]
      %v295 = vld [vmem:[%s280 + $0x28] sm:$0xff]
      %v296 = vld [vmem:[%s280 + $0x30] sm:$0xff]
      %v297 = vld [vmem:[%s280 + $0x38] sm:$0xff]
      %v298 = vlaneseq
      %v299 = vand.u32 %v298, 127
      %300 = vset.pattern.permute.xlu0 0
      %301 = vperm.xlu0 %300, %v290
      %v302 = vpop.permute.xlu0 %301
      %303 = vset.pattern.permute.xlu0 0
      %304 = vperm.xlu0 %303, %v291
      %v305 = vpop.permute.xlu0 %304
      %306 = vset.pattern.permute.xlu0 0
      %307 = vperm.xlu0 %306, %v292
      %v308 = vpop.permute.xlu0 %307
      %309 = vset.pattern.permute.xlu0 0
      %310 = vperm.xlu0 %309, %v293
      %v311 = vpop.permute.xlu0 %310
      %312 = vset.pattern.permute.xlu0 0
      %313 = vperm.xlu0 %312, %v294
      %v314 = vpop.permute.xlu0 %313
      %315 = vset.pattern.permute.xlu0 0
      %316 = vperm.xlu0 %315, %v295
      %v317 = vpop.permute.xlu0 %316
      %318 = vset.pattern.permute.xlu0 0
      %319 = vperm.xlu0 %318, %v296
      %v320 = vpop.permute.xlu0 %319
      %321 = vset.pattern.permute.xlu0 0
      %322 = vperm.xlu0 %321, %v297
      %v323 = vpop.permute.xlu0 %322
      %vm324 = vcmp.eq.s32.totalorder %v302, %v299
      %vm325 = vcmp.eq.s32.totalorder %v305, %v299
      %vm326 = vcmp.eq.s32.totalorder %v308, %v299
      %vm327 = vcmp.eq.s32.totalorder %v311, %v299
      %vm328 = vcmp.eq.s32.totalorder %v314, %v299
      %vm329 = vcmp.eq.s32.totalorder %v317, %v299
      %vm330 = vcmp.eq.s32.totalorder %v320, %v299
      %vm331 = vcmp.eq.s32.totalorder %v323, %v299
      %v332 = vsel %vm324, 1, 0
      %v333 = vsel %vm325, 1, 0
      %v334 = vsel %vm326, 1, 0
      %v335 = vsel %vm327, 1, 0
      %v336 = vsel %vm328, 1, 0
      %v337 = vsel %vm329, 1, 0
      %v338 = vsel %vm330, 1, 0
      %v339 = vsel %vm331, 1, 0
      %v340 = vcvt.s32.f32 %v332
      %v341 = vcvt.s32.f32 %v333
      %v342 = vcvt.s32.f32 %v334
      %v343 = vcvt.s32.f32 %v335
      %v344 = vcvt.s32.f32 %v336
      %v345 = vcvt.s32.f32 %v337
      %v346 = vcvt.s32.f32 %v338
      %v347 = vcvt.s32.f32 %v339
      %v348 = vld [vmem:[%s5] sm:$0x1]
      %v349 = vld [vmem:[%s1] sm:$0xff]
      %v350 = vld [vmem:[%s1 + $0x8] sm:$0xff]
      %v351 = vld [vmem:[%s1 + $0x10] sm:$0xff]
      %v352 = vld [vmem:[%s1 + $0x18] sm:$0xff]
      %v353 = vld [vmem:[%s1 + $0x20] sm:$0xff]
      %v354 = vld [vmem:[%s1 + $0x28] sm:$0xff]
      %v355 = vld [vmem:[%s1 + $0x30] sm:$0xff]
      %v356 = vld [vmem:[%s1 + $0x38] sm:$0xff]
      %v357 = vlaneseq
      %v358 = vshrl.u32 %v357, 7
      %v359 = vsub.s32 0, %v358
      %v360 = vrot.slane %v348, %v359
      %vm361 = vcmask 523264
      %v363 = vsel %vm361, %v340, 0
      %v366 = vsel %vm361, %v341, 0
      %v369 = vsel %vm361, %v342, 0
      %v372 = vsel %vm361, %v343, 0
      %v375 = vsel %vm361, %v344, 0
      %v378 = vsel %vm361, %v345, 0
      %v381 = vsel %vm361, %v346, 0
      %v384 = vsel %vm361, %v347, 0
      %386 = vmatprep.subr.mxu0 0.0
      %387 = vmatpush1.msra.mxu0 %v349
      %388 = vmatprep.subr.mxu0 0.0
      %389 = vmatpush1.msra.mxu0 %v350
      %390 = vmatprep.subr.mxu0 0.0
      %391 = vmatpush1.msra.mxu0 %v351
      %392 = vmatprep.subr.mxu0 0.0
      %393 = vmatpush1.msra.mxu0 %v352
      %394 = vmatprep.subr.mxu0 0.0
      %395 = vmatpush1.msra.mxu0 %v353
      %396 = vmatprep.subr.mxu0 0.0
      %397 = vmatpush1.msra.mxu0 %v354
      %398 = vmatprep.subr.mxu0 0.0
      %399 = vmatpush1.msra.mxu0 %v355
      %400 = vmatprep.subr.mxu0 0.0
      %401 = vmatpush1.msra.mxu0 %v356
      %402 = vmatprep.subr.mxu0 0.0
      %403 = vmatpush1.msra.mxu0 0.0
      %404 = vmatprep.subr.mxu0 0.0
      %405 = vmatpush1.msra.mxu0 0.0
      %406 = vmatprep.subr.mxu0 0.0
      %407 = vmatpush1.msra.mxu0 0.0
      %408 = vmatprep.subr.mxu0 0.0
      %409 = vmatpush1.msra.mxu0 0.0
      %410 = vmatprep.subr.mxu0 0.0
      %411 = vmatpush1.msra.mxu0 0.0
      %412 = vmatprep.subr.mxu0 0.0
      %413 = vmatpush1.msra.mxu0 0.0
      %414 = vmatprep.subr.mxu0 0.0
      %415 = vmatpush1.msra.mxu0 0.0
      %416 = vmatprep.subr.mxu0 0.0
      %417 = vmatpush1.msra.mxu0 0.0
      %418 = vmatprep.subr.mxu0 0.0
      %419 = vmatpush1.msra.mxu0 0.0
      %420 = vmatprep.subr.mxu0 0.0
      %421 = vmatpush1.msra.mxu0 0.0
      %422 = vmatprep.subr.mxu0 0.0
      %423 = vmatpush1.msra.mxu0 0.0
      %424 = vmatprep.subr.mxu0 0.0
      %425 = vmatpush1.msra.mxu0 0.0
      %426 = vmatprep.subr.mxu0 0.0
      %427 = vmatpush1.msra.mxu0 0.0
      %428 = vmatprep.subr.mxu0 0.0
      %429 = vmatpush1.msra.mxu0 0.0
      %430 = vmatprep.subr.mxu0 0.0
      %431 = vmatpush1.msra.mxu0 0.0
      %432 = vmatprep.subr.mxu0 0.0
      %433 = vmatpush1.msra.mxu0 0.0
      %434 = vmatprep.subr.mxu0 0.0
      %435 = vmatpush1.msra.mxu0 0.0
      %436 = vmatprep.subr.mxu0 0.0
      %437 = vmatpush1.msra.mxu0 0.0
      %438 = vmatprep.subr.mxu0 0.0
      %439 = vmatpush1.msra.mxu0 0.0
      %440 = vmatprep.subr.mxu0 0.0
      %441 = vmatpush1.msra.mxu0 0.0
      %442 = vmatprep.subr.mxu0 0.0
      %443 = vmatpush1.msra.mxu0 0.0
      %444 = vmatprep.subr.mxu0 0.0
      %445 = vmatpush1.msra.mxu0 0.0
      %446 = vmatprep.subr.mxu0 0.0
      %447 = vmatpush1.msra.mxu0 0.0
      %448 = vmatprep.subr.mxu0 0.0
      %449 = vmatpush1.msra.mxu0 0.0
      %450 = vmatprep.mubr.f32.mxu0 0.0
      %451 = vmatmul.mubr.f32.gmra.mrb[0].mxu0 %v363
      %v452 = vpop.f32.mrb[0].mxu0
      %v453 = vadd.f32 %v360, %v452
      %v454 = vpop.f32.mrb[0].mxu0
      %455 = vmatprep.mubr.f32.mxu0 0.0
      %456 = vmatmul.mubr.f32.gmra.mrb[0].mxu0 %v366
      %v457 = vpop.f32.mrb[0].mxu0
      %v458 = vadd.f32 %v360, %v457
      %v459 = vpop.f32.mrb[0].mxu0
      %460 = vmatprep.mubr.f32.mxu0 0.0
      %461 = vmatmul.mubr.f32.gmra.mrb[0].mxu0 %v369
      %v462 = vpop.f32.mrb[0].mxu0
      %v463 = vadd.f32 %v360, %v462
      %v464 = vpop.f32.mrb[0].mxu0
      %465 = vmatprep.mubr.f32.mxu0 0.0
      %466 = vmatmul.mubr.f32.gmra.mrb[0].mxu0 %v372
      %v467 = vpop.f32.mrb[0].mxu0
      %v468 = vadd.f32 %v360, %v467
      %v469 = vpop.f32.mrb[0].mxu0
      %470 = vmatprep.mubr.f32.mxu0 0.0
      %471 = vmatmul.mubr.f32.gmra.mrb[0].mxu0 %v375
      %v472 = vpop.f32.mrb[0].mxu0
      %v473 = vadd.f32 %v360, %v472
      %v474 = vpop.f32.mrb[0].mxu0
      %475 = vmatprep.mubr.f32.mxu0 0.0
      %476 = vmatmul.mubr.f32.gmra.mrb[0].mxu0 %v378
      %v477 = vpop.f32.mrb[0].mxu0
      %v478 = vadd.f32 %v360, %v477
      %v479 = vpop.f32.mrb[0].mxu0
      %480 = vmatprep.mubr.f32.mxu0 0.0
      %481 = vmatmul.mubr.f32.gmra.mrb[0].mxu0 %v381
      %v482 = vpop.f32.mrb[0].mxu0
      %v483 = vadd.f32 %v360, %v482
      %v484 = vpop.f32.mrb[0].mxu0
      %485 = vmatprep.mubr.f32.mxu0 0.0
      %486 = vmatmul.mubr.f32.gmra.mrb[0].mxu0 %v384
      %v487 = vpop.f32.mrb[0].mxu0
      %v488 = vadd.f32 %v360, %v487
      %v489 = vpop.f32.mrb[0].mxu0
      %490 = vdwg.mxu0
      %v491 = vld [vmem:[%s2] sm:$0xff]
      %v492 = vld [vmem:[%s2 + $0x8] sm:$0xff]
      %v493 = vld [vmem:[%s2 + $0x10] sm:$0xff]
      %v494 = vld [vmem:[%s2 + $0x18] sm:$0xff]
      %v495 = vld [vmem:[%s3] sm:$0xff]
      %v496 = vld [vmem:[%s3 + $0x8] sm:$0xff]
      %v497 = vld [vmem:[%s3 + $0x10] sm:$0xff]
      %v498 = vld [vmem:[%s3 + $0x18] sm:$0xff]
      %v499 = vld [vmem:[%s4] sm:$0xff]
      %v500 = vld [vmem:[%s4 + $0x8] sm:$0xff]
      %v501 = vld [vmem:[%s4 + $0x10] sm:$0xff]
      %v502 = vld [vmem:[%s4 + $0x18] sm:$0xff]
      %v503 = vld [vmem:[%s5 + $0x1] sm:$0x1]
      %vm504 = vcmask 261120
      %v506 = vsel %vm504, 0.0, 0
      %508 = vmatprep.subr.mxu0 0.0
      %509 = vmatpush1.msra.mxu0 %v491
      %510 = vmatprep.subr.mxu0 0.0
      %511 = vmatpush1.msra.mxu0 %v492
      %512 = vmatprep.subr.mxu0 0.0
      %513 = vmatpush1.msra.mxu0 %v493
      %514 = vmatprep.subr.mxu0 0.0
      %515 = vmatpush1.msra.mxu0 %v494
      %516 = vmatprep.subr.mxu0 0.0
      %517 = vmatpush1.msra.mxu0 0.0
      %518 = vmatprep.subr.mxu0 0.0
      %519 = vmatpush1.msra.mxu0 0.0
      %520 = vmatprep.subr.mxu0 0.0
      %521 = vmatpush1.msra.mxu0 0.0
      %522 = vmatprep.subr.mxu0 0.0
      %523 = vmatpush1.msra.mxu0 0.0
      %524 = vmatprep.subr.mxu0 0.0
      %525 = vmatpush1.msra.mxu0 0.0
      %526 = vmatprep.subr.mxu0 0.0
      %527 = vmatpush1.msra.mxu0 0.0
      %528 = vmatprep.subr.mxu0 0.0
      %529 = vmatpush1.msra.mxu0 0.0
      %530 = vmatprep.subr.mxu0 0.0
      %531 = vmatpush1.msra.mxu0 0.0
      %532 = vmatprep.subr.mxu0 0.0
      %533 = vmatpush1.msra.mxu0 0.0
      %534 = vmatprep.subr.mxu0 0.0
      %535 = vmatpush1.msra.mxu0 0.0
      %536 = vmatprep.subr.mxu0 0.0
      %537 = vmatpush1.msra.mxu0 0.0
      %538 = vmatprep.subr.mxu0 0.0
      %539 = vmatpush1.msra.mxu0 0.0
      %540 = vmatprep.subr.mxu0 0.0
      %541 = vmatpush1.msra.mxu0 0.0
      %542 = vmatprep.subr.mxu0 0.0
      %543 = vmatpush1.msra.mxu0 0.0
      %544 = vmatprep.subr.mxu0 0.0
      %545 = vmatpush1.msra.mxu0 0.0
      %546 = vmatprep.subr.mxu0 0.0
      %547 = vmatpush1.msra.mxu0 0.0
      %548 = vmatprep.subr.mxu0 0.0
      %549 = vmatpush1.msra.mxu0 0.0
      %550 = vmatprep.subr.mxu0 0.0
      %551 = vmatpush1.msra.mxu0 0.0
      %552 = vmatprep.subr.mxu0 0.0
      %553 = vmatpush1.msra.mxu0 0.0
      %554 = vmatprep.subr.mxu0 0.0
      %555 = vmatpush1.msra.mxu0 0.0
      %556 = vmatprep.subr.mxu0 0.0
      %557 = vmatpush1.msra.mxu0 0.0
      %558 = vmatprep.subr.mxu0 0.0
      %559 = vmatpush1.msra.mxu0 0.0
      %560 = vmatprep.subr.mxu0 0.0
      %561 = vmatpush1.msra.mxu0 0.0
      %562 = vmatprep.subr.mxu0 0.0
      %563 = vmatpush1.msra.mxu0 0.0
      %564 = vmatprep.subr.mxu0 0.0
      %565 = vmatpush1.msra.mxu0 0.0
      %566 = vmatprep.subr.mxu0 0.0
      %567 = vmatpush1.msra.mxu0 0.0
      %568 = vmatprep.subr.mxu0 0.0
      %569 = vmatpush1.msra.mxu0 0.0
      %570 = vmatprep.subr.mxu0 0.0
      %571 = vmatpush1.msra.mxu0 0.0
      %572 = vmatprep.mubr.f32.mxu0 0.0
      %573 = vmatmul.mubr.f32.gmra.mrb[0].mxu0 %v506
      %v574 = vpop.f32.mrb[0].mxu0
      %v575 = vadd.f32 0.0, %v574
      %v576 = vpop.f32.mrb[0].mxu0
      %577 = vdwg.mxu0
      %v578 = vadd.f32 %v453, %v575
      %v579 = vmul.f32 %v578, 0.5
      %v580 = vtanh.pop %v579
      %v581 = vmul.f32 %v580, 0.5
      %v582 = vadd.f32 %v581, 0.5
      %v583 = vmul.f32 %v582, 0.0
      %585 = vrot.lane.b32.xlu0 %v580, 64
      %v586 = vpop.permute.xlu0 %585
      %v588 = vmul.f32 %v582, %v586
      %590 = vrot.lane.b32.xlu0 %v588, 32
      %v591 = vpop.permute.xlu0 %590
      %v593 = vadd.f32 %v583, %v591
      %v594 = vtanh.pop %v593
      %596 = vrot.lane.b32.xlu0 %v594, 64
      %v597 = vpop.permute.xlu0 %596
      %v599 = vmul.f32 %v582, %v597
      %600 = vmatprep.subr.mxu0 0.0
      %601 = vmatpush1.msra.mxu0 %v499
      %602 = vmatprep.subr.mxu0 0.0
      %603 = vmatpush1.msra.mxu0 %v500
      %604 = vmatprep.subr.mxu0 0.0
      %605 = vmatpush1.msra.mxu0 %v501
      %606 = vmatprep.subr.mxu0 0.0
      %607 = vmatpush1.msra.mxu0 %v502
      %608 = vmatprep.subr.mxu0 0.0
      %609 = vmatpush1.msra.mxu0 0.0
      %610 = vmatprep.subr.mxu0 0.0
      %611 = vmatpush1.msra.mxu0 0.0
      %612 = vmatprep.subr.mxu0 0.0
      %613 = vmatpush1.msra.mxu0 0.0
      %614 = vmatprep.subr.mxu0 0.0
      %615 = vmatpush1.msra.mxu0 0.0
      %616 = vmatprep.subr.mxu0 0.0
      %617 = vmatpush1.msra.mxu0 0.0
      %618 = vmatprep.subr.mxu0 0.0
      %619 = vmatpush1.msra.mxu0 0.0
      %620 = vmatprep.subr.mxu0 0.0
      %621 = vmatpush1.msra.mxu0 0.0
      %622 = vmatprep.subr.mxu0 0.0
      %623 = vmatpush1.msra.mxu0 0.0
      %624 = vmatprep.subr.mxu0 0.0
      %625 = vmatpush1.msra.mxu0 0.0
      %626 = vmatprep.subr.mxu0 0.0
      %627 = vmatpush1.msra.mxu0 0.0
      %628 = vmatprep.subr.mxu0 0.0
      %629 = vmatpush1.msra.mxu0 0.0
      %630 = vmatprep.subr.mxu0 0.0
      %631 = vmatpush1.msra.mxu0 0.0
      %632 = vmatprep.subr.mxu0 0.0
      %633 = vmatpush1.msra.mxu0 0.0
      %634 = vmatprep.subr.mxu0 0.0
      %635 = vmatpush1.msra.mxu0 0.0
      %636 = vmatprep.subr.mxu0 0.0
      %637 = vmatpush1.msra.mxu0 0.0
      %638 = vmatprep.subr.mxu0 0.0
      %639 = vmatpush1.msra.mxu0 0.0
      %640 = vmatprep.subr.mxu0 0.0
      %641 = vmatpush1.msra.mxu0 0.0
      %642 = vmatprep.subr.mxu0 0.0
      %643 = vmatpush1.msra.mxu0 0.0
      %644 = vmatprep.subr.mxu0 0.0
      %645 = vmatpush1.msra.mxu0 0.0
      %646 = vmatprep.subr.mxu0 0.0
      %647 = vmatpush1.msra.mxu0 0.0
      %648 = vmatprep.subr.mxu0 0.0
      %649 = vmatpush1.msra.mxu0 0.0
      %650 = vmatprep.subr.mxu0 0.0
      %651 = vmatpush1.msra.mxu0 0.0
      %652 = vmatprep.subr.mxu0 0.0
      %653 = vmatpush1.msra.mxu0 0.0
      %654 = vmatprep.subr.mxu0 0.0
      %655 = vmatpush1.msra.mxu0 0.0
      %656 = vmatprep.subr.mxu0 0.0
      %657 = vmatpush1.msra.mxu0 0.0
      %658 = vmatprep.subr.mxu0 0.0
      %659 = vmatpush1.msra.mxu0 0.0
      %660 = vmatprep.subr.mxu0 0.0
      %661 = vmatpush1.msra.mxu0 0.0
      %662 = vmatprep.subr.mxu0 0.0
      %663 = vmatpush1.msra.mxu0 0.0
      %664 = vmatprep.mubr.f32.mxu0 0.0
      %665 = vmatmul.mubr.f32.gmra.mrb[0].mxu0 %v506
      %v666 = vpop.f32.mrb[0].mxu0
      %v667 = vadd.f32 0.0, %v666
      %v668 = vpop.f32.mrb[0].mxu0
      %669 = vdwg.mxu0
      %671 = vrot.lane.b32.xlu0 %v599, 32
      %v672 = vpop.permute.xlu0 %671
      %v673 = vsel %vm504, %v672, 0
      %675 = vmatprep.subr.mxu0 0.0
      %676 = vmatpush1.msra.mxu0 %v495
      %677 = vmatprep.subr.mxu0 0.0
      %678 = vmatpush1.msra.mxu0 %v496
      %679 = vmatprep.subr.mxu0 0.0
      %680 = vmatpush1.msra.mxu0 %v497
      %681 = vmatprep.subr.mxu0 0.0
      %682 = vmatpush1.msra.mxu0 %v498
      %683 = vmatprep.subr.mxu0 0.0
      %684 = vmatpush1.msra.mxu0 0.0
      %685 = vmatprep.subr.mxu0 0.0
      %686 = vmatpush1.msra.mxu0 0.0
      %687 = vmatprep.subr.mxu0 0.0
      %688 = vmatpush1.msra.mxu0 0.0
      %689 = vmatprep.subr.mxu0 0.0
      %690 = vmatpush1.msra.mxu0 0.0
      %691 = vmatprep.subr.mxu0 0.0
      %692 = vmatpush1.msra.mxu0 0.0
      %693 = vmatprep.subr.mxu0 0.0
      %694 = vmatpush1.msra.mxu0 0.0
      %695 = vmatprep.subr.mxu0 0.0
      %696 = vmatpush1.msra.mxu0 0.0
      %697 = vmatprep.subr.mxu0 0.0
      %698 = vmatpush1.msra.mxu0 0.0
      %699 = vmatprep.subr.mxu0 0.0
      %700 = vmatpush1.msra.mxu0 0.0
      %701 = vmatprep.subr.mxu0 0.0
      %702 = vmatpush1.msra.mxu0 0.0
      %703 = vmatprep.subr.mxu0 0.0
      %704 = vmatpush1.msra.mxu0 0.0
      %705 = vmatprep.subr.mxu0 0.0
      %706 = vmatpush1.msra.mxu0 0.0
      %707 = vmatprep.subr.mxu0 0.0
      %708 = vmatpush1.msra.mxu0 0.0
      %709 = vmatprep.subr.mxu0 0.0
      %710 = vmatpush1.msra.mxu0 0.0
      %711 = vmatprep.subr.mxu0 0.0
      %712 = vmatpush1.msra.mxu0 0.0
      %713 = vmatprep.subr.mxu0 0.0
      %714 = vmatpush1.msra.mxu0 0.0
      %715 = vmatprep.subr.mxu0 0.0
      %716 = vmatpush1.msra.mxu0 0.0
      %717 = vmatprep.subr.mxu0 0.0
      %718 = vmatpush1.msra.mxu0 0.0
      %719 = vmatprep.subr.mxu0 0.0
      %720 = vmatpush1.msra.mxu0 0.0
      %721 = vmatprep.subr.mxu0 0.0
      %722 = vmatpush1.msra.mxu0 0.0
      %723 = vmatprep.subr.mxu0 0.0
      %724 = vmatpush1.msra.mxu0 0.0
      %725 = vmatprep.subr.mxu0 0.0
      %726 = vmatpush1.msra.mxu0 0.0
      %727 = vmatprep.subr.mxu0 0.0
      %728 = vmatpush1.msra.mxu0 0.0
      %729 = vmatprep.subr.mxu0 0.0
      %730 = vmatpush1.msra.mxu0 0.0
      %731 = vmatprep.subr.mxu0 0.0
      %732 = vmatpush1.msra.mxu0 0.0
      %733 = vmatprep.subr.mxu0 0.0
      %734 = vmatpush1.msra.mxu0 0.0
      %735 = vmatprep.subr.mxu0 0.0
      %736 = vmatpush1.msra.mxu0 0.0
      %737 = vmatprep.subr.mxu0 0.0
      %738 = vmatpush1.msra.mxu0 0.0
      %739 = vmatprep.mubr.f32.mxu0 0.0
      %740 = vmatmul.mubr.f32.gmra.mrb[0].mxu0 %v673
      %v741 = vpop.f32.mrb[0].mxu0
      %v742 = vadd.f32 %v667, %v741
      %v743 = vpop.f32.mrb[0].mxu0
      %744 = vdwg.mxu0
      %v745 = vlaneseq
      %v746 = vshrl.u32 %v745, 7
      %v747 = vsub.s32 0, %v746
      %v748 = vrot.slane %v503, %v747
      %v749 = vadd.f32 %v742, %v748
      %v750 = vmul.f32 %v749, 0.5
      %v751 = vtanh.pop %v750
      %v752 = vmul.f32 %v751, 0.5
      %v753 = vadd.f32 %v752, 0.5
      %v754 = vmul.f32 %v753, 0.0
      %756 = vrot.lane.b32.xlu0 %v751, 64
      %v757 = vpop.permute.xlu0 %756
      %v759 = vmul.f32 %v753, %v757
      %761 = vrot.lane.b32.xlu0 %v759, 32
      %v762 = vpop.permute.xlu0 %761
      %v764 = vadd.f32 %v754, %v762
      %v765 = vtanh.pop %v764
      %767 = vrot.lane.b32.xlu0 %v765, 64
      %v768 = vpop.permute.xlu0 %767
      %v770 = vmul.f32 %v753, %v768
      %771 = vmatprep.subr.mxu0 0.0
      %772 = vmatpush1.msra.mxu0 %v491
      %773 = vmatprep.subr.mxu0 0.0
      %774 = vmatpush1.msra.mxu0 %v492
      %775 = vmatprep.subr.mxu0 0.0
      %776 = vmatpush1.msra.mxu0 %v493
      %777 = vmatprep.subr.mxu0 0.0
      %778 = vmatpush1.msra.mxu0 %v494
      %779 = vmatprep.subr.mxu0 0.0
      %780 = vmatpush1.msra.mxu0 0.0
      %781 = vmatprep.subr.mxu0 0.0
      %782 = vmatpush1.msra.mxu0 0.0
      %783 = vmatprep.subr.mxu0 0.0
      %784 = vmatpush1.msra.mxu0 0.0
      %785 = vmatprep.subr.mxu0 0.0
      %786 = vmatpush1.msra.mxu0 0.0
      %787 = vmatprep.subr.mxu0 0.0
      %788 = vmatpush1.msra.mxu0 0.0
      %789 = vmatprep.subr.mxu0 0.0
      %790 = vmatpush1.msra.mxu0 0.0
      %791 = vmatprep.subr.mxu0 0.0
      %792 = vmatpush1.msra.mxu0 0.0
      %793 = vmatprep.subr.mxu0 0.0
      %794 = vmatpush1.msra.mxu0 0.0
      %795 = vmatprep.subr.mxu0 0.0
      %796 = vmatpush1.msra.mxu0 0.0
      %797 = vmatprep.subr.mxu0 0.0
      %798 = vmatpush1.msra.mxu0 0.0
      %799 = vmatprep.subr.mxu0 0.0
      %800 = vmatpush1.msra.mxu0 0.0
      %801 = vmatprep.subr.mxu0 0.0
      %802 = vmatpush1.msra.mxu0 0.0
      %803 = vmatprep.subr.mxu0 0.0
      %804 = vmatpush1.msra.mxu0 0.0
      %805 = vmatprep.subr.mxu0 0.0
      %806 = vmatpush1.msra.mxu0 0.0
      %807 = vmatprep.subr.mxu0 0.0
      %808 = vmatpush1.msra.mxu0 0.0
      %809 = vmatprep.subr.mxu0 0.0
      %810 = vmatpush1.msra.mxu0 0.0
      %811 = vmatprep.subr.mxu0 0.0
      %812 = vmatpush1.msra.mxu0 0.0
      %813 = vmatprep.subr.mxu0 0.0
      %814 = vmatpush1.msra.mxu0 0.0
      %815 = vmatprep.subr.mxu0 0.0
      %816 = vmatpush1.msra.mxu0 0.0
      %817 = vmatprep.subr.mxu0 0.0
      %818 = vmatpush1.msra.mxu0 0.0
      %819 = vmatprep.subr.mxu0 0.0
      %820 = vmatpush1.msra.mxu0 0.0
      %821 = vmatprep.subr.mxu0 0.0
      %822 = vmatpush1.msra.mxu0 0.0
      %823 = vmatprep.subr.mxu0 0.0
      %824 = vmatpush1.msra.mxu0 0.0
      %825 = vmatprep.subr.mxu0 0.0
      %826 = vmatpush1.msra.mxu0 0.0
      %827 = vmatprep.subr.mxu0 0.0
      %828 = vmatpush1.msra.mxu0 0.0
      %829 = vmatprep.subr.mxu0 0.0
      %830 = vmatpush1.msra.mxu0 0.0
      %831 = vmatprep.subr.mxu0 0.0
      %832 = vmatpush1.msra.mxu0 0.0
      %833 = vmatprep.subr.mxu0 0.0
      %834 = vmatpush1.msra.mxu0 0.0
      %835 = vmatprep.mubr.f32.mxu0 0.0
      %836 = vmatmul.mubr.f32.gmra.mrb[0].mxu0 %v673
      %v837 = vpop.f32.mrb[0].mxu0
      %v838 = vadd.f32 0.0, %v837
      %v839 = vpop.f32.mrb[0].mxu0
      %840 = vdwg.mxu0
      %v841 = vadd.f32 %v458, %v838
      %v842 = vmul.f32 %v841, 0.5
      %v843 = vtanh.pop %v842
      %v844 = vmul.f32 %v843, 0.5
      %v845 = vadd.f32 %v844, 0.5
      %v846 = vmul.f32 %v845, %v593
      %848 = vrot.lane.b32.xlu0 %v843, 64
      %v849 = vpop.permute.xlu0 %848
      %v851 = vmul.f32 %v845, %v849
      %853 = vrot.lane.b32.xlu0 %v851, 32
      %v854 = vpop.permute.xlu0 %853
      %v856 = vadd.f32 %v846, %v854
      %v857 = vtanh.pop %v856
      %859 = vrot.lane.b32.xlu0 %v857, 64
      %v860 = vpop.permute.xlu0 %859
      %v862 = vmul.f32 %v845, %v860
      %864 = vrot.lane.b32.xlu0 %v770, 32
      %v865 = vpop.permute.xlu0 %864
      %v866 = vsel %vm504, %v865, 0
      %868 = vmatprep.subr.mxu0 0.0
      %869 = vmatpush1.msra.mxu0 %v499
      %870 = vmatprep.subr.mxu0 0.0
      %871 = vmatpush1.msra.mxu0 %v500
      %872 = vmatprep.subr.mxu0 0.0
      %873 = vmatpush1.msra.mxu0 %v501
      %874 = vmatprep.subr.mxu0 0.0
      %875 = vmatpush1.msra.mxu0 %v502
      %876 = vmatprep.subr.mxu0 0.0
      %877 = vmatpush1.msra.mxu0 0.0
      %878 = vmatprep.subr.mxu0 0.0
      %879 = vmatpush1.msra.mxu0 0.0
      %880 = vmatprep.subr.mxu0 0.0
      %881 = vmatpush1.msra.mxu0 0.0
      %882 = vmatprep.subr.mxu0 0.0
      %883 = vmatpush1.msra.mxu0 0.0
      %884 = vmatprep.subr.mxu0 0.0
      %885 = vmatpush1.msra.mxu0 0.0
      %886 = vmatprep.subr.mxu0 0.0
      %887 = vmatpush1.msra.mxu0 0.0
      %888 = vmatprep.subr.mxu0 0.0
      %889 = vmatpush1.msra.mxu0 0.0
      %890 = vmatprep.subr.mxu0 0.0
      %891 = vmatpush1.msra.mxu0 0.0
      %892 = vmatprep.subr.mxu0 0.0
      %893 = vmatpush1.msra.mxu0 0.0
      %894 = vmatprep.subr.mxu0 0.0
      %895 = vmatpush1.msra.mxu0 0.0
      %896 = vmatprep.subr.mxu0 0.0
      %897 = vmatpush1.msra.mxu0 0.0
      %898 = vmatprep.subr.mxu0 0.0
      %899 = vmatpush1.msra.mxu0 0.0
      %900 = vmatprep.subr.mxu0 0.0
      %901 = vmatpush1.msra.mxu0 0.0
      %902 = vmatprep.subr.mxu0 0.0
      %903 = vmatpush1.msra.mxu0 0.0
      %904 = vmatprep.subr.mxu0 0.0
      %905 = vmatpush1.msra.mxu0 0.0
      %906 = vmatprep.subr.mxu0 0.0
      %907 = vmatpush1.msra.mxu0 0.0
      %908 = vmatprep.subr.mxu0 0.0
      %909 = vmatpush1.msra.mxu0 0.0
      %910 = vmatprep.subr.mxu0 0.0
      %911 = vmatpush1.msra.mxu0 0.0
      %912 = vmatprep.subr.mxu0 0.0
      %913 = vmatpush1.msra.mxu0 0.0
      %914 = vmatprep.subr.mxu0 0.0
      %915 = vmatpush1.msra.mxu0 0.0
      %916 = vmatprep.subr.mxu0 0.0
      %917 = vmatpush1.msra.mxu0 0.0
      %918 = vmatprep.subr.mxu0 0.0
      %919 = vmatpush1.msra.mxu0 0.0
      %920 = vmatprep.subr.mxu0 0.0
      %921 = vmatpush1.msra.mxu0 0.0
      %922 = vmatprep.subr.mxu0 0.0
      %923 = vmatpush1.msra.mxu0 0.0
      %924 = vmatprep.subr.mxu0 0.0
      %925 = vmatpush1.msra.mxu0 0.0
      %926 = vmatprep.subr.mxu0 0.0
      %927 = vmatpush1.msra.mxu0 0.0
      %928 = vmatprep.subr.mxu0 0.0
      %929 = vmatpush1.msra.mxu0 0.0
      %930 = vmatprep.subr.mxu0 0.0
      %931 = vmatpush1.msra.mxu0 0.0
      %932 = vmatprep.mubr.f32.mxu0 0.0
      %933 = vmatmul.mubr.f32.gmra.mrb[0].mxu0 %v866
      %v934 = vpop.f32.mrb[0].mxu0
      %v935 = vadd.f32 0.0, %v934
      %v936 = vpop.f32.mrb[0].mxu0
      %937 = vdwg.mxu0
      %939 = vrot.lane.b32.xlu0 %v862, 32
      %v940 = vpop.permute.xlu0 %939
      %v941 = vsel %vm504, %v940, 0
      %943 = vmatprep.subr.mxu0 0.0
      %944 = vmatpush1.msra.mxu0 %v495
      %945 = vmatprep.subr.mxu0 0.0
      %946 = vmatpush1.msra.mxu0 %v496
      %947 = vmatprep.subr.mxu0 0.0
      %948 = vmatpush1.msra.mxu0 %v497
      %949 = vmatprep.subr.mxu0 0.0
      %950 = vmatpush1.msra.mxu0 %v498
      %951 = vmatprep.subr.mxu0 0.0
      %952 = vmatpush1.msra.mxu0 0.0
      %953 = vmatprep.subr.mxu0 0.0
      %954 = vmatpush1.msra.mxu0 0.0
      %955 = vmatprep.subr.mxu0 0.0
      %956 = vmatpush1.msra.mxu0 0.0
      %957 = vmatprep.subr.mxu0 0.0
      %958 = vmatpush1.msra.mxu0 0.0
      %959 = vmatprep.subr.mxu0 0.0
      %960 = vmatpush1.msra.mxu0 0.0
      %961 = vmatprep.subr.mxu0 0.0
      %962 = vmatpush1.msra.mxu0 0.0
      %963 = vmatprep.subr.mxu0 0.0
      %964 = vmatpush1.msra.mxu0 0.0
      %965 = vmatprep.subr.mxu0 0.0
      %966 = vmatpush1.msra.mxu0 0.0
      %967 = vmatprep.subr.mxu0 0.0
      %968 = vmatpush1.msra.mxu0 0.0
      %969 = vmatprep.subr.mxu0 0.0
      %970 = vmatpush1.msra.mxu0 0.0
      %971 = vmatprep.subr.mxu0 0.0
      %972 = vmatpush1.msra.mxu0 0.0
      %973 = vmatprep.subr.mxu0 0.0
      %974 = vmatpush1.msra.mxu0 0.0
      %975 = vmatprep.subr.mxu0 0.0
      %976 = vmatpush1.msra.mxu0 0.0
      %977 = vmatprep.subr.mxu0 0.0
      %978 = vmatpush1.msra.mxu0 0.0
      %979 = vmatprep.subr.mxu0 0.0
      %980 = vmatpush1.msra.mxu0 0.0
      %981 = vmatprep.subr.mxu0 0.0
      %982 = vmatpush1.msra.mxu0 0.0
      %983 = vmatprep.subr.mxu0 0.0
      %984 = vmatpush1.msra.mxu0 0.0
      %985 = vmatprep.subr.mxu0 0.0
      %986 = vmatpush1.msra.mxu0 0.0
      %987 = vmatprep.subr.mxu0 0.0
      %988 = vmatpush1.msra.mxu0 0.0
      %989 = vmatprep.subr.mxu0 0.0
      %990 = vmatpush1.msra.mxu0 0.0
      %991 = vmatprep.subr.mxu0 0.0
      %992 = vmatpush1.msra.mxu0 0.0
      %993 = vmatprep.subr.mxu0 0.0
      %994 = vmatpush1.msra.mxu0 0.0
      %995 = vmatprep.subr.mxu0 0.0
      %996 = vmatpush1.msra.mxu0 0.0
      %997 = vmatprep.subr.mxu0 0.0
      %998 = vmatpush1.msra.mxu0 0.0
      %999 = vmatprep.subr.mxu0 0.0
      %1000 = vmatpush1.msra.mxu0 0.0
      %1001 = vmatprep.subr.mxu0 0.0
      %1002 = vmatpush1.msra.mxu0 0.0
      %1003 = vmatprep.subr.mxu0 0.0
      %1004 = vmatpush1.msra.mxu0 0.0
      %1005 = vmatprep.subr.mxu0 0.0
      %1006 = vmatpush1.msra.mxu0 0.0
      %1007 = vmatprep.mubr.f32.mxu0 0.0
      %1008 = vmatmul.mubr.f32.gmra.mrb[0].mxu0 %v941
      %v1009 = vpop.f32.mrb[0].mxu0
      %v1010 = vadd.f32 %v935, %v1009
      %v1011 = vpop.f32.mrb[0].mxu0
      %1012 = vdwg.mxu0
      %v1013 = vadd.f32 %v1010, %v748
      %v1014 = vmul.f32 %v1013, 0.5
      %v1015 = vtanh.pop %v1014
      %v1016 = vmul.f32 %v1015, 0.5
      %v1017 = vadd.f32 %v1016, 0.5
      %v1018 = vmul.f32 %v1017, %v764
      %1020 = vrot.lane.b32.xlu0 %v1015, 64
      %v1021 = vpop.permute.xlu0 %1020
      %v1023 = vmul.f32 %v1017, %v1021
      %1025 = vrot.lane.b32.xlu0 %v1023, 32
      %v1026 = vpop.permute.xlu0 %1025
      %v1028 = vadd.f32 %v1018, %v1026
      %v1029 = vtanh.pop %v1028
      %1031 = vrot.lane.b32.xlu0 %v1029, 64
      %v1032 = vpop.permute.xlu0 %1031
      %v1034 = vmul.f32 %v1017, %v1032
      %1035 = vmatprep.subr.mxu0 0.0
      %1036 = vmatpush1.msra.mxu0 %v491
      %1037 = vmatprep.subr.mxu0 0.0
      %1038 = vmatpush1.msra.mxu0 %v492
      %1039 = vmatprep.subr.mxu0 0.0
      %1040 = vmatpush1.msra.mxu0 %v493
      %1041 = vmatprep.subr.mxu0 0.0
      %1042 = vmatpush1.msra.mxu0 %v494
      %1043 = vmatprep.subr.mxu0 0.0
      %1044 = vmatpush1.msra.mxu0 0.0
      %1045 = vmatprep.subr.mxu0 0.0
      %1046 = vmatpush1.msra.mxu0 0.0
      %1047 = vmatprep.subr.mxu0 0.0
      %1048 = vmatpush1.msra.mxu0 0.0
      %1049 = vmatprep.subr.mxu0 0.0
      %1050 = vmatpush1.msra.mxu0 0.0
      %1051 = vmatprep.subr.mxu0 0.0
      %1052 = vmatpush1.msra.mxu0 0.0
      %1053 = vmatprep.subr.mxu0 0.0
      %1054 = vmatpush1.msra.mxu0 0.0
      %1055 = vmatprep.subr.mxu0 0.0
      %1056 = vmatpush1.msra.mxu0 0.0
      %1057 = vmatprep.subr.mxu0 0.0
      %1058 = vmatpush1.msra.mxu0 0.0
      %1059 = vmatprep.subr.mxu0 0.0
      %1060 = vmatpush1.msra.mxu0 0.0
      %1061 = vmatprep.subr.mxu0 0.0
      %1062 = vmatpush1.msra.mxu0 0.0
      %1063 = vmatprep.subr.mxu0 0.0
      %1064 = vmatpush1.msra.mxu0 0.0
      %1065 = vmatprep.subr.mxu0 0.0
      %1066 = vmatpush1.msra.mxu0 0.0
      %1067 = vmatprep.subr.mxu0 0.0
      %1068 = vmatpush1.msra.mxu0 0.0
      %1069 = vmatprep.subr.mxu0 0.0
      %1070 = vmatpush1.msra.mxu0 0.0
      %1071 = vmatprep.subr.mxu0 0.0
      %1072 = vmatpush1.msra.mxu0 0.0
      %1073 = vmatprep.subr.mxu0 0.0
      %1074 = vmatpush1.msra.mxu0 0.0
      %1075 = vmatprep.subr.mxu0 0.0
      %1076 = vmatpush1.msra.mxu0 0.0
      %1077 = vmatprep.subr.mxu0 0.0
      %1078 = vmatpush1.msra.mxu0 0.0
      %1079 = vmatprep.subr.mxu0 0.0
      %1080 = vmatpush1.msra.mxu0 0.0
      %1081 = vmatprep.subr.mxu0 0.0
      %1082 = vmatpush1.msra.mxu0 0.0
      %1083 = vmatprep.subr.mxu0 0.0
      %1084 = vmatpush1.msra.mxu0 0.0
      %1085 = vmatprep.subr.mxu0 0.0
      %1086 = vmatpush1.msra.mxu0 0.0
      %1087 = vmatprep.subr.mxu0 0.0
      %1088 = vmatpush1.msra.mxu0 0.0
      %1089 = vmatprep.subr.mxu0 0.0
      %1090 = vmatpush1.msra.mxu0 0.0
      %1091 = vmatprep.subr.mxu0 0.0
      %1092 = vmatpush1.msra.mxu0 0.0
      %1093 = vmatprep.subr.mxu0 0.0
      %1094 = vmatpush1.msra.mxu0 0.0
      %1095 = vmatprep.subr.mxu0 0.0
      %1096 = vmatpush1.msra.mxu0 0.0
      %1097 = vmatprep.subr.mxu0 0.0
      %1098 = vmatpush1.msra.mxu0 0.0
      %1099 = vmatprep.mubr.f32.mxu0 0.0
      %1100 = vmatmul.mubr.f32.gmra.mrb[0].mxu0 %v941
      %v1101 = vpop.f32.mrb[0].mxu0
      %v1102 = vadd.f32 0.0, %v1101
      %v1103 = vpop.f32.mrb[0].mxu0
      %1104 = vdwg.mxu0
      %v1105 = vadd.f32 %v463, %v1102
      %v1106 = vmul.f32 %v1105, 0.5
      %v1107 = vtanh.pop %v1106
      %v1108 = vmul.f32 %v1107, 0.5
      %v1109 = vadd.f32 %v1108, 0.5
      %v1110 = vmul.f32 %v1109, %v856
      %1112 = vrot.lane.b32.xlu0 %v1107, 64
      %v1113 = vpop.permute.xlu0 %1112
      %v1115 = vmul.f32 %v1109, %v1113
      %1117 = vrot.lane.b32.xlu0 %v1115, 32
      %v1118 = vpop.permute.xlu0 %1117
      %v1120 = vadd.f32 %v1110, %v1118
      %v1121 = vtanh.pop %v1120
      %1123 = vrot.lane.b32.xlu0 %v1121, 64
      %v1124 = vpop.permute.xlu0 %1123
      %v1126 = vmul.f32 %v1109, %v1124
      %1128 = vrot.lane.b32.xlu0 %v1034, 32
      %v1129 = vpop.permute.xlu0 %1128
      %v1130 = vsel %vm504, %v1129, 0
      %1132 = vmatprep.subr.mxu0 0.0
      %1133 = vmatpush1.msra.mxu0 %v499
      %1134 = vmatprep.subr.mxu0 0.0
      %1135 = vmatpush1.msra.mxu0 %v500
      %1136 = vmatprep.subr.mxu0 0.0
      %1137 = vmatpush1.msra.mxu0 %v501
      %1138 = vmatprep.subr.mxu0 0.0
      %1139 = vmatpush1.msra.mxu0 %v502
      %1140 = vmatprep.subr.mxu0 0.0
      %1141 = vmatpush1.msra.mxu0 0.0
      %1142 = vmatprep.subr.mxu0 0.0
      %1143 = vmatpush1.msra.mxu0 0.0
      %1144 = vmatprep.subr.mxu0 0.0
      %1145 = vmatpush1.msra.mxu0 0.0
      %1146 = vmatprep.subr.mxu0 0.0
      %1147 = vmatpush1.msra.mxu0 0.0
      %1148 = vmatprep.subr.mxu0 0.0
      %1149 = vmatpush1.msra.mxu0 0.0
      %1150 = vmatprep.subr.mxu0 0.0
      %1151 = vmatpush1.msra.mxu0 0.0
      %1152 = vmatprep.subr.mxu0 0.0
      %1153 = vmatpush1.msra.mxu0 0.0
      %1154 = vmatprep.subr.mxu0 0.0
      %1155 = vmatpush1.msra.mxu0 0.0
      %1156 = vmatprep.subr.mxu0 0.0
      %1157 = vmatpush1.msra.mxu0 0.0
      %1158 = vmatprep.subr.mxu0 0.0
      %1159 = vmatpush1.msra.mxu0 0.0
      %1160 = vmatprep.subr.mxu0 0.0
      %1161 = vmatpush1.msra.mxu0 0.0
      %1162 = vmatprep.subr.mxu0 0.0
      %1163 = vmatpush1.msra.mxu0 0.0
      %1164 = vmatprep.subr.mxu0 0.0
      %1165 = vmatpush1.msra.mxu0 0.0
      %1166 = vmatprep.subr.mxu0 0.0
      %1167 = vmatpush1.msra.mxu0 0.0
      %1168 = vmatprep.subr.mxu0 0.0
      %1169 = vmatpush1.msra.mxu0 0.0
      %1170 = vmatprep.subr.mxu0 0.0
      %1171 = vmatpush1.msra.mxu0 0.0
      %1172 = vmatprep.subr.mxu0 0.0
      %1173 = vmatpush1.msra.mxu0 0.0
      %1174 = vmatprep.subr.mxu0 0.0
      %1175 = vmatpush1.msra.mxu0 0.0
      %1176 = vmatprep.subr.mxu0 0.0
      %1177 = vmatpush1.msra.mxu0 0.0
      %1178 = vmatprep.subr.mxu0 0.0
      %1179 = vmatpush1.msra.mxu0 0.0
      %1180 = vmatprep.subr.mxu0 0.0
      %1181 = vmatpush1.msra.mxu0 0.0
      %1182 = vmatprep.subr.mxu0 0.0
      %1183 = vmatpush1.msra.mxu0 0.0
      %1184 = vmatprep.subr.mxu0 0.0
      %1185 = vmatpush1.msra.mxu0 0.0
      %1186 = vmatprep.subr.mxu0 0.0
      %1187 = vmatpush1.msra.mxu0 0.0
      %1188 = vmatprep.subr.mxu0 0.0
      %1189 = vmatpush1.msra.mxu0 0.0
      %1190 = vmatprep.subr.mxu0 0.0
      %1191 = vmatpush1.msra.mxu0 0.0
      %1192 = vmatprep.subr.mxu0 0.0
      %1193 = vmatpush1.msra.mxu0 0.0
      %1194 = vmatprep.subr.mxu0 0.0
      %1195 = vmatpush1.msra.mxu0 0.0
      %1196 = vmatprep.mubr.f32.mxu0 0.0
      %1197 = vmatmul.mubr.f32.gmra.mrb[0].mxu0 %v1130
      %v1198 = vpop.f32.mrb[0].mxu0
      %v1199 = vadd.f32 0.0, %v1198
      %v1200 = vpop.f32.mrb[0].mxu0
      %1201 = vdwg.mxu0
      %1203 = vrot.lane.b32.xlu0 %v1126, 32
      %v1204 = vpop.permute.xlu0 %1203
      %v1205 = vsel %vm504, %v1204, 0
      %1207 = vmatprep.subr.mxu0 0.0
      %1208 = vmatpush1.msra.mxu0 %v495
      %1209 = vmatprep.subr.mxu0 0.0
      %1210 = vmatpush1.msra.mxu0 %v496
      %1211 = vmatprep.subr.mxu0 0.0
      %1212 = vmatpush1.msra.mxu0 %v497
      %1213 = vmatprep.subr.mxu0 0.0
      %1214 = vmatpush1.msra.mxu0 %v498
      %1215 = vmatprep.subr.mxu0 0.0
      %1216 = vmatpush1.msra.mxu0 0.0
      %1217 = vmatprep.subr.mxu0 0.0
      %1218 = vmatpush1.msra.mxu0 0.0
      %1219 = vmatprep.subr.mxu0 0.0
      %1220 = vmatpush1.msra.mxu0 0.0
      %1221 = vmatprep.subr.mxu0 0.0
      %1222 = vmatpush1.msra.mxu0 0.0
      %1223 = vmatprep.subr.mxu0 0.0
      %1224 = vmatpush1.msra.mxu0 0.0
      %1225 = vmatprep.subr.mxu0 0.0
      %1226 = vmatpush1.msra.mxu0 0.0
      %1227 = vmatprep.subr.mxu0 0.0
      %1228 = vmatpush1.msra.mxu0 0.0
      %1229 = vmatprep.subr.mxu0 0.0
      %1230 = vmatpush1.msra.mxu0 0.0
      %1231 = vmatprep.subr.mxu0 0.0
      %1232 = vmatpush1.msra.mxu0 0.0
      %1233 = vmatprep.subr.mxu0 0.0
      %1234 = vmatpush1.msra.mxu0 0.0
      %1235 = vmatprep.subr.mxu0 0.0
      %1236 = vmatpush1.msra.mxu0 0.0
      %1237 = vmatprep.subr.mxu0 0.0
      %1238 = vmatpush1.msra.mxu0 0.0
      %1239 = vmatprep.subr.mxu0 0.0
      %1240 = vmatpush1.msra.mxu0 0.0
      %1241 = vmatprep.subr.mxu0 0.0
      %1242 = vmatpush1.msra.mxu0 0.0
      %1243 = vmatprep.subr.mxu0 0.0
      %1244 = vmatpush1.msra.mxu0 0.0
      %1245 = vmatprep.subr.mxu0 0.0
      %1246 = vmatpush1.msra.mxu0 0.0
      %1247 = vmatprep.subr.mxu0 0.0
      %1248 = vmatpush1.msra.mxu0 0.0
      %1249 = vmatprep.subr.mxu0 0.0
      %1250 = vmatpush1.msra.mxu0 0.0
      %1251 = vmatprep.subr.mxu0 0.0
      %1252 = vmatpush1.msra.mxu0 0.0
      %1253 = vmatprep.subr.mxu0 0.0
      %1254 = vmatpush1.msra.mxu0 0.0
      %1255 = vmatprep.subr.mxu0 0.0
      %1256 = vmatpush1.msra.mxu0 0.0
      %1257 = vmatprep.subr.mxu0 0.0
      %1258 = vmatpush1.msra.mxu0 0.0
      %1259 = vmatprep.subr.mxu0 0.0
      %1260 = vmatpush1.msra.mxu0 0.0
      %1261 = vmatprep.subr.mxu0 0.0
      %1262 = vmatpush1.msra.mxu0 0.0
      %1263 = vmatprep.subr.mxu0 0.0
      %1264 = vmatpush1.msra.mxu0 0.0
      %1265 = vmatprep.subr.mxu0 0.0
      %1266 = vmatpush1.msra.mxu0 0.0
      %1267 = vmatprep.subr.mxu0 0.0
      %1268 = vmatpush1.msra.mxu0 0.0
      %1269 = vmatprep.subr.mxu0 0.0
      %1270 = vmatpush1.msra.mxu0 0.0
      %1271 = vmatprep.mubr.f32.mxu0 0.0
      %1272 = vmatmul.mubr.f32.gmra.mrb[0].mxu0 %v1205
      %v1273 = vpop.f32.mrb[0].mxu0
      %v1274 = vadd.f32 %v1199, %v1273
      %v1275 = vpop.f32.mrb[0].mxu0
      %1276 = vdwg.mxu0
      %v1277 = vadd.f32 %v1274, %v748
      %v1278 = vmul.f32 %v1277, 0.5
      %v1279 = vtanh.pop %v1278
      %v1280 = vmul.f32 %v1279, 0.5
      %v1281 = vadd.f32 %v1280, 0.5
      %v1282 = vmul.f32 %v1281, %v1028
      %1284 = vrot.lane.b32.xlu0 %v1279, 64
      %v1285 = vpop.permute.xlu0 %1284
      %v1287 = vmul.f32 %v1281, %v1285
      %1289 = vrot.lane.b32.xlu0 %v1287, 32
      %v1290 = vpop.permute.xlu0 %1289
      %v1292 = vadd.f32 %v1282, %v1290
      %v1293 = vtanh.pop %v1292
      %1295 = vrot.lane.b32.xlu0 %v1293, 64
      %v1296 = vpop.permute.xlu0 %1295
      %v1298 = vmul.f32 %v1281, %v1296
      %1299 = vmatprep.subr.mxu0 0.0
      %1300 = vmatpush1.msra.mxu0 %v491
      %1301 = vmatprep.subr.mxu0 0.0
      %1302 = vmatpush1.msra.mxu0 %v492
      %1303 = vmatprep.subr.mxu0 0.0
      %1304 = vmatpush1.msra.mxu0 %v493
      %1305 = vmatprep.subr.mxu0 0.0
      %1306 = vmatpush1.msra.mxu0 %v494
      %1307 = vmatprep.subr.mxu0 0.0
      %1308 = vmatpush1.msra.mxu0 0.0
      %1309 = vmatprep.subr.mxu0 0.0
      %1310 = vmatpush1.msra.mxu0 0.0
      %1311 = vmatprep.subr.mxu0 0.0
      %1312 = vmatpush1.msra.mxu0 0.0
      %1313 = vmatprep.subr.mxu0 0.0
      %1314 = vmatpush1.msra.mxu0 0.0
      %1315 = vmatprep.subr.mxu0 0.0
      %1316 = vmatpush1.msra.mxu0 0.0
      %1317 = vmatprep.subr.mxu0 0.0
      %1318 = vmatpush1.msra.mxu0 0.0
      %1319 = vmatprep.subr.mxu0 0.0
      %1320 = vmatpush1.msra.mxu0 0.0
      %1321 = vmatprep.subr.mxu0 0.0
      %1322 = vmatpush1.msra.mxu0 0.0
      %1323 = vmatprep.subr.mxu0 0.0
      %1324 = vmatpush1.msra.mxu0 0.0
      %1325 = vmatprep.subr.mxu0 0.0
      %1326 = vmatpush1.msra.mxu0 0.0
      %1327 = vmatprep.subr.mxu0 0.0
      %1328 = vmatpush1.msra.mxu0 0.0
      %1329 = vmatprep.subr.mxu0 0.0
      %1330 = vmatpush1.msra.mxu0 0.0
      %1331 = vmatprep.subr.mxu0 0.0
      %1332 = vmatpush1.msra.mxu0 0.0
      %1333 = vmatprep.subr.mxu0 0.0
      %1334 = vmatpush1.msra.mxu0 0.0
      %1335 = vmatprep.subr.mxu0 0.0
      %1336 = vmatpush1.msra.mxu0 0.0
      %1337 = vmatprep.subr.mxu0 0.0
      %1338 = vmatpush1.msra.mxu0 0.0
      %1339 = vmatprep.subr.mxu0 0.0
      %1340 = vmatpush1.msra.mxu0 0.0
      %1341 = vmatprep.subr.mxu0 0.0
      %1342 = vmatpush1.msra.mxu0 0.0
      %1343 = vmatprep.subr.mxu0 0.0
      %1344 = vmatpush1.msra.mxu0 0.0
      %1345 = vmatprep.subr.mxu0 0.0
      %1346 = vmatpush1.msra.mxu0 0.0
      %1347 = vmatprep.subr.mxu0 0.0
      %1348 = vmatpush1.msra.mxu0 0.0
      %1349 = vmatprep.subr.mxu0 0.0
      %1350 = vmatpush1.msra.mxu0 0.0
      %1351 = vmatprep.subr.mxu0 0.0
      %1352 = vmatpush1.msra.mxu0 0.0
      %1353 = vmatprep.subr.mxu0 0.0
      %1354 = vmatpush1.msra.mxu0 0.0
      %1355 = vmatprep.subr.mxu0 0.0
      %1356 = vmatpush1.msra.mxu0 0.0
      %1357 = vmatprep.subr.mxu0 0.0
      %1358 = vmatpush1.msra.mxu0 0.0
      %1359 = vmatprep.subr.mxu0 0.0
      %1360 = vmatpush1.msra.mxu0 0.0
      %1361 = vmatprep.subr.mxu0 0.0
      %1362 = vmatpush1.msra.mxu0 0.0
      %1363 = vmatprep.mubr.f32.mxu0 0.0
      %1364 = vmatmul.mubr.f32.gmra.mrb[0].mxu0 %v1205
      %v1365 = vpop.f32.mrb[0].mxu0
      %v1366 = vadd.f32 0.0, %v1365
      %v1367 = vpop.f32.mrb[0].mxu0
      %1368 = vdwg.mxu0
      %v1369 = vadd.f32 %v468, %v1366
      %v1370 = vmul.f32 %v1369, 0.5
      %v1371 = vtanh.pop %v1370
      %v1372 = vmul.f32 %v1371, 0.5
      %v1373 = vadd.f32 %v1372, 0.5
      %v1374 = vmul.f32 %v1373, %v1120
      %1376 = vrot.lane.b32.xlu0 %v1371, 64
      %v1377 = vpop.permute.xlu0 %1376
      %v1379 = vmul.f32 %v1373, %v1377
      %1381 = vrot.lane.b32.xlu0 %v1379, 32
      %v1382 = vpop.permute.xlu0 %1381
      %v1384 = vadd.f32 %v1374, %v1382
      %v1385 = vtanh.pop %v1384
      %1387 = vrot.lane.b32.xlu0 %v1385, 64
      %v1388 = vpop.permute.xlu0 %1387
      %v1390 = vmul.f32 %v1373, %v1388
      %1392 = vrot.lane.b32.xlu0 %v1298, 32
      %v1393 = vpop.permute.xlu0 %1392
      %v1394 = vsel %vm504, %v1393, 0
      %1396 = vmatprep.subr.mxu0 0.0
      %1397 = vmatpush1.msra.mxu0 %v499
      %1398 = vmatprep.subr.mxu0 0.0
      %1399 = vmatpush1.msra.mxu0 %v500
      %1400 = vmatprep.subr.mxu0 0.0
      %1401 = vmatpush1.msra.mxu0 %v501
      %1402 = vmatprep.subr.mxu0 0.0
      %1403 = vmatpush1.msra.mxu0 %v502
      %1404 = vmatprep.subr.mxu0 0.0
      %1405 = vmatpush1.msra.mxu0 0.0
      %1406 = vmatprep.subr.mxu0 0.0
      %1407 = vmatpush1.msra.mxu0 0.0
      %1408 = vmatprep.subr.mxu0 0.0
      %1409 = vmatpush1.msra.mxu0 0.0
      %1410 = vmatprep.subr.mxu0 0.0
      %1411 = vmatpush1.msra.mxu0 0.0
      %1412 = vmatprep.subr.mxu0 0.0
      %1413 = vmatpush1.msra.mxu0 0.0
      %1414 = vmatprep.subr.mxu0 0.0
      %1415 = vmatpush1.msra.mxu0 0.0
      %1416 = vmatprep.subr.mxu0 0.0
      %1417 = vmatpush1.msra.mxu0 0.0
      %1418 = vmatprep.subr.mxu0 0.0
      %1419 = vmatpush1.msra.mxu0 0.0
      %1420 = vmatprep.subr.mxu0 0.0
      %1421 = vmatpush1.msra.mxu0 0.0
      %1422 = vmatprep.subr.mxu0 0.0
      %1423 = vmatpush1.msra.mxu0 0.0
      %1424 = vmatprep.subr.mxu0 0.0
      %1425 = vmatpush1.msra.mxu0 0.0
      %1426 = vmatprep.subr.mxu0 0.0
      %1427 = vmatpush1.msra.mxu0 0.0
      %1428 = vmatprep.subr.mxu0 0.0
      %1429 = vmatpush1.msra.mxu0 0.0
      %1430 = vmatprep.subr.mxu0 0.0
      %1431 = vmatpush1.msra.mxu0 0.0
      %1432 = vmatprep.subr.mxu0 0.0
      %1433 = vmatpush1.msra.mxu0 0.0
      %1434 = vmatprep.subr.mxu0 0.0
      %1435 = vmatpush1.msra.mxu0 0.0
      %1436 = vmatprep.subr.mxu0 0.0
      %1437 = vmatpush1.msra.mxu0 0.0
      %1438 = vmatprep.subr.mxu0 0.0
      %1439 = vmatpush1.msra.mxu0 0.0
      %1440 = vmatprep.subr.mxu0 0.0
      %1441 = vmatpush1.msra.mxu0 0.0
      %1442 = vmatprep.subr.mxu0 0.0
      %1443 = vmatpush1.msra.mxu0 0.0
      %1444 = vmatprep.subr.mxu0 0.0
      %1445 = vmatpush1.msra.mxu0 0.0
      %1446 = vmatprep.subr.mxu0 0.0
      %1447 = vmatpush1.msra.mxu0 0.0
      %1448 = vmatprep.subr.mxu0 0.0
      %1449 = vmatpush1.msra.mxu0 0.0
      %1450 = vmatprep.subr.mxu0 0.0
      %1451 = vmatpush1.msra.mxu0 0.0
      %1452 = vmatprep.subr.mxu0 0.0
      %1453 = vmatpush1.msra.mxu0 0.0
      %1454 = vmatprep.subr.mxu0 0.0
      %1455 = vmatpush1.msra.mxu0 0.0
      %1456 = vmatprep.subr.mxu0 0.0
      %1457 = vmatpush1.msra.mxu0 0.0
      %1458 = vmatprep.subr.mxu0 0.0
      %1459 = vmatpush1.msra.mxu0 0.0
      %1460 = vmatprep.mubr.f32.mxu0 0.0
      %1461 = vmatmul.mubr.f32.gmra.mrb[0].mxu0 %v1394
      %v1462 = vpop.f32.mrb[0].mxu0
      %v1463 = vadd.f32 0.0, %v1462
      %v1464 = vpop.f32.mrb[0].mxu0
      %1465 = vdwg.mxu0
      %1467 = vrot.lane.b32.xlu0 %v1390, 32
      %v1468 = vpop.permute.xlu0 %1467
      %v1469 = vsel %vm504, %v1468, 0
      %1471 = vmatprep.subr.mxu0 0.0
      %1472 = vmatpush1.msra.mxu0 %v495
      %1473 = vmatprep.subr.mxu0 0.0
      %1474 = vmatpush1.msra.mxu0 %v496
      %1475 = vmatprep.subr.mxu0 0.0
      %1476 = vmatpush1.msra.mxu0 %v497
      %1477 = vmatprep.subr.mxu0 0.0
      %1478 = vmatpush1.msra.mxu0 %v498
      %1479 = vmatprep.subr.mxu0 0.0
      %1480 = vmatpush1.msra.mxu0 0.0
      %1481 = vmatprep.subr.mxu0 0.0
      %1482 = vmatpush1.msra.mxu0 0.0
      %1483 = vmatprep.subr.mxu0 0.0
      %1484 = vmatpush1.msra.mxu0 0.0
      %1485 = vmatprep.subr.mxu0 0.0
      %1486 = vmatpush1.msra.mxu0 0.0
      %1487 = vmatprep.subr.mxu0 0.0
      %1488 = vmatpush1.msra.mxu0 0.0
      %1489 = vmatprep.subr.mxu0 0.0
      %1490 = vmatpush1.msra.mxu0 0.0
      %1491 = vmatprep.subr.mxu0 0.0
      %1492 = vmatpush1.msra.mxu0 0.0
      %1493 = vmatprep.subr.mxu0 0.0
      %1494 = vmatpush1.msra.mxu0 0.0
      %1495 = vmatprep.subr.mxu0 0.0
      %1496 = vmatpush1.msra.mxu0 0.0
      %1497 = vmatprep.subr.mxu0 0.0
      %1498 = vmatpush1.msra.mxu0 0.0
      %1499 = vmatprep.subr.mxu0 0.0
      %1500 = vmatpush1.msra.mxu0 0.0
      %1501 = vmatprep.subr.mxu0 0.0
      %1502 = vmatpush1.msra.mxu0 0.0
      %1503 = vmatprep.subr.mxu0 0.0
      %1504 = vmatpush1.msra.mxu0 0.0
      %1505 = vmatprep.subr.mxu0 0.0
      %1506 = vmatpush1.msra.mxu0 0.0
      %1507 = vmatprep.subr.mxu0 0.0
      %1508 = vmatpush1.msra.mxu0 0.0
      %1509 = vmatprep.subr.mxu0 0.0
      %1510 = vmatpush1.msra.mxu0 0.0
      %1511 = vmatprep.subr.mxu0 0.0
      %1512 = vmatpush1.msra.mxu0 0.0
      %1513 = vmatprep.subr.mxu0 0.0
      %1514 = vmatpush1.msra.mxu0 0.0
      %1515 = vmatprep.subr.mxu0 0.0
      %1516 = vmatpush1.msra.mxu0 0.0
      %1517 = vmatprep.subr.mxu0 0.0
      %1518 = vmatpush1.msra.mxu0 0.0
      %1519 = vmatprep.subr.mxu0 0.0
      %1520 = vmatpush1.msra.mxu0 0.0
      %1521 = vmatprep.subr.mxu0 0.0
      %1522 = vmatpush1.msra.mxu0 0.0
      %1523 = vmatprep.subr.mxu0 0.0
      %1524 = vmatpush1.msra.mxu0 0.0
      %1525 = vmatprep.subr.mxu0 0.0
      %1526 = vmatpush1.msra.mxu0 0.0
      %1527 = vmatprep.subr.mxu0 0.0
      %1528 = vmatpush1.msra.mxu0 0.0
      %1529 = vmatprep.subr.mxu0 0.0
      %1530 = vmatpush1.msra.mxu0 0.0
      %1531 = vmatprep.subr.mxu0 0.0
      %1532 = vmatpush1.msra.mxu0 0.0
      %1533 = vmatprep.subr.mxu0 0.0
      %1534 = vmatpush1.msra.mxu0 0.0
      %1535 = vmatprep.mubr.f32.mxu0 0.0
      %1536 = vmatmul.mubr.f32.gmra.mrb[0].mxu0 %v1469
      %v1537 = vpop.f32.mrb[0].mxu0
      %v1538 = vadd.f32 %v1463, %v1537
      %v1539 = vpop.f32.mrb[0].mxu0
      %1540 = vdwg.mxu0
      %v1541 = vadd.f32 %v1538, %v748
      %v1542 = vmul.f32 %v1541, 0.5
      %v1543 = vtanh.pop %v1542
      %v1544 = vmul.f32 %v1543, 0.5
      %v1545 = vadd.f32 %v1544, 0.5
      %v1546 = vmul.f32 %v1545, %v1292
      %1548 = vrot.lane.b32.xlu0 %v1543, 64
      %v1549 = vpop.permute.xlu0 %1548
      %v1551 = vmul.f32 %v1545, %v1549
      %1553 = vrot.lane.b32.xlu0 %v1551, 32
      %v1554 = vpop.permute.xlu0 %1553
      %v1556 = vadd.f32 %v1546, %v1554
      %v1557 = vtanh.pop %v1556
      %1559 = vrot.lane.b32.xlu0 %v1557, 64
      %v1560 = vpop.permute.xlu0 %1559
      %v1562 = vmul.f32 %v1545, %v1560
      %1563 = vmatprep.subr.mxu0 0.0
      %1564 = vmatpush1.msra.mxu0 %v491
      %1565 = vmatprep.subr.mxu0 0.0
      %1566 = vmatpush1.msra.mxu0 %v492
      %1567 = vmatprep.subr.mxu0 0.0
      %1568 = vmatpush1.msra.mxu0 %v493
      %1569 = vmatprep.subr.mxu0 0.0
      %1570 = vmatpush1.msra.mxu0 %v494
      %1571 = vmatprep.subr.mxu0 0.0
      %1572 = vmatpush1.msra.mxu0 0.0
      %1573 = vmatprep.subr.mxu0 0.0
      %1574 = vmatpush1.msra.mxu0 0.0
      %1575 = vmatprep.subr.mxu0 0.0
      %1576 = vmatpush1.msra.mxu0 0.0
      %1577 = vmatprep.subr.mxu0 0.0
      %1578 = vmatpush1.msra.mxu0 0.0
      %1579 = vmatprep.subr.mxu0 0.0
      %1580 = vmatpush1.msra.mxu0 0.0
      %1581 = vmatprep.subr.mxu0 0.0
      %1582 = vmatpush1.msra.mxu0 0.0
      %1583 = vmatprep.subr.mxu0 0.0
      %1584 = vmatpush1.msra.mxu0 0.0
      %1585 = vmatprep.subr.mxu0 0.0
      %1586 = vmatpush1.msra.mxu0 0.0
      %1587 = vmatprep.subr.mxu0 0.0
      %1588 = vmatpush1.msra.mxu0 0.0
      %1589 = vmatprep.subr.mxu0 0.0
      %1590 = vmatpush1.msra.mxu0 0.0
      %1591 = vmatprep.subr.mxu0 0.0
      %1592 = vmatpush1.msra.mxu0 0.0
      %1593 = vmatprep.subr.mxu0 0.0
      %1594 = vmatpush1.msra.mxu0 0.0
      %1595 = vmatprep.subr.mxu0 0.0
      %1596 = vmatpush1.msra.mxu0 0.0
      %1597 = vmatprep.subr.mxu0 0.0
      %1598 = vmatpush1.msra.mxu0 0.0
      %1599 = vmatprep.subr.mxu0 0.0
      %1600 = vmatpush1.msra.mxu0 0.0
      %1601 = vmatprep.subr.mxu0 0.0
      %1602 = vmatpush1.msra.mxu0 0.0
      %1603 = vmatprep.subr.mxu0 0.0
      %1604 = vmatpush1.msra.mxu0 0.0
      %1605 = vmatprep.subr.mxu0 0.0
      %1606 = vmatpush1.msra.mxu0 0.0
      %1607 = vmatprep.subr.mxu0 0.0
      %1608 = vmatpush1.msra.mxu0 0.0
      %1609 = vmatprep.subr.mxu0 0.0
      %1610 = vmatpush1.msra.mxu0 0.0
      %1611 = vmatprep.subr.mxu0 0.0
      %1612 = vmatpush1.msra.mxu0 0.0
      %1613 = vmatprep.subr.mxu0 0.0
      %1614 = vmatpush1.msra.mxu0 0.0
      %1615 = vmatprep.subr.mxu0 0.0
      %1616 = vmatpush1.msra.mxu0 0.0
      %1617 = vmatprep.subr.mxu0 0.0
      %1618 = vmatpush1.msra.mxu0 0.0
      %1619 = vmatprep.subr.mxu0 0.0
      %1620 = vmatpush1.msra.mxu0 0.0
      %1621 = vmatprep.subr.mxu0 0.0
      %1622 = vmatpush1.msra.mxu0 0.0
      %1623 = vmatprep.subr.mxu0 0.0
      %1624 = vmatpush1.msra.mxu0 0.0
      %1625 = vmatprep.subr.mxu0 0.0
      %1626 = vmatpush1.msra.mxu0 0.0
      %1627 = vmatprep.mubr.f32.mxu0 0.0
      %1628 = vmatmul.mubr.f32.gmra.mrb[0].mxu0 %v1469
      %v1629 = vpop.f32.mrb[0].mxu0
      %v1630 = vadd.f32 0.0, %v1629
      %v1631 = vpop.f32.mrb[0].mxu0
      %1632 = vdwg.mxu0
      %v1633 = vadd.f32 %v473, %v1630
      %v1634 = vmul.f32 %v1633, 0.5
      %v1635 = vtanh.pop %v1634
      %v1636 = vmul.f32 %v1635, 0.5
      %v1637 = vadd.f32 %v1636, 0.5
      %v1638 = vmul.f32 %v1637, %v1384
      %1640 = vrot.lane.b32.xlu0 %v1635, 64
      %v1641 = vpop.permute.xlu0 %1640
      %v1643 = vmul.f32 %v1637, %v1641
      %1645 = vrot.lane.b32.xlu0 %v1643, 32
      %v1646 = vpop.permute.xlu0 %1645
      %v1648 = vadd.f32 %v1638, %v1646
      %v1649 = vtanh.pop %v1648
      %1651 = vrot.lane.b32.xlu0 %v1649, 64
      %v1652 = vpop.permute.xlu0 %1651
      %v1654 = vmul.f32 %v1637, %v1652
      %1656 = vrot.lane.b32.xlu0 %v1562, 32
      %v1657 = vpop.permute.xlu0 %1656
      %v1658 = vsel %vm504, %v1657, 0
      %1660 = vmatprep.subr.mxu0 0.0
      %1661 = vmatpush1.msra.mxu0 %v499
      %1662 = vmatprep.subr.mxu0 0.0
      %1663 = vmatpush1.msra.mxu0 %v500
      %1664 = vmatprep.subr.mxu0 0.0
      %1665 = vmatpush1.msra.mxu0 %v501
      %1666 = vmatprep.subr.mxu0 0.0
      %1667 = vmatpush1.msra.mxu0 %v502
      %1668 = vmatprep.subr.mxu0 0.0
      %1669 = vmatpush1.msra.mxu0 0.0
      %1670 = vmatprep.subr.mxu0 0.0
      %1671 = vmatpush1.msra.mxu0 0.0
      %1672 = vmatprep.subr.mxu0 0.0
      %1673 = vmatpush1.msra.mxu0 0.0
      %1674 = vmatprep.subr.mxu0 0.0
      %1675 = vmatpush1.msra.mxu0 0.0
      %1676 = vmatprep.subr.mxu0 0.0
      %1677 = vmatpush1.msra.mxu0 0.0
      %1678 = vmatprep.subr.mxu0 0.0
      %1679 = vmatpush1.msra.mxu0 0.0
      %1680 = vmatprep.subr.mxu0 0.0
      %1681 = vmatpush1.msra.mxu0 0.0
      %1682 = vmatprep.subr.mxu0 0.0
      %1683 = vmatpush1.msra.mxu0 0.0
      %1684 = vmatprep.subr.mxu0 0.0
      %1685 = vmatpush1.msra.mxu0 0.0
      %1686 = vmatprep.subr.mxu0 0.0
      %1687 = vmatpush1.msra.mxu0 0.0
      %1688 = vmatprep.subr.mxu0 0.0
      %1689 = vmatpush1.msra.mxu0 0.0
      %1690 = vmatprep.subr.mxu0 0.0
      %1691 = vmatpush1.msra.mxu0 0.0
      %1692 = vmatprep.subr.mxu0 0.0
      %1693 = vmatpush1.msra.mxu0 0.0
      %1694 = vmatprep.subr.mxu0 0.0
      %1695 = vmatpush1.msra.mxu0 0.0
      %1696 = vmatprep.subr.mxu0 0.0
      %1697 = vmatpush1.msra.mxu0 0.0
      %1698 = vmatprep.subr.mxu0 0.0
      %1699 = vmatpush1.msra.mxu0 0.0
      %1700 = vmatprep.subr.mxu0 0.0
      %1701 = vmatpush1.msra.mxu0 0.0
      %1702 = vmatprep.subr.mxu0 0.0
      %1703 = vmatpush1.msra.mxu0 0.0
      %1704 = vmatprep.subr.mxu0 0.0
      %1705 = vmatpush1.msra.mxu0 0.0
      %1706 = vmatprep.subr.mxu0 0.0
      %1707 = vmatpush1.msra.mxu0 0.0
      %1708 = vmatprep.subr.mxu0 0.0
      %1709 = vmatpush1.msra.mxu0 0.0
      %1710 = vmatprep.subr.mxu0 0.0
      %1711 = vmatpush1.msra.mxu0 0.0
      %1712 = vmatprep.subr.mxu0 0.0
      %1713 = vmatpush1.msra.mxu0 0.0
      %1714 = vmatprep.subr.mxu0 0.0
      %1715 = vmatpush1.msra.mxu0 0.0
      %1716 = vmatprep.subr.mxu0 0.0
      %1717 = vmatpush1.msra.mxu0 0.0
      %1718 = vmatprep.subr.mxu0 0.0
      %1719 = vmatpush1.msra.mxu0 0.0
      %1720 = vmatprep.subr.mxu0 0.0
      %1721 = vmatpush1.msra.mxu0 0.0
      %1722 = vmatprep.subr.mxu0 0.0
      %1723 = vmatpush1.msra.mxu0 0.0
      %1724 = vmatprep.mubr.f32.mxu0 0.0
      %1725 = vmatmul.mubr.f32.gmra.mrb[0].mxu0 %v1658
      %v1726 = vpop.f32.mrb[0].mxu0
      %v1727 = vadd.f32 0.0, %v1726
      %v1728 = vpop.f32.mrb[0].mxu0
      %1729 = vdwg.mxu0
      %1731 = vrot.lane.b32.xlu0 %v1654, 32
      %v1732 = vpop.permute.xlu0 %1731
      %v1733 = vsel %vm504, %v1732, 0
      %1735 = vmatprep.subr.mxu0 0.0
      %1736 = vmatpush1.msra.mxu0 %v495
      %1737 = vmatprep.subr.mxu0 0.0
      %1738 = vmatpush1.msra.mxu0 %v496
      %1739 = vmatprep.subr.mxu0 0.0
      %1740 = vmatpush1.msra.mxu0 %v497
      %1741 = vmatprep.subr.mxu0 0.0
      %1742 = vmatpush1.msra.mxu0 %v498
      %1743 = vmatprep.subr.mxu0 0.0
      %1744 = vmatpush1.msra.mxu0 0.0
      %1745 = vmatprep.subr.mxu0 0.0
      %1746 = vmatpush1.msra.mxu0 0.0
      %1747 = vmatprep.subr.mxu0 0.0
      %1748 = vmatpush1.msra.mxu0 0.0
      %1749 = vmatprep.subr.mxu0 0.0
      %1750 = vmatpush1.msra.mxu0 0.0
      %1751 = vmatprep.subr.mxu0 0.0
      %1752 = vmatpush1.msra.mxu0 0.0
      %1753 = vmatprep.subr.mxu0 0.0
      %1754 = vmatpush1.msra.mxu0 0.0
      %1755 = vmatprep.subr.mxu0 0.0
      %1756 = vmatpush1.msra.mxu0 0.0
      %1757 = vmatprep.subr.mxu0 0.0
      %1758 = vmatpush1.msra.mxu0 0.0
      %1759 = vmatprep.subr.mxu0 0.0
      %1760 = vmatpush1.msra.mxu0 0.0
      %1761 = vmatprep.subr.mxu0 0.0
      %1762 = vmatpush1.msra.mxu0 0.0
      %1763 = vmatprep.subr.mxu0 0.0
      %1764 = vmatpush1.msra.mxu0 0.0
      %1765 = vmatprep.subr.mxu0 0.0
      %1766 = vmatpush1.msra.mxu0 0.0
      %1767 = vmatprep.subr.mxu0 0.0
      %1768 = vmatpush1.msra.mxu0 0.0
      %1769 = vmatprep.subr.mxu0 0.0
      %1770 = vmatpush1.msra.mxu0 0.0
      %1771 = vmatprep.subr.mxu0 0.0
      %1772 = vmatpush1.msra.mxu0 0.0
      %1773 = vmatprep.subr.mxu0 0.0
      %1774 = vmatpush1.msra.mxu0 0.0
      %1775 = vmatprep.subr.mxu0 0.0
      %1776 = vmatpush1.msra.mxu0 0.0
      %1777 = vmatprep.subr.mxu0 0.0
      %1778 = vmatpush1.msra.mxu0 0.0
      %1779 = vmatprep.subr.mxu0 0.0
      %1780 = vmatpush1.msra.mxu0 0.0
      %1781 = vmatprep.subr.mxu0 0.0
      %1782 = vmatpush1.msra.mxu0 0.0
      %1783 = vmatprep.subr.mxu0 0.0
      %1784 = vmatpush1.msra.mxu0 0.0
      %1785 = vmatprep.subr.mxu0 0.0
      %1786 = vmatpush1.msra.mxu0 0.0
      %1787 = vmatprep.subr.mxu0 0.0
      %1788 = vmatpush1.msra.mxu0 0.0
      %1789 = vmatprep.subr.mxu0 0.0
      %1790 = vmatpush1.msra.mxu0 0.0
      %1791 = vmatprep.subr.mxu0 0.0
      %1792 = vmatpush1.msra.mxu0 0.0
      %1793 = vmatprep.subr.mxu0 0.0
      %1794 = vmatpush1.msra.mxu0 0.0
      %1795 = vmatprep.subr.mxu0 0.0
      %1796 = vmatpush1.msra.mxu0 0.0
      %1797 = vmatprep.subr.mxu0 0.0
      %1798 = vmatpush1.msra.mxu0 0.0
      %1799 = vmatprep.mubr.f32.mxu0 0.0
      %1800 = vmatmul.mubr.f32.gmra.mrb[0].mxu0 %v1733
      %v1801 = vpop.f32.mrb[0].mxu0
      %v1802 = vadd.f32 %v1727, %v1801
      %v1803 = vpop.f32.mrb[0].mxu0
      %1804 = vdwg.mxu0
      %v1805 = vadd.f32 %v1802, %v748
      %v1806 = vmul.f32 %v1805, 0.5
      %v1807 = vtanh.pop %v1806
      %v1808 = vmul.f32 %v1807, 0.5
      %v1809 = vadd.f32 %v1808, 0.5
      %v1810 = vmul.f32 %v1809, %v1556
      %1812 = vrot.lane.b32.xlu0 %v1807, 64
      %v1813 = vpop.permute.xlu0 %1812
      %v1815 = vmul.f32 %v1809, %v1813
      %1817 = vrot.lane.b32.xlu0 %v1815, 32
      %v1818 = vpop.permute.xlu0 %1817
      %v1820 = vadd.f32 %v1810, %v1818
      %v1821 = vtanh.pop %v1820
      %1823 = vrot.lane.b32.xlu0 %v1821, 64
      %v1824 = vpop.permute.xlu0 %1823
      %v1826 = vmul.f32 %v1809, %v1824
      %1827 = vmatprep.subr.mxu0 0.0
      %1828 = vmatpush1.msra.mxu0 %v491
      %1829 = vmatprep.subr.mxu0 0.0
      %1830 = vmatpush1.msra.mxu0 %v492
      %1831 = vmatprep.subr.mxu0 0.0
      %1832 = vmatpush1.msra.mxu0 %v493
      %1833 = vmatprep.subr.mxu0 0.0
      %1834 = vmatpush1.msra.mxu0 %v494
      %1835 = vmatprep.subr.mxu0 0.0
      %1836 = vmatpush1.msra.mxu0 0.0
      %1837 = vmatprep.subr.mxu0 0.0
      %1838 = vmatpush1.msra.mxu0 0.0
      %1839 = vmatprep.subr.mxu0 0.0
      %1840 = vmatpush1.msra.mxu0 0.0
      %1841 = vmatprep.subr.mxu0 0.0
      %1842 = vmatpush1.msra.mxu0 0.0
      %1843 = vmatprep.subr.mxu0 0.0
      %1844 = vmatpush1.msra.mxu0 0.0
      %1845 = vmatprep.subr.mxu0 0.0
      %1846 = vmatpush1.msra.mxu0 0.0
      %1847 = vmatprep.subr.mxu0 0.0
      %1848 = vmatpush1.msra.mxu0 0.0
      %1849 = vmatprep.subr.mxu0 0.0
      %1850 = vmatpush1.msra.mxu0 0.0
      %1851 = vmatprep.subr.mxu0 0.0
      %1852 = vmatpush1.msra.mxu0 0.0
      %1853 = vmatprep.subr.mxu0 0.0
      %1854 = vmatpush1.msra.mxu0 0.0
      %1855 = vmatprep.subr.mxu0 0.0
      %1856 = vmatpush1.msra.mxu0 0.0
      %1857 = vmatprep.subr.mxu0 0.0
      %1858 = vmatpush1.msra.mxu0 0.0
      %1859 = vmatprep.subr.mxu0 0.0
      %1860 = vmatpush1.msra.mxu0 0.0
      %1861 = vmatprep.subr.mxu0 0.0
      %1862 = vmatpush1.msra.mxu0 0.0
      %1863 = vmatprep.subr.mxu0 0.0
      %1864 = vmatpush1.msra.mxu0 0.0
      %1865 = vmatprep.subr.mxu0 0.0
      %1866 = vmatpush1.msra.mxu0 0.0
      %1867 = vmatprep.subr.mxu0 0.0
      %1868 = vmatpush1.msra.mxu0 0.0
      %1869 = vmatprep.subr.mxu0 0.0
      %1870 = vmatpush1.msra.mxu0 0.0
      %1871 = vmatprep.subr.mxu0 0.0
      %1872 = vmatpush1.msra.mxu0 0.0
      %1873 = vmatprep.subr.mxu0 0.0
      %1874 = vmatpush1.msra.mxu0 0.0
      %1875 = vmatprep.subr.mxu0 0.0
      %1876 = vmatpush1.msra.mxu0 0.0
      %1877 = vmatprep.subr.mxu0 0.0
      %1878 = vmatpush1.msra.mxu0 0.0
      %1879 = vmatprep.subr.mxu0 0.0
      %1880 = vmatpush1.msra.mxu0 0.0
      %1881 = vmatprep.subr.mxu0 0.0
      %1882 = vmatpush1.msra.mxu0 0.0
      %1883 = vmatprep.subr.mxu0 0.0
      %1884 = vmatpush1.msra.mxu0 0.0
      %1885 = vmatprep.subr.mxu0 0.0
      %1886 = vmatpush1.msra.mxu0 0.0
      %1887 = vmatprep.subr.mxu0 0.0
      %1888 = vmatpush1.msra.mxu0 0.0
      %1889 = vmatprep.subr.mxu0 0.0
      %1890 = vmatpush1.msra.mxu0 0.0
      %1891 = vmatprep.mubr.f32.mxu0 0.0
      %1892 = vmatmul.mubr.f32.gmra.mrb[0].mxu0 %v1733
      %v1893 = vpop.f32.mrb[0].mxu0
      %v1894 = vadd.f32 0.0, %v1893
      %v1895 = vpop.f32.mrb[0].mxu0
      %1896 = vdwg.mxu0
      %v1897 = vadd.f32 %v478, %v1894
      %v1898 = vmul.f32 %v1897, 0.5
      %v1899 = vtanh.pop %v1898
      %v1900 = vmul.f32 %v1899, 0.5
      %v1901 = vadd.f32 %v1900, 0.5
      %v1902 = vmul.f32 %v1901, %v1648
      %1904 = vrot.lane.b32.xlu0 %v1899, 64
      %v1905 = vpop.permute.xlu0 %1904
      %v1907 = vmul.f32 %v1901, %v1905
      %1909 = vrot.lane.b32.xlu0 %v1907, 32
      %v1910 = vpop.permute.xlu0 %1909
      %v1912 = vadd.f32 %v1902, %v1910
      %v1913 = vtanh.pop %v1912
      %1915 = vrot.lane.b32.xlu0 %v1913, 64
      %v1916 = vpop.permute.xlu0 %1915
      %v1918 = vmul.f32 %v1901, %v1916
      %1920 = vrot.lane.b32.xlu0 %v1826, 32
      %v1921 = vpop.permute.xlu0 %1920
      %v1922 = vsel %vm504, %v1921, 0
      %1924 = vmatprep.subr.mxu0 0.0
      %1925 = vmatpush1.msra.mxu0 %v499
      %1926 = vmatprep.subr.mxu0 0.0
      %1927 = vmatpush1.msra.mxu0 %v500
      %1928 = vmatprep.subr.mxu0 0.0
      %1929 = vmatpush1.msra.mxu0 %v501
      %1930 = vmatprep.subr.mxu0 0.0
      %1931 = vmatpush1.msra.mxu0 %v502
      %1932 = vmatprep.subr.mxu0 0.0
      %1933 = vmatpush1.msra.mxu0 0.0
      %1934 = vmatprep.subr.mxu0 0.0
      %1935 = vmatpush1.msra.mxu0 0.0
      %1936 = vmatprep.subr.mxu0 0.0
      %1937 = vmatpush1.msra.mxu0 0.0
      %1938 = vmatprep.subr.mxu0 0.0
      %1939 = vmatpush1.msra.mxu0 0.0
      %1940 = vmatprep.subr.mxu0 0.0
      %1941 = vmatpush1.msra.mxu0 0.0
      %1942 = vmatprep.subr.mxu0 0.0
      %1943 = vmatpush1.msra.mxu0 0.0
      %1944 = vmatprep.subr.mxu0 0.0
      %1945 = vmatpush1.msra.mxu0 0.0
      %1946 = vmatprep.subr.mxu0 0.0
      %1947 = vmatpush1.msra.mxu0 0.0
      %1948 = vmatprep.subr.mxu0 0.0
      %1949 = vmatpush1.msra.mxu0 0.0
      %1950 = vmatprep.subr.mxu0 0.0
      %1951 = vmatpush1.msra.mxu0 0.0
      %1952 = vmatprep.subr.mxu0 0.0
      %1953 = vmatpush1.msra.mxu0 0.0
      %1954 = vmatprep.subr.mxu0 0.0
      %1955 = vmatpush1.msra.mxu0 0.0
      %1956 = vmatprep.subr.mxu0 0.0
      %1957 = vmatpush1.msra.mxu0 0.0
      %1958 = vmatprep.subr.mxu0 0.0
      %1959 = vmatpush1.msra.mxu0 0.0
      %1960 = vmatprep.subr.mxu0 0.0
      %1961 = vmatpush1.msra.mxu0 0.0
      %1962 = vmatprep.subr.mxu0 0.0
      %1963 = vmatpush1.msra.mxu0 0.0
      %1964 = vmatprep.subr.mxu0 0.0
      %1965 = vmatpush1.msra.mxu0 0.0
      %1966 = vmatprep.subr.mxu0 0.0
      %1967 = vmatpush1.msra.mxu0 0.0
      %1968 = vmatprep.subr.mxu0 0.0
      %1969 = vmatpush1.msra.mxu0 0.0
      %1970 = vmatprep.subr.mxu0 0.0
      %1971 = vmatpush1.msra.mxu0 0.0
      %1972 = vmatprep.subr.mxu0 0.0
      %1973 = vmatpush1.msra.mxu0 0.0
      %1974 = vmatprep.subr.mxu0 0.0
      %1975 = vmatpush1.msra.mxu0 0.0
      %1976 = vmatprep.subr.mxu0 0.0
      %1977 = vmatpush1.msra.mxu0 0.0
      %1978 = vmatprep.subr.mxu0 0.0
      %1979 = vmatpush1.msra.mxu0 0.0
      %1980 = vmatprep.subr.mxu0 0.0
      %1981 = vmatpush1.msra.mxu0 0.0
      %1982 = vmatprep.subr.mxu0 0.0
      %1983 = vmatpush1.msra.mxu0 0.0
      %1984 = vmatprep.subr.mxu0 0.0
      %1985 = vmatpush1.msra.mxu0 0.0
      %1986 = vmatprep.subr.mxu0 0.0
      %1987 = vmatpush1.msra.mxu0 0.0
      %1988 = vmatprep.mubr.f32.mxu0 0.0
      %1989 = vmatmul.mubr.f32.gmra.mrb[0].mxu0 %v1922
      %v1990 = vpop.f32.mrb[0].mxu0
      %v1991 = vadd.f32 0.0, %v1990
      %v1992 = vpop.f32.mrb[0].mxu0
      %1993 = vdwg.mxu0
      %1995 = vrot.lane.b32.xlu0 %v1918, 32
      %v1996 = vpop.permute.xlu0 %1995
      %v1997 = vsel %vm504, %v1996, 0
      %1999 = vmatprep.subr.mxu0 0.0
      %2000 = vmatpush1.msra.mxu0 %v495
      %2001 = vmatprep.subr.mxu0 0.0
      %2002 = vmatpush1.msra.mxu0 %v496
      %2003 = vmatprep.subr.mxu0 0.0
      %2004 = vmatpush1.msra.mxu0 %v497
      %2005 = vmatprep.subr.mxu0 0.0
      %2006 = vmatpush1.msra.mxu0 %v498
      %2007 = vmatprep.subr.mxu0 0.0
      %2008 = vmatpush1.msra.mxu0 0.0
      %2009 = vmatprep.subr.mxu0 0.0
      %2010 = vmatpush1.msra.mxu0 0.0
      %2011 = vmatprep.subr.mxu0 0.0
      %2012 = vmatpush1.msra.mxu0 0.0
      %2013 = vmatprep.subr.mxu0 0.0
      %2014 = vmatpush1.msra.mxu0 0.0
      %2015 = vmatprep.subr.mxu0 0.0
      %2016 = vmatpush1.msra.mxu0 0.0
      %2017 = vmatprep.subr.mxu0 0.0
      %2018 = vmatpush1.msra.mxu0 0.0
      %2019 = vmatprep.subr.mxu0 0.0
      %2020 = vmatpush1.msra.mxu0 0.0
      %2021 = vmatprep.subr.mxu0 0.0
      %2022 = vmatpush1.msra.mxu0 0.0
      %2023 = vmatprep.subr.mxu0 0.0
      %2024 = vmatpush1.msra.mxu0 0.0
      %2025 = vmatprep.subr.mxu0 0.0
      %2026 = vmatpush1.msra.mxu0 0.0
      %2027 = vmatprep.subr.mxu0 0.0
      %2028 = vmatpush1.msra.mxu0 0.0
      %2029 = vmatprep.subr.mxu0 0.0
      %2030 = vmatpush1.msra.mxu0 0.0
      %2031 = vmatprep.subr.mxu0 0.0
      %2032 = vmatpush1.msra.mxu0 0.0
      %2033 = vmatprep.subr.mxu0 0.0
      %2034 = vmatpush1.msra.mxu0 0.0
      %2035 = vmatprep.subr.mxu0 0.0
      %2036 = vmatpush1.msra.mxu0 0.0
      %2037 = vmatprep.subr.mxu0 0.0
      %2038 = vmatpush1.msra.mxu0 0.0
      %2039 = vmatprep.subr.mxu0 0.0
      %2040 = vmatpush1.msra.mxu0 0.0
      %2041 = vmatprep.subr.mxu0 0.0
      %2042 = vmatpush1.msra.mxu0 0.0
      %2043 = vmatprep.subr.mxu0 0.0
      %2044 = vmatpush1.msra.mxu0 0.0
      %2045 = vmatprep.subr.mxu0 0.0
      %2046 = vmatpush1.msra.mxu0 0.0
      %2047 = vmatprep.subr.mxu0 0.0
      %2048 = vmatpush1.msra.mxu0 0.0
      %2049 = vmatprep.subr.mxu0 0.0
      %2050 = vmatpush1.msra.mxu0 0.0
      %2051 = vmatprep.subr.mxu0 0.0
      %2052 = vmatpush1.msra.mxu0 0.0
      %2053 = vmatprep.subr.mxu0 0.0
      %2054 = vmatpush1.msra.mxu0 0.0
      %2055 = vmatprep.subr.mxu0 0.0
      %2056 = vmatpush1.msra.mxu0 0.0
      %2057 = vmatprep.subr.mxu0 0.0
      %2058 = vmatpush1.msra.mxu0 0.0
      %2059 = vmatprep.subr.mxu0 0.0
      %2060 = vmatpush1.msra.mxu0 0.0
      %2061 = vmatprep.subr.mxu0 0.0
      %2062 = vmatpush1.msra.mxu0 0.0
      %2063 = vmatprep.mubr.f32.mxu0 0.0
      %2064 = vmatmul.mubr.f32.gmra.mrb[0].mxu0 %v1997
      %v2065 = vpop.f32.mrb[0].mxu0
      %v2066 = vadd.f32 %v1991, %v2065
      %v2067 = vpop.f32.mrb[0].mxu0
      %2068 = vdwg.mxu0
      %v2069 = vadd.f32 %v2066, %v748
      %v2070 = vmul.f32 %v2069, 0.5
      %v2071 = vtanh.pop %v2070
      %v2072 = vmul.f32 %v2071, 0.5
      %v2073 = vadd.f32 %v2072, 0.5
      %v2074 = vmul.f32 %v2073, %v1820
      %2076 = vrot.lane.b32.xlu0 %v2071, 64
      %v2077 = vpop.permute.xlu0 %2076
      %v2079 = vmul.f32 %v2073, %v2077
      %2081 = vrot.lane.b32.xlu0 %v2079, 32
      %v2082 = vpop.permute.xlu0 %2081
      %v2084 = vadd.f32 %v2074, %v2082
      %v2085 = vtanh.pop %v2084
      %2087 = vrot.lane.b32.xlu0 %v2085, 64
      %v2088 = vpop.permute.xlu0 %2087
      %v2090 = vmul.f32 %v2073, %v2088
      %2091 = vmatprep.subr.mxu0 0.0
      %2092 = vmatpush1.msra.mxu0 %v491
      %2093 = vmatprep.subr.mxu0 0.0
      %2094 = vmatpush1.msra.mxu0 %v492
      %2095 = vmatprep.subr.mxu0 0.0
      %2096 = vmatpush1.msra.mxu0 %v493
      %2097 = vmatprep.subr.mxu0 0.0
      %2098 = vmatpush1.msra.mxu0 %v494
      %2099 = vmatprep.subr.mxu0 0.0
      %2100 = vmatpush1.msra.mxu0 0.0
      %2101 = vmatprep.subr.mxu0 0.0
      %2102 = vmatpush1.msra.mxu0 0.0
      %2103 = vmatprep.subr.mxu0 0.0
      %2104 = vmatpush1.msra.mxu0 0.0
      %2105 = vmatprep.subr.mxu0 0.0
      %2106 = vmatpush1.msra.mxu0 0.0
      %2107 = vmatprep.subr.mxu0 0.0
      %2108 = vmatpush1.msra.mxu0 0.0
      %2109 = vmatprep.subr.mxu0 0.0
      %2110 = vmatpush1.msra.mxu0 0.0
      %2111 = vmatprep.subr.mxu0 0.0
      %2112 = vmatpush1.msra.mxu0 0.0
      %2113 = vmatprep.subr.mxu0 0.0
      %2114 = vmatpush1.msra.mxu0 0.0
      %2115 = vmatprep.subr.mxu0 0.0
      %2116 = vmatpush1.msra.mxu0 0.0
      %2117 = vmatprep.subr.mxu0 0.0
      %2118 = vmatpush1.msra.mxu0 0.0
      %2119 = vmatprep.subr.mxu0 0.0
      %2120 = vmatpush1.msra.mxu0 0.0
      %2121 = vmatprep.subr.mxu0 0.0
      %2122 = vmatpush1.msra.mxu0 0.0
      %2123 = vmatprep.subr.mxu0 0.0
      %2124 = vmatpush1.msra.mxu0 0.0
      %2125 = vmatprep.subr.mxu0 0.0
      %2126 = vmatpush1.msra.mxu0 0.0
      %2127 = vmatprep.subr.mxu0 0.0
      %2128 = vmatpush1.msra.mxu0 0.0
      %2129 = vmatprep.subr.mxu0 0.0
      %2130 = vmatpush1.msra.mxu0 0.0
      %2131 = vmatprep.subr.mxu0 0.0
      %2132 = vmatpush1.msra.mxu0 0.0
      %2133 = vmatprep.subr.mxu0 0.0
      %2134 = vmatpush1.msra.mxu0 0.0
      %2135 = vmatprep.subr.mxu0 0.0
      %2136 = vmatpush1.msra.mxu0 0.0
      %2137 = vmatprep.subr.mxu0 0.0
      %2138 = vmatpush1.msra.mxu0 0.0
      %2139 = vmatprep.subr.mxu0 0.0
      %2140 = vmatpush1.msra.mxu0 0.0
      %2141 = vmatprep.subr.mxu0 0.0
      %2142 = vmatpush1.msra.mxu0 0.0
      %2143 = vmatprep.subr.mxu0 0.0
      %2144 = vmatpush1.msra.mxu0 0.0
      %2145 = vmatprep.subr.mxu0 0.0
      %2146 = vmatpush1.msra.mxu0 0.0
      %2147 = vmatprep.subr.mxu0 0.0
      %2148 = vmatpush1.msra.mxu0 0.0
      %2149 = vmatprep.subr.mxu0 0.0
      %2150 = vmatpush1.msra.mxu0 0.0
      %2151 = vmatprep.subr.mxu0 0.0
      %2152 = vmatpush1.msra.mxu0 0.0
      %2153 = vmatprep.subr.mxu0 0.0
      %2154 = vmatpush1.msra.mxu0 0.0
      %2155 = vmatprep.mubr.f32.mxu0 0.0
      %2156 = vmatmul.mubr.f32.gmra.mrb[0].mxu0 %v1997
      %v2157 = vpop.f32.mrb[0].mxu0
      %v2158 = vadd.f32 0.0, %v2157
      %v2159 = vpop.f32.mrb[0].mxu0
      %2160 = vdwg.mxu0
      %v2161 = vadd.f32 %v483, %v2158
      %v2162 = vmul.f32 %v2161, 0.5
      %v2163 = vtanh.pop %v2162
      %v2164 = vmul.f32 %v2163, 0.5
      %v2165 = vadd.f32 %v2164, 0.5
      %v2166 = vmul.f32 %v2165, %v1912
      %2168 = vrot.lane.b32.xlu0 %v2163, 64
      %v2169 = vpop.permute.xlu0 %2168
      %v2171 = vmul.f32 %v2165, %v2169
      %2173 = vrot.lane.b32.xlu0 %v2171, 32
      %v2174 = vpop.permute.xlu0 %2173
      %v2176 = vadd.f32 %v2166, %v2174
      %v2177 = vtanh.pop %v2176
      %2179 = vrot.lane.b32.xlu0 %v2177, 64
      %v2180 = vpop.permute.xlu0 %2179
      %v2182 = vmul.f32 %v2165, %v2180
      %2184 = vrot.lane.b32.xlu0 %v2090, 32
      %v2185 = vpop.permute.xlu0 %2184
      %v2186 = vsel %vm504, %v2185, 0
      %2188 = vmatprep.subr.mxu0 0.0
      %2189 = vmatpush1.msra.mxu0 %v499
      %2190 = vmatprep.subr.mxu0 0.0
      %2191 = vmatpush1.msra.mxu0 %v500
      %2192 = vmatprep.subr.mxu0 0.0
      %2193 = vmatpush1.msra.mxu0 %v501
      %2194 = vmatprep.subr.mxu0 0.0
      %2195 = vmatpush1.msra.mxu0 %v502
      %2196 = vmatprep.subr.mxu0 0.0
      %2197 = vmatpush1.msra.mxu0 0.0
      %2198 = vmatprep.subr.mxu0 0.0
      %2199 = vmatpush1.msra.mxu0 0.0
      %2200 = vmatprep.subr.mxu0 0.0
      %2201 = vmatpush1.msra.mxu0 0.0
      %2202 = vmatprep.subr.mxu0 0.0
      %2203 = vmatpush1.msra.mxu0 0.0
      %2204 = vmatprep.subr.mxu0 0.0
      %2205 = vmatpush1.msra.mxu0 0.0
      %2206 = vmatprep.subr.mxu0 0.0
      %2207 = vmatpush1.msra.mxu0 0.0
      %2208 = vmatprep.subr.mxu0 0.0
      %2209 = vmatpush1.msra.mxu0 0.0
      %2210 = vmatprep.subr.mxu0 0.0
      %2211 = vmatpush1.msra.mxu0 0.0
      %2212 = vmatprep.subr.mxu0 0.0
      %2213 = vmatpush1.msra.mxu0 0.0
      %2214 = vmatprep.subr.mxu0 0.0
      %2215 = vmatpush1.msra.mxu0 0.0
      %2216 = vmatprep.subr.mxu0 0.0
      %2217 = vmatpush1.msra.mxu0 0.0
      %2218 = vmatprep.subr.mxu0 0.0
      %2219 = vmatpush1.msra.mxu0 0.0
      %2220 = vmatprep.subr.mxu0 0.0
      %2221 = vmatpush1.msra.mxu0 0.0
      %2222 = vmatprep.subr.mxu0 0.0
      %2223 = vmatpush1.msra.mxu0 0.0
      %2224 = vmatprep.subr.mxu0 0.0
      %2225 = vmatpush1.msra.mxu0 0.0
      %2226 = vmatprep.subr.mxu0 0.0
      %2227 = vmatpush1.msra.mxu0 0.0
      %2228 = vmatprep.subr.mxu0 0.0
      %2229 = vmatpush1.msra.mxu0 0.0
      %2230 = vmatprep.subr.mxu0 0.0
      %2231 = vmatpush1.msra.mxu0 0.0
      %2232 = vmatprep.subr.mxu0 0.0
      %2233 = vmatpush1.msra.mxu0 0.0
      %2234 = vmatprep.subr.mxu0 0.0
      %2235 = vmatpush1.msra.mxu0 0.0
      %2236 = vmatprep.subr.mxu0 0.0
      %2237 = vmatpush1.msra.mxu0 0.0
      %2238 = vmatprep.subr.mxu0 0.0
      %2239 = vmatpush1.msra.mxu0 0.0
      %2240 = vmatprep.subr.mxu0 0.0
      %2241 = vmatpush1.msra.mxu0 0.0
      %2242 = vmatprep.subr.mxu0 0.0
      %2243 = vmatpush1.msra.mxu0 0.0
      %2244 = vmatprep.subr.mxu0 0.0
      %2245 = vmatpush1.msra.mxu0 0.0
      %2246 = vmatprep.subr.mxu0 0.0
      %2247 = vmatpush1.msra.mxu0 0.0
      %2248 = vmatprep.subr.mxu0 0.0
      %2249 = vmatpush1.msra.mxu0 0.0
      %2250 = vmatprep.subr.mxu0 0.0
      %2251 = vmatpush1.msra.mxu0 0.0
      %2252 = vmatprep.mubr.f32.mxu0 0.0
      %2253 = vmatmul.mubr.f32.gmra.mrb[0].mxu0 %v2186
      %v2254 = vpop.f32.mrb[0].mxu0
      %v2255 = vadd.f32 0.0, %v2254
      %v2256 = vpop.f32.mrb[0].mxu0
      %2257 = vdwg.mxu0
      %2259 = vrot.lane.b32.xlu0 %v2182, 32
      %v2260 = vpop.permute.xlu0 %2259
      %v2261 = vsel %vm504, %v2260, 0
      %2263 = vmatprep.subr.mxu0 0.0
      %2264 = vmatpush1.msra.mxu0 %v495
      %2265 = vmatprep.subr.mxu0 0.0
      %2266 = vmatpush1.msra.mxu0 %v496
      %2267 = vmatprep.subr.mxu0 0.0
      %2268 = vmatpush1.msra.mxu0 %v497
      %2269 = vmatprep.subr.mxu0 0.0
      %2270 = vmatpush1.msra.mxu0 %v498
      %2271 = vmatprep.subr.mxu0 0.0
      %2272 = vmatpush1.msra.mxu0 0.0
      %2273 = vmatprep.subr.mxu0 0.0
      %2274 = vmatpush1.msra.mxu0 0.0
      %2275 = vmatprep.subr.mxu0 0.0
      %2276 = vmatpush1.msra.mxu0 0.0
      %2277 = vmatprep.subr.mxu0 0.0
      %2278 = vmatpush1.msra.mxu0 0.0
      %2279 = vmatprep.subr.mxu0 0.0
      %2280 = vmatpush1.msra.mxu0 0.0
      %2281 = vmatprep.subr.mxu0 0.0
      %2282 = vmatpush1.msra.mxu0 0.0
      %2283 = vmatprep.subr.mxu0 0.0
      %2284 = vmatpush1.msra.mxu0 0.0
      %2285 = vmatprep.subr.mxu0 0.0
      %2286 = vmatpush1.msra.mxu0 0.0
      %2287 = vmatprep.subr.mxu0 0.0
      %2288 = vmatpush1.msra.mxu0 0.0
      %2289 = vmatprep.subr.mxu0 0.0
      %2290 = vmatpush1.msra.mxu0 0.0
      %2291 = vmatprep.subr.mxu0 0.0
      %2292 = vmatpush1.msra.mxu0 0.0
      %2293 = vmatprep.subr.mxu0 0.0
      %2294 = vmatpush1.msra.mxu0 0.0
      %2295 = vmatprep.subr.mxu0 0.0
      %2296 = vmatpush1.msra.mxu0 0.0
      %2297 = vmatprep.subr.mxu0 0.0
      %2298 = vmatpush1.msra.mxu0 0.0
      %2299 = vmatprep.subr.mxu0 0.0
      %2300 = vmatpush1.msra.mxu0 0.0
      %2301 = vmatprep.subr.mxu0 0.0
      %2302 = vmatpush1.msra.mxu0 0.0
      %2303 = vmatprep.subr.mxu0 0.0
      %2304 = vmatpush1.msra.mxu0 0.0
      %2305 = vmatprep.subr.mxu0 0.0
      %2306 = vmatpush1.msra.mxu0 0.0
      %2307 = vmatprep.subr.mxu0 0.0
      %2308 = vmatpush1.msra.mxu0 0.0
      %2309 = vmatprep.subr.mxu0 0.0
      %2310 = vmatpush1.msra.mxu0 0.0
      %2311 = vmatprep.subr.mxu0 0.0
      %2312 = vmatpush1.msra.mxu0 0.0
      %2313 = vmatprep.subr.mxu0 0.0
      %2314 = vmatpush1.msra.mxu0 0.0
      %2315 = vmatprep.subr.mxu0 0.0
      %2316 = vmatpush1.msra.mxu0 0.0
      %2317 = vmatprep.subr.mxu0 0.0
      %2318 = vmatpush1.msra.mxu0 0.0
      %2319 = vmatprep.subr.mxu0 0.0
      %2320 = vmatpush1.msra.mxu0 0.0
      %2321 = vmatprep.subr.mxu0 0.0
      %2322 = vmatpush1.msra.mxu0 0.0
      %2323 = vmatprep.subr.mxu0 0.0
      %2324 = vmatpush1.msra.mxu0 0.0
      %2325 = vmatprep.subr.mxu0 0.0
      %2326 = vmatpush1.msra.mxu0 0.0
      %2327 = vmatprep.mubr.f32.mxu0 0.0
      %2328 = vmatmul.mubr.f32.gmra.mrb[0].mxu0 %v2261
      %v2329 = vpop.f32.mrb[0].mxu0
      %v2330 = vadd.f32 %v2255, %v2329
      %v2331 = vpop.f32.mrb[0].mxu0
      %2332 = vdwg.mxu0
      %v2333 = vadd.f32 %v2330, %v748
      %v2334 = vmul.f32 %v2333, 0.5
      %v2335 = vtanh.pop %v2334
      %v2336 = vmul.f32 %v2335, 0.5
      %v2337 = vadd.f32 %v2336, 0.5
      %v2338 = vmul.f32 %v2337, %v2084
      %2340 = vrot.lane.b32.xlu0 %v2335, 64
      %v2341 = vpop.permute.xlu0 %2340
      %v2343 = vmul.f32 %v2337, %v2341
      %2345 = vrot.lane.b32.xlu0 %v2343, 32
      %v2346 = vpop.permute.xlu0 %2345
      %v2348 = vadd.f32 %v2338, %v2346
      %v2349 = vtanh.pop %v2348
      %2351 = vrot.lane.b32.xlu0 %v2349, 64
      %v2352 = vpop.permute.xlu0 %2351
      %v2354 = vmul.f32 %v2337, %v2352
      %2355 = vmatprep.subr.mxu0 0.0
      %2356 = vmatpush1.msra.mxu0 %v491
      %2357 = vmatprep.subr.mxu0 0.0
      %2358 = vmatpush1.msra.mxu0 %v492
      %2359 = vmatprep.subr.mxu0 0.0
      %2360 = vmatpush1.msra.mxu0 %v493
      %2361 = vmatprep.subr.mxu0 0.0
      %2362 = vmatpush1.msra.mxu0 %v494
      %2363 = vmatprep.subr.mxu0 0.0
      %2364 = vmatpush1.msra.mxu0 0.0
      %2365 = vmatprep.subr.mxu0 0.0
      %2366 = vmatpush1.msra.mxu0 0.0
      %2367 = vmatprep.subr.mxu0 0.0
      %2368 = vmatpush1.msra.mxu0 0.0
      %2369 = vmatprep.subr.mxu0 0.0
      %2370 = vmatpush1.msra.mxu0 0.0
      %2371 = vmatprep.subr.mxu0 0.0
      %2372 = vmatpush1.msra.mxu0 0.0
      %2373 = vmatprep.subr.mxu0 0.0
      %2374 = vmatpush1.msra.mxu0 0.0
      %2375 = vmatprep.subr.mxu0 0.0
      %2376 = vmatpush1.msra.mxu0 0.0
      %2377 = vmatprep.subr.mxu0 0.0
      %2378 = vmatpush1.msra.mxu0 0.0
      %2379 = vmatprep.subr.mxu0 0.0
      %2380 = vmatpush1.msra.mxu0 0.0
      %2381 = vmatprep.subr.mxu0 0.0
      %2382 = vmatpush1.msra.mxu0 0.0
      %2383 = vmatprep.subr.mxu0 0.0
      %2384 = vmatpush1.msra.mxu0 0.0
      %2385 = vmatprep.subr.mxu0 0.0
      %2386 = vmatpush1.msra.mxu0 0.0
      %2387 = vmatprep.subr.mxu0 0.0
      %2388 = vmatpush1.msra.mxu0 0.0
      %2389 = vmatprep.subr.mxu0 0.0
      %2390 = vmatpush1.msra.mxu0 0.0
      %2391 = vmatprep.subr.mxu0 0.0
      %2392 = vmatpush1.msra.mxu0 0.0
      %2393 = vmatprep.subr.mxu0 0.0
      %2394 = vmatpush1.msra.mxu0 0.0
      %2395 = vmatprep.subr.mxu0 0.0
      %2396 = vmatpush1.msra.mxu0 0.0
      %2397 = vmatprep.subr.mxu0 0.0
      %2398 = vmatpush1.msra.mxu0 0.0
      %2399 = vmatprep.subr.mxu0 0.0
      %2400 = vmatpush1.msra.mxu0 0.0
      %2401 = vmatprep.subr.mxu0 0.0
      %2402 = vmatpush1.msra.mxu0 0.0
      %2403 = vmatprep.subr.mxu0 0.0
      %2404 = vmatpush1.msra.mxu0 0.0
      %2405 = vmatprep.subr.mxu0 0.0
      %2406 = vmatpush1.msra.mxu0 0.0
      %2407 = vmatprep.subr.mxu0 0.0
      %2408 = vmatpush1.msra.mxu0 0.0
      %2409 = vmatprep.subr.mxu0 0.0
      %2410 = vmatpush1.msra.mxu0 0.0
      %2411 = vmatprep.subr.mxu0 0.0
      %2412 = vmatpush1.msra.mxu0 0.0
      %2413 = vmatprep.subr.mxu0 0.0
      %2414 = vmatpush1.msra.mxu0 0.0
      %2415 = vmatprep.subr.mxu0 0.0
      %2416 = vmatpush1.msra.mxu0 0.0
      %2417 = vmatprep.subr.mxu0 0.0
      %2418 = vmatpush1.msra.mxu0 0.0
      %2419 = vmatprep.mubr.f32.mxu0 0.0
      %2420 = vmatmul.mubr.f32.gmra.mrb[0].mxu0 %v2261
      %v2421 = vpop.f32.mrb[0].mxu0
      %v2422 = vadd.f32 0.0, %v2421
      %v2423 = vpop.f32.mrb[0].mxu0
      %2424 = vdwg.mxu0
      %v2425 = vadd.f32 %v488, %v2422
      %v2426 = vmul.f32 %v2425, 0.5
      %v2427 = vtanh.pop %v2426
      %v2428 = vmul.f32 %v2427, 0.5
      %v2429 = vadd.f32 %v2428, 0.5
      %v2430 = vmul.f32 %v2429, %v2176
      %2432 = vrot.lane.b32.xlu0 %v2427, 64
      %v2433 = vpop.permute.xlu0 %2432
      %v2435 = vmul.f32 %v2429, %v2433
      %2437 = vrot.lane.b32.xlu0 %v2435, 32
      %v2438 = vpop.permute.xlu0 %2437
      %v2440 = vadd.f32 %v2430, %v2438
      %v2441 = vtanh.pop %v2440
      %2443 = vrot.lane.b32.xlu0 %v2441, 64
      %v2444 = vpop.permute.xlu0 %2443
      %v2446 = vmul.f32 %v2429, %v2444
      %2448 = vrot.lane.b32.xlu0 %v2354, 32
      %v2449 = vpop.permute.xlu0 %2448
      %v2450 = vsel %vm504, %v2449, 0
      %2452 = vmatprep.subr.mxu0 0.0
      %2453 = vmatpush1.msra.mxu0 %v499
      %2454 = vmatprep.subr.mxu0 0.0
      %2455 = vmatpush1.msra.mxu0 %v500
      %2456 = vmatprep.subr.mxu0 0.0
      %2457 = vmatpush1.msra.mxu0 %v501
      %2458 = vmatprep.subr.mxu0 0.0
      %2459 = vmatpush1.msra.mxu0 %v502
      %2460 = vmatprep.subr.mxu0 0.0
      %2461 = vmatpush1.msra.mxu0 0.0
      %2462 = vmatprep.subr.mxu0 0.0
      %2463 = vmatpush1.msra.mxu0 0.0
      %2464 = vmatprep.subr.mxu0 0.0
      %2465 = vmatpush1.msra.mxu0 0.0
      %2466 = vmatprep.subr.mxu0 0.0
      %2467 = vmatpush1.msra.mxu0 0.0
      %2468 = vmatprep.subr.mxu0 0.0
      %2469 = vmatpush1.msra.mxu0 0.0
      %2470 = vmatprep.subr.mxu0 0.0
      %2471 = vmatpush1.msra.mxu0 0.0
      %2472 = vmatprep.subr.mxu0 0.0
      %2473 = vmatpush1.msra.mxu0 0.0
      %2474 = vmatprep.subr.mxu0 0.0
      %2475 = vmatpush1.msra.mxu0 0.0
      %2476 = vmatprep.subr.mxu0 0.0
      %2477 = vmatpush1.msra.mxu0 0.0
      %2478 = vmatprep.subr.mxu0 0.0
      %2479 = vmatpush1.msra.mxu0 0.0
      %2480 = vmatprep.subr.mxu0 0.0
      %2481 = vmatpush1.msra.mxu0 0.0
      %2482 = vmatprep.subr.mxu0 0.0
      %2483 = vmatpush1.msra.mxu0 0.0
      %2484 = vmatprep.subr.mxu0 0.0
      %2485 = vmatpush1.msra.mxu0 0.0
      %2486 = vmatprep.subr.mxu0 0.0
      %2487 = vmatpush1.msra.mxu0 0.0
      %2488 = vmatprep.subr.mxu0 0.0
      %2489 = vmatpush1.msra.mxu0 0.0
      %2490 = vmatprep.subr.mxu0 0.0
      %2491 = vmatpush1.msra.mxu0 0.0
      %2492 = vmatprep.subr.mxu0 0.0
      %2493 = vmatpush1.msra.mxu0 0.0
      %2494 = vmatprep.subr.mxu0 0.0
      %2495 = vmatpush1.msra.mxu0 0.0
      %2496 = vmatprep.subr.mxu0 0.0
      %2497 = vmatpush1.msra.mxu0 0.0
      %2498 = vmatprep.subr.mxu0 0.0
      %2499 = vmatpush1.msra.mxu0 0.0
      %2500 = vmatprep.subr.mxu0 0.0
      %2501 = vmatpush1.msra.mxu0 0.0
      %2502 = vmatprep.subr.mxu0 0.0
      %2503 = vmatpush1.msra.mxu0 0.0
      %2504 = vmatprep.subr.mxu0 0.0
      %2505 = vmatpush1.msra.mxu0 0.0
      %2506 = vmatprep.subr.mxu0 0.0
      %2507 = vmatpush1.msra.mxu0 0.0
      %2508 = vmatprep.subr.mxu0 0.0
      %2509 = vmatpush1.msra.mxu0 0.0
      %2510 = vmatprep.subr.mxu0 0.0
      %2511 = vmatpush1.msra.mxu0 0.0
      %2512 = vmatprep.subr.mxu0 0.0
      %2513 = vmatpush1.msra.mxu0 0.0
      %2514 = vmatprep.subr.mxu0 0.0
      %2515 = vmatpush1.msra.mxu0 0.0
      %2516 = vmatprep.mubr.f32.mxu0 0.0
      %2517 = vmatmul.mubr.f32.gmra.mrb[0].mxu0 %v2450
      %v2518 = vpop.f32.mrb[0].mxu0
      %v2519 = vadd.f32 0.0, %v2518
      %v2520 = vpop.f32.mrb[0].mxu0
      %2521 = vdwg.mxu0
      %2523 = vrot.lane.b32.xlu0 %v2446, 32
      %v2524 = vpop.permute.xlu0 %2523
      %v2525 = vsel %vm504, %v2524, 0
      %2527 = vmatprep.subr.mxu0 0.0
      %2528 = vmatpush1.msra.mxu0 %v495
      %2529 = vmatprep.subr.mxu0 0.0
      %2530 = vmatpush1.msra.mxu0 %v496
      %2531 = vmatprep.subr.mxu0 0.0
      %2532 = vmatpush1.msra.mxu0 %v497
      %2533 = vmatprep.subr.mxu0 0.0
      %2534 = vmatpush1.msra.mxu0 %v498
      %2535 = vmatprep.subr.mxu0 0.0
      %2536 = vmatpush1.msra.mxu0 0.0
      %2537 = vmatprep.subr.mxu0 0.0
      %2538 = vmatpush1.msra.mxu0 0.0
      %2539 = vmatprep.subr.mxu0 0.0
      %2540 = vmatpush1.msra.mxu0 0.0
      %2541 = vmatprep.subr.mxu0 0.0
      %2542 = vmatpush1.msra.mxu0 0.0
      %2543 = vmatprep.subr.mxu0 0.0
      %2544 = vmatpush1.msra.mxu0 0.0
      %2545 = vmatprep.subr.mxu0 0.0
      %2546 = vmatpush1.msra.mxu0 0.0
      %2547 = vmatprep.subr.mxu0 0.0
      %2548 = vmatpush1.msra.mxu0 0.0
      %2549 = vmatprep.subr.mxu0 0.0
      %2550 = vmatpush1.msra.mxu0 0.0
      %2551 = vmatprep.subr.mxu0 0.0
      %2552 = vmatpush1.msra.mxu0 0.0
      %2553 = vmatprep.subr.mxu0 0.0
      %2554 = vmatpush1.msra.mxu0 0.0
      %2555 = vmatprep.subr.mxu0 0.0
      %2556 = vmatpush1.msra.mxu0 0.0
      %2557 = vmatprep.subr.mxu0 0.0
      %2558 = vmatpush1.msra.mxu0 0.0
      %2559 = vmatprep.subr.mxu0 0.0
      %2560 = vmatpush1.msra.mxu0 0.0
      %2561 = vmatprep.subr.mxu0 0.0
      %2562 = vmatpush1.msra.mxu0 0.0
      %2563 = vmatprep.subr.mxu0 0.0
      %2564 = vmatpush1.msra.mxu0 0.0
      %2565 = vmatprep.subr.mxu0 0.0
      %2566 = vmatpush1.msra.mxu0 0.0
      %2567 = vmatprep.subr.mxu0 0.0
      %2568 = vmatpush1.msra.mxu0 0.0
      %2569 = vmatprep.subr.mxu0 0.0
      %2570 = vmatpush1.msra.mxu0 0.0
      %2571 = vmatprep.subr.mxu0 0.0
      %2572 = vmatpush1.msra.mxu0 0.0
      %2573 = vmatprep.subr.mxu0 0.0
      %2574 = vmatpush1.msra.mxu0 0.0
      %2575 = vmatprep.subr.mxu0 0.0
      %2576 = vmatpush1.msra.mxu0 0.0
      %2577 = vmatprep.subr.mxu0 0.0
      %2578 = vmatpush1.msra.mxu0 0.0
      %2579 = vmatprep.subr.mxu0 0.0
      %2580 = vmatpush1.msra.mxu0 0.0
      %2581 = vmatprep.subr.mxu0 0.0
      %2582 = vmatpush1.msra.mxu0 0.0
      %2583 = vmatprep.subr.mxu0 0.0
      %2584 = vmatpush1.msra.mxu0 0.0
      %2585 = vmatprep.subr.mxu0 0.0
      %2586 = vmatpush1.msra.mxu0 0.0
      %2587 = vmatprep.subr.mxu0 0.0
      %2588 = vmatpush1.msra.mxu0 0.0
      %2589 = vmatprep.subr.mxu0 0.0
      %2590 = vmatpush1.msra.mxu0 0.0
      %2591 = vmatprep.mubr.f32.mxu0 0.0
      %2592 = vmatmul.mubr.f32.gmra.mrb[0].mxu0 %v2525
      %v2593 = vpop.f32.mrb[0].mxu0
      %v2594 = vadd.f32 %v2519, %v2593
      %v2595 = vpop.f32.mrb[0].mxu0
      %2596 = vdwg.mxu0
      %v2597 = vadd.f32 %v2594, %v748
      %v2598 = vmul.f32 %v2597, 0.5
      %v2599 = vtanh.pop %v2598
      %v2600 = vmul.f32 %v2599, 0.5
      %v2601 = vadd.f32 %v2600, 0.5
      %v2602 = vmul.f32 %v2601, %v2348
      %2604 = vrot.lane.b32.xlu0 %v2599, 64
      %v2605 = vpop.permute.xlu0 %2604
      %v2607 = vmul.f32 %v2601, %v2605
      %2609 = vrot.lane.b32.xlu0 %v2607, 32
      %v2610 = vpop.permute.xlu0 %2609
      %v2612 = vadd.f32 %v2602, %v2610
      %v2613 = vtanh.pop %v2612
      %2615 = vrot.lane.b32.xlu0 %v2613, 64
      %v2616 = vpop.permute.xlu0 %2615
      %v2618 = vmul.f32 %v2601, %v2616
      %v2619 = vld [vmem:[%s5 + $0x2] sm:$0x1]
      %v2620 = vld [vmem:[%s5 + $0x3] sm:$0x1]
      %v2621 = vlaneseq
      %v2622 = vshrl.u32 %v2621, 7
      %v2623 = vsub.s32 0, %v2622
      %v2624 = vrot.slane %v2619, %v2623
      %2626 = vrot.lane.b32.xlu0 %v2624, 96
      %v2627 = vpop.permute.xlu0 %2626
      %v2629 = vmul.f32 %v2618, %v2627
      %2631 = vrot.lane.b32.xlu0 %v2629, 32
      %v2632 = vpop.permute.xlu0 %2631
      %v2634 = vsel %vm504, %v2632, 0.0
      %2635 = vadd.xlane.f32.xlu0 %v2634
      %v2636 = vpop.xlane.xlu0 %2635
      %v2637 = vlaneseq
      %v2638 = vshrl.u32 %v2637, 7
      %v2639 = vsub.s32 0, %v2638
      %v2640 = vrot.slane %v2620, %v2639
      %v2641 = vadd.f32 %v2636, %v2640
      %v2642 = vmul.f32 %v2641, 0.5
      %v2643 = vtanh.pop %v2642
      %v2644 = vmul.f32 %v2643, 0.5
      %v2645 = vadd.f32 %v2644, 0.5
      %2647 = vset.pattern.permute.xlu0 0
      %2648 = vperm.xlu0 %2647, %v2645
      %v2649 = vpop.permute.xlu0 %2648
      %2651 = vst [vmem:[%s285] sm:$0xff] %v2649
      %2654 = vrot.lane.b32.xlu0 %v2618, 64
      %v2655 = vpop.permute.xlu0 %2654
      %2658 = vrot.lane.b32.xlu0 %v2440, 32
      %v2659 = vpop.permute.xlu0 %2658
      %2662 = vrot.lane.b32.xlu0 %v2612, 64
      %v2663 = vpop.permute.xlu0 %2662
      %v2665 = vsel %vm504, %v2524, %v2655
      %v2666 = vsel %vm361, %v2665, %v2659
      %vm2667 = vcmask 785408
      %v2668 = vsel %vm2667, %v2666, %v2663
      %2669 = vst [vmem:[%s289] sm:$0xff] %v2668
      %p2670 = scmp.lt.s32.totalorder %s19, 1
      %s2671 = scalar_select %p2670, %s19, 1
      %s2672 = smul.addr %s2671, 8
      %s2673 = scalar_lea.vmem %s6, %s2672
      %p2674 = scmp.lt.s32.totalorder %s19, 1
      %s2675 = scalar_select %p2674, %s19, 1
      %s2676 = smul.addr %s2675, 8
      %s2677 = scalar_lea.vmem %s7, %s2676
      // Predicated region
      $region45: #{sentiment_rnn_forward.1} parent=43 // pred_check
        %p2678 = pneg %p168
      $region46: #{sentiment_rnn_forward.1} parent=43 // pred_check_branch
        %2680 = sbr.rel (%p2678) target = $region48
      $region47: #{sentiment_rnn_forward.1} parent=43 // pred_region
        _
      $region48: #{sentiment_rnn_forward.1} parent=43 // pred_fallthru
        _
      // Predicated region
      $region49: #{sentiment_rnn_forward.1} parent=43 // pred_check
        %p2681 = pneg %p194
      $region50: #{sentiment_rnn_forward.1} parent=43 // pred_check_branch
        %2683 = sbr.rel (%p2681) target = $region52
      $region51: #{sentiment_rnn_forward.1} parent=43 // pred_region
        _
      $region52: #{sentiment_rnn_forward.1} parent=43 // pred_fallthru
        _
    $region44: #{sentiment_rnn_forward.1} parent=5 // pred_fallthru
      _
    %p2684 = scmp.le.s32.totalorder 2, %s14
    // Predicated region
    $region53: #{sentiment_rnn_forward.1} parent=5 // pred_check
      %p2685 = pneg %p2684
    $region54: #{sentiment_rnn_forward.1} parent=5 // pred_check_branch
      %2687 = sbr.rel (%p2685) target = $region56
    $region55: #{sentiment_rnn_forward.1} parent=5 // pred_region
      %s2688 = ssub.s32 %s14, 2
      // Predicated region
      $region57: #{sentiment_rnn_forward.1} parent=55 // pred_check
        %p2689 = pneg %p174
      $region58: #{sentiment_rnn_forward.1} parent=55 // pred_check_branch
        %2691 = sbr.rel (%p2689) target = $region60
      $region59: #{sentiment_rnn_forward.1} parent=55 // pred_region
        %p2692 = scmp.lt.s32.totalorder %s20, 1
        %s2693 = scalar_select %p2692, %s20, 1
        %s2694 = smul.addr %s2693, 8
        %s2695 = scalar_lea.vmem %s6, %s2694
      $region60: #{sentiment_rnn_forward.1} parent=55 // pred_fallthru
        _
      // Predicated region
      $region61: #{sentiment_rnn_forward.1} parent=55 // pred_check
        %p2696 = pneg %p200
      $region62: #{sentiment_rnn_forward.1} parent=55 // pred_check_branch
        %2698 = sbr.rel (%p2696) target = $region64
      $region63: #{sentiment_rnn_forward.1} parent=55 // pred_region
        %p2699 = scmp.lt.s32.totalorder %s20, 1
        %s2700 = scalar_select %p2699, %s20, 1
        %s2701 = smul.addr %s2700, 8
        %s2702 = scalar_lea.vmem %s7, %s2701
      $region64: #{sentiment_rnn_forward.1} parent=55 // pred_fallthru
        _
    $region56: #{sentiment_rnn_forward.1} parent=5 // pred_fallthru
      _
  $region6: #{sentiment_rnn_forward.1} parent=0 // loop_footer
    %s18 = sadd.s32 1, %s14
  $region7: #{sentiment_rnn_forward.1} parent=0 // loop_footer_branch
    %13 = sbr.rel target = $region3
  $region8: #{sentiment_rnn_forward.1} parent=0 // loop_exit
    _

</llo_original>
